<compile_context>
chip_gen: v7x
topology: tpu7x:2x2x1
jax: 0.10.0
libtpu: 0.0.40
codegen_flags: <defaults>
</compile_context>

<pallas_src>
import functools

import jax
import jax.numpy as jnp
from jax.experimental import pallas as pl
from jax.experimental.pallas import tpu as pltpu

EPS = 1e-5
_LANE = 128
_MM_ROW_TILE = 512       # matmul (1x1 conv) kernels
_EW_ROW_TILE = 1024      # elementwise (BN affine / residual) kernel


def _round_up(x, m):
    return (x + m - 1) // m * m


def _vmem_limit_bytes():
    # Generation-aware VMEM budget with ~20% headroom for compiler scratch and
    # the BlockSpec double buffers (~100 MiB on v5e/v6e, ~50 MiB on v7x).
    try:
        cap = int(pltpu.get_tpu_info().vmem_capacity_bytes)
    except Exception:
        cap = 64 * 1024 * 1024
    return max(32 * 1024 * 1024, min(int(cap * 0.78), 100 * 1024 * 1024))


_VMEM_LIMIT = _vmem_limit_bytes()


def _cparams(n_axes=1):
    return pltpu.CompilerParams(
        dimension_semantics=("parallel",) * n_axes,
        vmem_limit_bytes=_VMEM_LIMIT)


def _pick_tile(m, target):
    """Pick a row tile for a flattened row count `m`.

    Prefers an exact divisor of m (no padded rows, no masking, free reshapes)
    and >=2 grid steps (v7x megacore); falls back to round-up padding."""
    if m % 8 == 0 and m >= 8:
        hi = min(target, m)
        lo = max(8, min(target // 8, m))
        for t in range(hi - hi % 8, lo - 1, -8):
            if m % t == 0 and (m // t >= 2 or m <= 8):
                return t, m
        for t in range(hi - hi % 8, lo - 1, -8):
            if m % t == 0:
                return t, m
    t = min(target, _round_up(max(m, 1), 8))
    return t, _round_up(m, t)


# --------------------------------------------------------------------------
# Kernels
# --------------------------------------------------------------------------
def _mm_stats_kernel(x_ref, w_ref, y_ref, st_ref, *, mat_dtype):
    # Expansion 1x1 conv == matmul on the MXU + per-tile partial BN statistics.
    # Padded rows of x (if any) are exactly zero, so they add zero rows to y
    # and do not perturb the statistics (count uses the valid row count only).
    y = jnp.dot(x_ref[...].astype(mat_dtype), w_ref[...],
                preferred_element_type=jnp.float32)
    y_ref[...] = y
    s = jnp.sum(y, axis=0, keepdims=True)
    ss = jnp.sum(y * y, axis=0, keepdims=True)
    st_ref[...] = jnp.concatenate([s, ss], axis=0)[None]


def _act_mm_stats_kernel(*refs, tm, m_valid, mat_dtype):
    # Folded BN2 (scale/bias) + ReLU fused with the projection 1x1 matmul +
    # per-tile partial BN3 statistics.
    if m_valid is None:
        # Row count divides the tile exactly: no padded rows, no mask needed.
        x_ref, s_ref, b_ref, w_ref, y_ref, st_ref = refs
        h = jnp.maximum(x_ref[...] * s_ref[...] + b_ref[...], 0.0)
    else:
        # Only the last tile holds padded rows: mask them there (and only
        # there) so the BN statistics stay exact.
        x_ref, s_ref, b_ref, w_ref, y_ref, st_ref, h_ref = refs
        h_ref[...] = jnp.maximum(x_ref[...] * s_ref[...] + b_ref[...], 0.0)

        @pl.when(pl.program_id(0) == pl.num_programs(0) - 1)
        def _():
            rem = m_valid % tm
            row = jax.lax.broadcasted_iota(jnp.int32, h_ref.shape, 0)
            h_ref[...] = jnp.where(row < rem, h_ref[...], 0.0)

        h = h_ref[...]
    y = jnp.dot(h.astype(mat_dtype), w_ref[...],
                preferred_element_type=jnp.float32)
    y_ref[...] = y
    s = jnp.sum(y, axis=0, keepdims=True)
    ss = jnp.sum(y * y, axis=0, keepdims=True)
    st_ref[...] = jnp.concatenate([s, ss], axis=0)[None]


def _scale_bias_kernel(x_ref, s_ref, b_ref, o_ref):
    o_ref[...] = x_ref[...] * s_ref[...] + b_ref[...]


def _scale_bias_res_kernel(x_ref, s_ref, b_ref, r_ref, o_ref):
    o_ref[...] = x_ref[...] * s_ref[...] + b_ref[...] + r_ref[...]


def _dw_s1_kernel(x_ref, s_ref, b_ref, w_ref, y_ref, st_ref, xp_ref, *,
                  apply_act, h, w):
    # Depthwise 3x3, stride 1.  The input block is the raw (pre-BN) expansion
    # output for one sample / one channel tile; the folded BN1+ReLU is applied
    # here (all pixels valid -> no mask needed), then the 1-pixel zero halo is
    # built in VMEM scratch and the 9-tap MAC uses unit-stride static windows.
    x = x_ref[0]
    if apply_act:
        x = jnp.maximum(x * s_ref[...] + b_ref[...], 0.0)
    xp_ref[...] = jnp.zeros_like(xp_ref)
    xp_ref[1:1 + h, 1:1 + w, :] = x
    c = y_ref.shape[-1]
    acc = jnp.zeros((h, w, c), jnp.float32)
    for kh in range(3):
        for kw in range(3):
            acc = acc + xp_ref[kh:kh + h, kw:kw + w, :] * w_ref[kh * 3 + kw]
    y_ref[0] = acc
    s = jnp.sum(jnp.sum(acc, axis=0), axis=0, keepdims=True)
    ss = jnp.sum(jnp.sum(acc * acc, axis=0), axis=0, keepdims=True)
    st_ref[...] = jnp.concatenate([s, ss], axis=0)[None]


def _dw_s2_kernel(ph_ref, s_ref, b_ref, w_ref, y_ref, st_ref, hact_ref, *,
                  apply_act, h, w, out_h, out_w):
    # Depthwise 3x3, stride 2, on phase-split (space-to-depth) blocks built
    # from the RAW (pre-BN1) tensor.  The folded BN1+ReLU is applied here with
    # an explicit validity mask: the zero halo must stay zero because
    # ReLU(0*scale+bias) = max(bias, 0) != 0.
    ph_h, ph_w = ph_ref.shape[1], ph_ref.shape[2]
    if apply_act:
        r_i = jax.lax.broadcasted_iota(jnp.int32, (ph_h, ph_w), 0)
        c_i = jax.lax.broadcasted_iota(jnp.int32, (ph_h, ph_w), 1)
        for p in range(4):
            roff, coff = p // 2, p % 2
            rp = 2 * r_i + roff           # row index in the padded image
            cl = 2 * c_i + coff           # col index in the padded image
            valid = ((rp >= 1) & (rp <= h) & (cl >= 1) & (cl <= w))[..., None]
            act = jnp.maximum(ph_ref[p] * s_ref[...] + b_ref[...], 0.0)
            hact_ref[p] = jnp.where(valid, act, 0.0)
        src = hact_ref
    else:
        src = ph_ref
    c = y_ref.shape[-1]
    acc = jnp.zeros((out_h, out_w, c), jnp.float32)
    for kh in range(3):
        for kw in range(3):
            p = (kh % 2) * 2 + (kw % 2)
            dh, dw_ = kh // 2, kw // 2
            acc = acc + src[p, dh:dh + out_h, dw_:dw_ + out_w, :] * w_ref[kh * 3 + kw]
    y_ref[0] = acc
    s = jnp.sum(jnp.sum(acc, axis=0), axis=0, keepdims=True)
    ss = jnp.sum(jnp.sum(acc * acc, axis=0), axis=0, keepdims=True)
    st_ref[...] = jnp.concatenate([s, ss], axis=0)[None]


# --------------------------------------------------------------------------
# pallas_call wrappers (row/channel-tiled grids, lane-dense 128-padded channels)
# --------------------------------------------------------------------------
def mm_stats(x, w, tm, mat_dtype):
    mp, ci = x.shape
    co = w.shape[1]
    nt = mp // tm
    kernel = functools.partial(_mm_stats_kernel, mat_dtype=mat_dtype)
    return pl.pallas_call(
        kernel,
        grid=(nt,),
        in_specs=[pl.BlockSpec((tm, ci), lambda i: (i, 0)),
                  pl.BlockSpec((ci, co), lambda i: (0, 0))],
        out_specs=[pl.BlockSpec((tm, co), lambda i: (i, 0)),
                   pl.BlockSpec((1, 2, co), lambda i: (i, 0, 0))],
        out_shape=[jax.ShapeDtypeStruct((mp, co), jnp.float32),
                   jax.ShapeDtypeStruct((nt, 2, co), jnp.float32)],
        compiler_params=_cparams(1),
    )(x, w)


def act_mm_stats(x, scale, bias, w, tm, m_valid, mat_dtype):
    mp, ci = x.shape
    co = w.shape[1]
    nt = mp // tm
    kernel = functools.partial(_act_mm_stats_kernel, tm=tm, m_valid=m_valid,
                               mat_dtype=mat_dtype)
    scratch = [] if m_valid is None else [pltpu.VMEM((tm, ci), jnp.float32)]
    return pl.pallas_call(
        kernel,
        grid=(nt,),
        in_specs=[pl.BlockSpec((tm, ci), lambda i: (i, 0)),
                  pl.BlockSpec((1, ci), lambda i: (0, 0)),
                  pl.BlockSpec((1, ci), lambda i: (0, 0)),
                  pl.BlockSpec((ci, co), lambda i: (0, 0))],
        out_specs=[pl.BlockSpec((tm, co), lambda i: (i, 0)),
                   pl.BlockSpec((1, 2, co), lambda i: (i, 0, 0))],
        out_shape=[jax.ShapeDtypeStruct((mp, co), jnp.float32),
                   jax.ShapeDtypeStruct((nt, 2, co), jnp.float32)],
        scratch_shapes=scratch,
        compiler_params=_cparams(1),
    )(x, scale, bias, w)


def scale_bias_act(x, scale, bias, tm, *, res=None):
    mp, c = x.shape
    nt = mp // tm
    in_specs = [pl.BlockSpec((tm, c), lambda i: (i, 0)),
                pl.BlockSpec((1, c), lambda i: (0, 0)),
                pl.BlockSpec((1, c), lambda i: (0, 0))]
    args = [x, scale, bias]
    if res is not None:
        in_specs.append(pl.BlockSpec((tm, c), lambda i: (i, 0)))
        args.append(res)
        kernel = _scale_bias_res_kernel
    else:
        kernel = _scale_bias_kernel
    return pl.pallas_call(
        kernel,
        grid=(nt,),
        in_specs=in_specs,
        out_specs=pl.BlockSpec((tm, c), lambda i: (i, 0)),
        out_shape=jax.ShapeDtypeStruct((mp, c), jnp.float32),
        compiler_params=_cparams(1),
    )(*args)


def dw_s1(img, scale, bias, w_dw, apply_act):
    # grid = (batch, channel tiles): depthwise channels are independent, so
    # channel tiling gives pipelining + megacore sharding with no halo exchange.
    n, h, w, cp = img.shape
    tc = min(cp, _LANE)
    nct = cp // tc
    kernel = functools.partial(_dw_s1_kernel, apply_act=apply_act, h=h, w=w)
    return pl.pallas_call(
        kernel,
        grid=(n, nct),
        in_specs=[pl.BlockSpec((1, h, w, tc), lambda i, j: (i, 0, 0, j)),
                  pl.BlockSpec((1, tc), lambda i, j: (0, j)),
                  pl.BlockSpec((1, tc), lambda i, j: (0, j)),
                  pl.BlockSpec((9, 1, tc), lambda i, j: (0, 0, j))],
        out_specs=[pl.BlockSpec((1, h, w, tc), lambda i, j: (i, 0, 0, j)),
                   pl.BlockSpec((1, 2, tc), lambda i, j: (i, 0, j))],
        out_shape=[jax.ShapeDtypeStruct((n, h, w, cp), jnp.float32),
                   jax.ShapeDtypeStruct((n, 2, cp), jnp.float32)],
        scratch_shapes=[pltpu.VMEM((h + 2, w + 2, tc), jnp.float32)],
        compiler_params=_cparams(2),
    )(img, scale, bias, w_dw)


def dw_s2(phases, scale, bias, w_dw, apply_act, h, w, out_h, out_w):
    p_total, ph_h, ph_w, cp = phases.shape
    n = p_total // 4
    tc = min(cp, _LANE)
    nct = cp // tc
    kernel = functools.partial(_dw_s2_kernel, apply_act=apply_act,
                               h=h, w=w, out_h=out_h, out_w=out_w)
    return pl.pallas_call(
        kernel,
        grid=(n, nct),
        in_specs=[pl.BlockSpec((4, ph_h, ph_w, tc), lambda i, j: (i, 0, 0, j)),
                  pl.BlockSpec((1, tc), lambda i, j: (0, j)),
                  pl.BlockSpec((1, tc), lambda i, j: (0, j)),
                  pl.BlockSpec((9, 1, tc), lambda i, j: (0, 0, j))],
        out_specs=[pl.BlockSpec((1, out_h, out_w, tc), lambda i, j: (i, 0, 0, j)),
                   pl.BlockSpec((1, 2, tc), lambda i, j: (i, 0, j))],
        out_shape=[jax.ShapeDtypeStruct((n, out_h, out_w, cp), jnp.float32),
                   jax.ShapeDtypeStruct((n, 2, cp), jnp.float32)],
        scratch_shapes=[pltpu.VMEM((4, ph_h, ph_w, tc), jnp.float32)],
        compiler_params=_cparams(2),
    )(phases, scale, bias, w_dw)


# --------------------------------------------------------------------------
# Wrapper-side glue (tiny per-channel math + layout plumbing only)
# --------------------------------------------------------------------------
def _pad_vec(v, n):
    return jnp.pad(v.astype(jnp.float32), (0, n - v.shape[0]))


def _fold_bn(stats, count, gamma, beta, cpad):
    # Fold training-mode BN (biased variance) into per-channel scale/bias.
    tot = jnp.sum(stats, axis=0)                    # (2, cpad)
    mean = tot[0] / count
    var = jnp.maximum(tot[1] / count - mean * mean, 0.0)
    scale = _pad_vec(gamma, cpad) * jax.lax.rsqrt(var + EPS)
    bias = _pad_vec(beta, cpad) - mean * scale
    return scale.reshape(1, cpad), bias.reshape(1, cpad)


def _make_phases(img, out_h, out_w):
    # stride==2 only: zero spatial pad (conv padding=1) + phase split of the
    # RAW tensor, so every in-kernel read stays unit-stride.  One XLA pass.
    n, hh, ww, c = img.shape
    need_h, need_w = 2 * out_h + 2, 2 * out_w + 2
    xpad = jnp.pad(img, ((0, 0), (1, need_h - hh - 1), (1, need_w - ww - 1), (0, 0)))
    ph_h, ph_w = out_h + 1, out_w + 1
    phs = [xpad[:, ph::2, pw::2, :][:, :ph_h, :ph_w, :]
           for ph in range(2) for pw in range(2)]
    return jnp.stack(phs, axis=1).reshape(n * 4, ph_h, ph_w, c)


def inverted_residual(x_nchw, params, *, stride, expand_ratio,
                      matmul_dtype=jnp.float32):
    """Forward pass of InvertedResidual (training-mode BatchNorm). NCHW in/out."""
    assert stride in (1, 2)
    n, cin, h, w = x_nchw.shape
    cexp = cin * expand_ratio
    cout = params["w_proj"].shape[1]
    cip = _round_up(cin, _LANE)
    cp = _round_up(cexp, _LANE)
    cop = _round_up(cout, _LANE)
    out_h = (h - 1) // stride + 1
    out_w = (w - 1) // stride + 1
    m1, m2 = n * h * w, n * out_h * out_w

    x_nhwc = jnp.transpose(x_nchw, (0, 2, 3, 1)).astype(jnp.float32)
    x2d_p = jnp.pad(x_nhwc.reshape(m1, cin), ((0, 0), (0, cip - cin)))

    # --- stage 1: expansion 1x1 conv (raw) + partial BN1 stats.  BN1+ReLU is
    # folded into the depthwise kernel, so y1 is written once and read once.
    if expand_ratio != 1:
        tm1, mp1 = _pick_tile(m1, _MM_ROW_TILE)
        xe = x2d_p if mp1 == m1 else jnp.pad(x2d_p, ((0, mp1 - m1), (0, 0)))
        w_exp = jnp.pad(params["w_exp"],
                        ((0, cip - cin), (0, cp - cexp))).astype(matmul_dtype)
        y1, st1 = mm_stats(xe, w_exp, tm1, matmul_dtype)
        sc1, bi1 = _fold_bn(st1, m1, params["g_exp"], params["b_exp"], cp)
        y1_img = y1[:m1].reshape(n, h, w, cp)
        apply_act = True
    else:
        y1_img = x2d_p.reshape(n, h, w, cp)          # cp == cip here
        sc1 = jnp.ones((1, cp), jnp.float32)
        bi1 = jnp.zeros((1, cp), jnp.float32)
        apply_act = False

    w_dw = jnp.pad(params["w_dw"].reshape(9, cexp),
                   ((0, 0), (0, cp - cexp))).reshape(9, 1, cp)

    # --- stage 2: depthwise 3x3 (stride) conv with BN1+ReLU fused in; emits
    # partial BN2 stats.  BN2+ReLU is fused into the projection matmul below.
    if stride == 1:
        y2, st2 = dw_s1(y1_img, sc1, bi1, w_dw, apply_act)
    else:
        phases = _make_phases(y1_img, out_h, out_w)
        y2, st2 = dw_s2(phases, sc1, bi1, w_dw, apply_act, h, w, out_h, out_w)
    sc2, bi2 = _fold_bn(st2, m2, params["g_dw"], params["b_dw"], cp)

    # --- stage 3: (BN2+ReLU) -> projection 1x1 conv + partial BN3 stats.
    tm2, mp2 = _pick_tile(m2, _MM_ROW_TILE)
    y2f = y2.reshape(m2, cp)
    if mp2 != m2:
        y2f = jnp.pad(y2f, ((0, mp2 - m2), (0, 0)))
    w_proj = jnp.pad(params["w_proj"],
                     ((0, cp - cexp), (0, cop - cout))).astype(matmul_dtype)
    y3, st3 = act_mm_stats(y2f, sc2, bi2, w_proj, tm2,
                           None if mp2 == m2 else m2, matmul_dtype)
    sc3, bi3 = _fold_bn(st3, m2, params["g_proj"], params["b_proj"], cop)

    # --- stage 4: BN3 affine (+ residual).  Residual reuses the already
    # channel-padded input (cin == cout => cip == cop, m1 == m2): no extra copy.
    residual = (stride == 1) and (cin == cout)
    res = None
    if residual:
        res = x2d_p if mp2 == m1 else jnp.pad(x2d_p, ((0, mp2 - m1), (0, 0)))
    tmf, _ = _pick_tile(mp2, _EW_ROW_TILE)
    out = scale_bias_act(y3, sc3, bi3, tmf, res=res)

    out = out[:m2, :cout].reshape(n, out_h, out_w, cout)
    return jnp.transpose(out, (0, 3, 1, 2))


# --------------------------------------------------------------------------
# Deterministic parameter init (synthetic; no checkpoint loading)
# --------------------------------------------------------------------------
def init_params(key, inp, outp, expand_ratio):
    cexp = inp * expand_ratio
    ks = jax.random.split(key, 9)
    p = {}
    if expand_ratio != 1:
        p["w_exp"] = 0.1 * jax.random.normal(ks[0], (inp, cexp), jnp.float32)
        p["g_exp"] = 1.0 + 0.1 * jax.random.normal(ks[1], (cexp,), jnp.float32)
        p["b_exp"] = 0.1 * jax.random.normal(ks[2], (cexp,), jnp.float32)
    p["w_dw"] = 0.1 * jax.random.normal(ks[3], (3, 3, cexp), jnp.float32)
    p["g_dw"] = 1.0 + 0.1 * jax.random.normal(ks[4], (cexp,), jnp.float32)
    p["b_dw"] = 0.1 * jax.random.normal(ks[5], (cexp,), jnp.float32)
    p["w_proj"] = 0.1 * jax.random.normal(ks[6], (cexp, outp), jnp.float32)
    p["g_proj"] = 1.0 + 0.1 * jax.random.normal(ks[7], (outp,), jnp.float32)
    p["b_proj"] = 0.1 * jax.random.normal(ks[8], (outp,), jnp.float32)
    return p


# --------------------------------------------------------------------------
# Pure-JAX reference (for correctness check only; not the kernel path)
# --------------------------------------------------------------------------
def _ref_bn(y, g, b):
    mean = jnp.mean(y, axis=(0, 1, 2), keepdims=True)
    var = jnp.mean(jnp.square(y - mean), axis=(0, 1, 2), keepdims=True)
    return (y - mean) * jax.lax.rsqrt(var + EPS) * g + b


def ref_forward(x_nchw, params, *, stride, expand_ratio):
    dn = ("NHWC", "HWIO", "NHWC")
    x = jnp.transpose(x_nchw, (0, 2, 3, 1))
    cin = x.shape[-1]
    h = x
    if expand_ratio != 1:
        h = jax.lax.conv_general_dilated(h, params["w_exp"][None, None], (1, 1),
                                         "VALID", dimension_numbers=dn)
        h = jnp.maximum(_ref_bn(h, params["g_exp"], params["b_exp"]), 0.0)
    cexp = h.shape[-1]
    h = jax.lax.conv_general_dilated(h, params["w_dw"][:, :, None, :], (stride, stride),
                                     ((1, 1), (1, 1)), dimension_numbers=dn,
                                     feature_group_count=cexp)
    h = jnp.maximum(_ref_bn(h, params["g_dw"], params["b_dw"]), 0.0)
    h = jax.lax.conv_general_dilated(h, params["w_proj"][None, None], (1, 1),
                                     "VALID", dimension_numbers=dn)
    h = _ref_bn(h, params["g_proj"], params["b_proj"])
    if stride == 1 and cin == h.shape[-1]:
        h = h + x
    return jnp.transpose(h, (0, 3, 1, 2))


# --------------------------------------------------------------------------
if __name__ == "__main__":
    key = jax.random.PRNGKey(0)
    kx, kp1, kp2 = jax.random.split(key, 3)

    # Case 1: stride=1, inp == outp  -> residual connection, expansion path active.
    inp, outp, stride, expand_ratio = 4, 4, 1, 4
    x = jax.random.normal(kx, (2, inp, 16, 16), jnp.float32)
    params = init_params(kp1, inp, outp, expand_ratio)
    fwd1 = jax.jit(functools.partial(inverted_residual, stride=stride,
                                     expand_ratio=expand_ratio))
    out = jax.block_until_ready(fwd1(x, params))
    ref = ref_forward(x, params, stride=stride, expand_ratio=expand_ratio)
    assert out.shape == (2, outp, 16, 16), out.shape
    assert jnp.allclose(out, ref, atol=1e-4, rtol=1e-4), float(jnp.max(jnp.abs(out - ref)))

    # Case 2: stride=2, inp != outp -> no residual, spatial downsampling.
    inp, outp, stride, expand_ratio = 4, 8, 2, 6
    x2 = jax.random.normal(kx, (2, inp, 16, 16), jnp.float32)
    params2 = init_params(kp2, inp, outp, expand_ratio)
    fwd2 = jax.jit(functools.partial(inverted_residual, stride=stride,
                                     expand_ratio=expand_ratio))
    out2 = jax.block_until_ready(fwd2(x2, params2))
    ref2 = ref_forward(x2, params2, stride=stride, expand_ratio=expand_ratio)
    assert out2.shape == (2, outp, 8, 8), out2.shape
    assert jnp.allclose(out2, ref2, atol=1e-4, rtol=1e-4), float(jnp.max(jnp.abs(out2 - ref2)))

    print("KERNEL_OK")
</pallas_src>

<mosaic_0001>
module attributes {stable_mosaic.version = 11 : i64} {
  func.func @_mm_stats_kernel(%arg0: i32, %arg1: memref<256x128xf32, #tpu.memory_space<vmem>>, %arg2: memref<128x128xf32, #tpu.memory_space<vmem>>, %arg3: memref<256x128xf32, #tpu.memory_space<vmem>>, %arg4: memref<1x2x128xf32, #tpu.memory_space<vmem>>) attributes {dimension_semantics = [#tpu.dimension_semantics<parallel>], iteration_bounds = array<i64: 2>, scalar_prefetch = 0 : i64, scratch_operands = 0 : i64, tpu.core_type = #tpu.core_type<tc>, window_params = [{transform_indices = @transform_0, window_bounds = array<i64: 256, 128>}, {pipeline_mode = #tpu.pipeline_mode<synchronous>, transform_indices = @transform_1, window_bounds = array<i64: 128, 128>}, {transform_indices = @transform_2, window_bounds = array<i64: 256, 128>}, {transform_indices = @transform_3, window_bounds = array<i64: 1, 2, 128>}]} {
    %c0 = arith.constant 0 : index
    %c0_0 = arith.constant 0 : index
    %0 = vector.load %arg1[%c0, %c0_0] : memref<256x128xf32, #tpu.memory_space<vmem>>, vector<256x128xf32>
    %c0_1 = arith.constant 0 : index
    %c0_2 = arith.constant 0 : index
    %1 = vector.load %arg2[%c0_1, %c0_2] : memref<128x128xf32, #tpu.memory_space<vmem>>, vector<128x128xf32>
    %cst = arith.constant dense<0.000000e+00> : vector<256x128xf32>
    %2 = tpu.matmul %0, %1, %cst {dimension_numbers = #tpu.dot_dimension_numbers<[1], [0], [0], [1], [0, 0, 1, 1], [], []>} : vector<256x128xf32>, vector<128x128xf32>, vector<256x128xf32> -> vector<256x128xf32>
    %c0_3 = arith.constant 0 : index
    %c0_4 = arith.constant 0 : index
    %3 = vector.load %arg3[%c0_3, %c0_4] : memref<256x128xf32, #tpu.memory_space<vmem>>, vector<256x128xf32>
    tpu.vector_store %arg3[%c0_3, %c0_4], %2 {strides = array<i32>} : memref<256x128xf32, #tpu.memory_space<vmem>>, vector<256x128xf32>,
    %cst_5 = arith.constant dense<0.000000e+00> : vector<128xf32>
    %4 = vector.multi_reduction <add>, %2, %cst_5 [0] : vector<256x128xf32> to vector<128xf32>
    %5 = vector.shape_cast %4 : vector<128xf32> to vector<1x128xf32>
    %6 = arith.mulf %2, %2 : vector<256x128xf32>
    %cst_6 = arith.constant dense<0.000000e+00> : vector<128xf32>
    %7 = vector.multi_reduction <add>, %6, %cst_6 [0] : vector<256x128xf32> to vector<128xf32>
    %8 = vector.shape_cast %7 : vector<128xf32> to vector<1x128xf32>
    %9 = tpu.concatenate %5, %8 in 0 : vector<1x128xf32>, vector<1x128xf32> -> vector<2x128xf32>
    %10 = vector.shape_cast %9 : vector<2x128xf32> to vector<1x2x128xf32>
    %c0_7 = arith.constant 0 : index
    %c0_8 = arith.constant 0 : index
    %c0_9 = arith.constant 0 : index
    %11 = vector.load %arg4[%c0_7, %c0_8, %c0_9] : memref<1x2x128xf32, #tpu.memory_space<vmem>>, vector<1x2x128xf32>
    tpu.vector_store %arg4[%c0_7, %c0_8, %c0_9], %10 {strides = array<i32>} : memref<1x2x128xf32, #tpu.memory_space<vmem>>, vector<1x2x128xf32>,
    return
  }
  func.func @transform_0(%arg0: i32) -> (i32, i32) {
    %c0_i32 = arith.constant 0 : i32
    %c0_i32_0 = arith.constant 0 : i32
    return %arg0, %c0_i32 : i32, i32
  }
  func.func @transform_1(%arg0: i32) -> (i32, i32) {
    %c0_i32 = arith.constant 0 : i32
    %c0_i32_0 = arith.constant 0 : i32
    %c0_i32_1 = arith.constant 0 : i32
    return %c0_i32, %c0_i32_0 : i32, i32
  }
  func.func @transform_2(%arg0: i32) -> (i32, i32) {
    %c0_i32 = arith.constant 0 : i32
    %c0_i32_0 = arith.constant 0 : i32
    return %arg0, %c0_i32 : i32, i32
  }
  func.func @transform_3(%arg0: i32) -> (i32, i32, i32) {
    %c0_i32 = arith.constant 0 : i32
    %c0_i32_0 = arith.constant 0 : i32
    %c0_i32_1 = arith.constant 0 : i32
    return %arg0, %c0_i32, %c0_i32_0 : i32, i32, i32
  }
}

module attributes {stable_mosaic.version = 11 : i64} {
  func.func @_act_mm_stats_kernel(%arg0: i32, %arg1: memref<256x128xf32, #tpu.memory_space<vmem>>, %arg2: memref<1x128xf32, #tpu.memory_space<vmem>>, %arg3: memref<1x128xf32, #tpu.memory_space<vmem>>, %arg4: memref<128x128xf32, #tpu.memory_space<vmem>>, %arg5: memref<256x128xf32, #tpu.memory_space<vmem>>, %arg6: memref<1x2x128xf32, #tpu.memory_space<vmem>>) attributes {dimension_semantics = [#tpu.dimension_semantics<parallel>], iteration_bounds = array<i64: 2>, scalar_prefetch = 0 : i64, scratch_operands = 0 : i64, tpu.core_type = #tpu.core_type<tc>, window_params = [{transform_indices = @transform_0, window_bounds = array<i64: 256, 128>}, {pipeline_mode = #tpu.pipeline_mode<synchronous>, transform_indices = @transform_1, window_bounds = array<i64: 1, 128>}, {pipeline_mode = #tpu.pipeline_mode<synchronous>, transform_indices = @transform_2, window_bounds = array<i64: 1, 128>}, {pipeline_mode = #tpu.pipeline_mode<synchronous>, transform_indices = @transform_3, window_bounds = array<i64: 128, 128>}, {transform_indices = @transform_4, window_bounds = array<i64: 256, 128>}, {transform_indices = @transform_5, window_bounds = array<i64: 1, 2, 128>}]} {
    %c0 = arith.constant 0 : index
    %c0_0 = arith.constant 0 : index
    %0 = vector.load %arg1[%c0, %c0_0] : memref<256x128xf32, #tpu.memory_space<vmem>>, vector<256x128xf32>
    %c0_1 = arith.constant 0 : index
    %c0_2 = arith.constant 0 : index
    %1 = vector.load %arg2[%c0_1, %c0_2] : memref<1x128xf32, #tpu.memory_space<vmem>>, vector<1x128xf32>
    %2 = vector.broadcast %1 : vector<1x128xf32> to vector<256x128xf32>
    %3 = arith.mulf %0, %2 : vector<256x128xf32>
    %c0_3 = arith.constant 0 : index
    %c0_4 = arith.constant 0 : index
    %4 = vector.load %arg3[%c0_3, %c0_4] : memref<1x128xf32, #tpu.memory_space<vmem>>, vector<1x128xf32>
    %5 = vector.broadcast %4 : vector<1x128xf32> to vector<256x128xf32>
    %6 = arith.addf %3, %5 : vector<256x128xf32>
    %cst = arith.constant 0.000000e+00 : f32
    %7 = vector.broadcast %cst : f32 to vector<256x128xf32>
    %8 = arith.maximumf %6, %7 : vector<256x128xf32>
    %c0_5 = arith.constant 0 : index
    %c0_6 = arith.constant 0 : index
    %9 = vector.load %arg4[%c0_5, %c0_6] : memref<128x128xf32, #tpu.memory_space<vmem>>, vector<128x128xf32>
    %cst_7 = arith.constant dense<0.000000e+00> : vector<256x128xf32>
    %10 = tpu.matmul %8, %9, %cst_7 {dimension_numbers = #tpu.dot_dimension_numbers<[1], [0], [0], [1], [0, 0, 1, 1], [], []>} : vector<256x128xf32>, vector<128x128xf32>, vector<256x128xf32> -> vector<256x128xf32>
    %c0_8 = arith.constant 0 : index
    %c0_9 = arith.constant 0 : index
    %11 = vector.load %arg5[%c0_8, %c0_9] : memref<256x128xf32, #tpu.memory_space<vmem>>, vector<256x128xf32>
    tpu.vector_store %arg5[%c0_8, %c0_9], %10 {strides = array<i32>} : memref<256x128xf32, #tpu.memory_space<vmem>>, vector<256x128xf32>,
    %cst_10 = arith.constant dense<0.000000e+00> : vector<128xf32>
    %12 = vector.multi_reduction <add>, %10, %cst_10 [0] : vector<256x128xf32> to vector<128xf32>
    %13 = vector.shape_cast %12 : vector<128xf32> to vector<1x128xf32>
    %14 = arith.mulf %10, %10 : vector<256x128xf32>
    %cst_11 = arith.constant dense<0.000000e+00> : vector<128xf32>
    %15 = vector.multi_reduction <add>, %14, %cst_11 [0] : vector<256x128xf32> to vector<128xf32>
    %16 = vector.shape_cast %15 : vector<128xf32> to vector<1x128xf32>
    %17 = tpu.concatenate %13, %16 in 0 : vector<1x128xf32>, vector<1x128xf32> -> vector<2x128xf32>
    %18 = vector.shape_cast %17 : vector<2x128xf32> to vector<1x2x128xf32>
    %c0_12 = arith.constant 0 : index
    %c0_13 = arith.constant 0 : index
    %c0_14 = arith.constant 0 : index
    %19 = vector.load %arg6[%c0_12, %c0_13, %c0_14] : memref<1x2x128xf32, #tpu.memory_space<vmem>>, vector<1x2x128xf32>
    tpu.vector_store %arg6[%c0_12, %c0_13, %c0_14], %18 {strides = array<i32>} : memref<1x2x128xf32, #tpu.memory_space<vmem>>, vector<1x2x128xf32>,
    return
  }
  func.func @transform_0(%arg0: i32) -> (i32, i32) {
    %c0_i32 = arith.constant 0 : i32
    %c0_i32_0 = arith.constant 0 : i32
    return %arg0, %c0_i32 : i32, i32
  }
  func.func @transform_1(%arg0: i32) -> (i32, i32) {
    %c0_i32 = arith.constant 0 : i32
    %c0_i32_0 = arith.constant 0 : i32
    %c0_i32_1 = arith.constant 0 : i32
    return %c0_i32, %c0_i32_0 : i32, i32
  }
  func.func @transform_2(%arg0: i32) -> (i32, i32) {
    %c0_i32 = arith.constant 0 : i32
    %c0_i32_0 = arith.constant 0 : i32
    %c0_i32_1 = arith.constant 0 : i32
    return %c0_i32, %c0_i32_0 : i32, i32
  }
  func.func @transform_3(%arg0: i32) -> (i32, i32) {
    %c0_i32 = arith.constant 0 : i32
    %c0_i32_0 = arith.constant 0 : i32
    %c0_i32_1 = arith.constant 0 : i32
    return %c0_i32, %c0_i32_0 : i32, i32
  }
  func.func @transform_4(%arg0: i32) -> (i32, i32) {
    %c0_i32 = arith.constant 0 : i32
    %c0_i32_0 = arith.constant 0 : i32
    return %arg0, %c0_i32 : i32, i32
  }
  func.func @transform_5(%arg0: i32) -> (i32, i32, i32) {
    %c0_i32 = arith.constant 0 : i32
    %c0_i32_0 = arith.constant 0 : i32
    %c0_i32_1 = arith.constant 0 : i32
    return %arg0, %c0_i32, %c0_i32_0 : i32, i32, i32
  }
}

module attributes {stable_mosaic.version = 11 : i64} {
  func.func @_scale_bias_res_kernel(%arg0: i32, %arg1: memref<256x128xf32, #tpu.memory_space<vmem>>, %arg2: memref<1x128xf32, #tpu.memory_space<vmem>>, %arg3: memref<1x128xf32, #tpu.memory_space<vmem>>, %arg4: memref<256x128xf32, #tpu.memory_space<vmem>>, %arg5: memref<256x128xf32, #tpu.memory_space<vmem>>) attributes {dimension_semantics = [#tpu.dimension_semantics<parallel>], iteration_bounds = array<i64: 2>, scalar_prefetch = 0 : i64, scratch_operands = 0 : i64, tpu.core_type = #tpu.core_type<tc>, window_params = [{transform_indices = @transform_0, window_bounds = array<i64: 256, 128>}, {pipeline_mode = #tpu.pipeline_mode<synchronous>, transform_indices = @transform_1, window_bounds = array<i64: 1, 128>}, {pipeline_mode = #tpu.pipeline_mode<synchronous>, transform_indices = @transform_2, window_bounds = array<i64: 1, 128>}, {transform_indices = @transform_3, window_bounds = array<i64: 256, 128>}, {transform_indices = @transform_4, window_bounds = array<i64: 256, 128>}]} {
    %c0 = arith.constant 0 : index
    %c0_0 = arith.constant 0 : index
    %0 = vector.load %arg1[%c0, %c0_0] : memref<256x128xf32, #tpu.memory_space<vmem>>, vector<256x128xf32>
    %c0_1 = arith.constant 0 : index
    %c0_2 = arith.constant 0 : index
    %1 = vector.load %arg2[%c0_1, %c0_2] : memref<1x128xf32, #tpu.memory_space<vmem>>, vector<1x128xf32>
    %2 = vector.broadcast %1 : vector<1x128xf32> to vector<256x128xf32>
    %3 = arith.mulf %0, %2 : vector<256x128xf32>
    %c0_3 = arith.constant 0 : index
    %c0_4 = arith.constant 0 : index
    %4 = vector.load %arg3[%c0_3, %c0_4] : memref<1x128xf32, #tpu.memory_space<vmem>>, vector<1x128xf32>
    %5 = vector.broadcast %4 : vector<1x128xf32> to vector<256x128xf32>
    %6 = arith.addf %3, %5 : vector<256x128xf32>
    %c0_5 = arith.constant 0 : index
    %c0_6 = arith.constant 0 : index
    %7 = vector.load %arg4[%c0_5, %c0_6] : memref<256x128xf32, #tpu.memory_space<vmem>>, vector<256x128xf32>
    %8 = arith.addf %6, %7 : vector<256x128xf32>
    %c0_7 = arith.constant 0 : index
    %c0_8 = arith.constant 0 : index
    %9 = vector.load %arg5[%c0_7, %c0_8] : memref<256x128xf32, #tpu.memory_space<vmem>>, vector<256x128xf32>
    tpu.vector_store %arg5[%c0_7, %c0_8], %8 {strides = array<i32>} : memref<256x128xf32, #tpu.memory_space<vmem>>, vector<256x128xf32>,
    return
  }
  func.func @transform_0(%arg0: i32) -> (i32, i32) {
    %c0_i32 = arith.constant 0 : i32
    %c0_i32_0 = arith.constant 0 : i32
    return %arg0, %c0_i32 : i32, i32
  }
  func.func @transform_1(%arg0: i32) -> (i32, i32) {
    %c0_i32 = arith.constant 0 : i32
    %c0_i32_0 = arith.constant 0 : i32
    %c0_i32_1 = arith.constant 0 : i32
    return %c0_i32, %c0_i32_0 : i32, i32
  }
  func.func @transform_2(%arg0: i32) -> (i32, i32) {
    %c0_i32 = arith.constant 0 : i32
    %c0_i32_0 = arith.constant 0 : i32
    %c0_i32_1 = arith.constant 0 : i32
    return %c0_i32, %c0_i32_0 : i32, i32
  }
  func.func @transform_3(%arg0: i32) -> (i32, i32) {
    %c0_i32 = arith.constant 0 : i32
    %c0_i32_0 = arith.constant 0 : i32
    return %arg0, %c0_i32 : i32, i32
  }
  func.func @transform_4(%arg0: i32) -> (i32, i32) {
    %c0_i32 = arith.constant 0 : i32
    %c0_i32_0 = arith.constant 0 : i32
    return %arg0, %c0_i32 : i32, i32
  }
}

module attributes {stable_mosaic.version = 11 : i64} {
  func.func @_dw_s1_kernel(%arg0: i32, %arg1: i32, %arg2: memref<1x16x16x128xf32, #tpu.memory_space<vmem>>, %arg3: memref<1x128xf32, #tpu.memory_space<vmem>>, %arg4: memref<1x128xf32, #tpu.memory_space<vmem>>, %arg5: memref<9x1x128xf32, #tpu.memory_space<vmem>>, %arg6: memref<1x16x16x128xf32, #tpu.memory_space<vmem>>, %arg7: memref<1x2x128xf32, #tpu.memory_space<vmem>>, %arg8: memref<18x18x128xf32, #tpu.memory_space<vmem>>) attributes {dimension_semantics = [#tpu.dimension_semantics<parallel>, #tpu.dimension_semantics<parallel>], iteration_bounds = array<i64: 2, 1>, scalar_prefetch = 0 : i64, scratch_operands = 1 : i64, tpu.core_type = #tpu.core_type<tc>, window_params = [{transform_indices = @transform_0, window_bounds = array<i64: 1, 16, 16, 128>}, {transform_indices = @transform_1, window_bounds = array<i64: 1, 128>}, {transform_indices = @transform_2, window_bounds = array<i64: 1, 128>}, {transform_indices = @transform_3, window_bounds = array<i64: 9, 1, 128>}, {transform_indices = @transform_4, window_bounds = array<i64: 1, 16, 16, 128>}, {transform_indices = @transform_5, window_bounds = array<i64: 1, 2, 128>}]} {
    %c0 = arith.constant 0 : index
    %c0_0 = arith.constant 0 : index
    %c0_1 = arith.constant 0 : index
    %c0_2 = arith.constant 0 : index
    %0 = vector.load %arg2[%c0, %c0_0, %c0_1, %c0_2] : memref<1x16x16x128xf32, #tpu.memory_space<vmem>>, vector<1x16x16x128xf32>
    %1 = vector.shape_cast %0 : vector<1x16x16x128xf32> to vector<16x16x128xf32>
    %c0_3 = arith.constant 0 : index
    %c0_4 = arith.constant 0 : index
    %2 = vector.load %arg3[%c0_3, %c0_4] : memref<1x128xf32, #tpu.memory_space<vmem>>, vector<1x128xf32>
    %3 = vector.shape_cast %2 : vector<1x128xf32> to vector<1x1x128xf32>
    %4 = vector.broadcast %3 : vector<1x1x128xf32> to vector<16x16x128xf32>
    %5 = arith.mulf %1, %4 : vector<16x16x128xf32>
    %c0_5 = arith.constant 0 : index
    %c0_6 = arith.constant 0 : index
    %6 = vector.load %arg4[%c0_5, %c0_6] : memref<1x128xf32, #tpu.memory_space<vmem>>, vector<1x128xf32>
    %7 = vector.shape_cast %6 : vector<1x128xf32> to vector<1x1x128xf32>
    %8 = vector.broadcast %7 : vector<1x1x128xf32> to vector<16x16x128xf32>
    %9 = arith.addf %5, %8 : vector<16x16x128xf32>
    %cst = arith.constant 0.000000e+00 : f32
    %10 = vector.broadcast %cst : f32 to vector<16x16x128xf32>
    %11 = arith.maximumf %9, %10 : vector<16x16x128xf32>
    %cst_7 = arith.constant 0.000000e+00 : f32
    %12 = vector.broadcast %cst_7 : f32 to vector<18x18x128xf32>
    %c0_8 = arith.constant 0 : index
    %c0_9 = arith.constant 0 : index
    %c0_10 = arith.constant 0 : index
    %13 = vector.load %arg8[%c0_8, %c0_9, %c0_10] : memref<18x18x128xf32, #tpu.memory_space<vmem>>, vector<18x18x128xf32>
    tpu.vector_store %arg8[%c0_8, %c0_9, %c0_10], %12 {strides = array<i32>} : memref<18x18x128xf32, #tpu.memory_space<vmem>>, vector<18x18x128xf32>,
    %c1 = arith.constant 1 : index
    %c1_11 = arith.constant 1 : index
    %c0_12 = arith.constant 0 : index
    %14 = vector.load %arg8[%c1, %c1_11, %c0_12] : memref<18x18x128xf32, #tpu.memory_space<vmem>>, vector<16x16x128xf32>
    tpu.vector_store %arg8[%c1, %c1_11, %c0_12], %11 {strides = array<i32>} : memref<18x18x128xf32, #tpu.memory_space<vmem>>, vector<16x16x128xf32>,
    %cst_13 = arith.constant 0.000000e+00 : f32
    %15 = vector.broadcast %cst_13 : f32 to vector<16x16x128xf32>
    %c0_14 = arith.constant 0 : index
    %c0_15 = arith.constant 0 : index
    %c0_16 = arith.constant 0 : index
    %16 = vector.load %arg8[%c0_14, %c0_15, %c0_16] : memref<18x18x128xf32, #tpu.memory_space<vmem>>, vector<16x16x128xf32>
    %c0_17 = arith.constant 0 : index
    %c0_18 = arith.constant 0 : index
    %c0_19 = arith.constant 0 : index
    %17 = vector.load %arg5[%c0_17, %c0_18, %c0_19] : memref<9x1x128xf32, #tpu.memory_space<vmem>>, vector<1x1x128xf32>
    %18 = vector.shape_cast %17 : vector<1x1x128xf32> to vector<1x128xf32>
    %19 = vector.shape_cast %18 : vector<1x128xf32> to vector<1x1x128xf32>
    %20 = vector.broadcast %19 : vector<1x1x128xf32> to vector<16x16x128xf32>
    %21 = arith.mulf %16, %20 : vector<16x16x128xf32>
    %22 = arith.addf %15, %21 : vector<16x16x128xf32>
    %c0_20 = arith.constant 0 : index
    %c1_21 = arith.constant 1 : index
    %c0_22 = arith.constant 0 : index
    %23 = vector.load %arg8[%c0_20, %c1_21, %c0_22] : memref<18x18x128xf32, #tpu.memory_space<vmem>>, vector<16x16x128xf32>
    %c1_23 = arith.constant 1 : index
    %c0_24 = arith.constant 0 : index
    %c0_25 = arith.constant 0 : index
    %24 = vector.load %arg5[%c1_23, %c0_24, %c0_25] : memref<9x1x128xf32, #tpu.memory_space<vmem>>, vector<1x1x128xf32>
    %25 = vector.shape_cast %24 : vector<1x1x128xf32> to vector<1x128xf32>
    %26 = vector.shape_cast %25 : vector<1x128xf32> to vector<1x1x128xf32>
    %27 = vector.broadcast %26 : vector<1x1x128xf32> to vector<16x16x128xf32>
    %28 = arith.mulf %23, %27 : vector<16x16x128xf32>
    %29 = arith.addf %22, %28 : vector<16x16x128xf32>
    %c0_26 = arith.constant 0 : index
    %c2 = arith.constant 2 : index
    %c0_27 = arith.constant 0 : index
    %30 = vector.load %arg8[%c0_26, %c2, %c0_27] : memref<18x18x128xf32, #tpu.memory_space<vmem>>, vector<16x16x128xf32>
    %c2_28 = arith.constant 2 : index
    %c0_29 = arith.constant 0 : index
    %c0_30 = arith.constant 0 : index
    %31 = vector.load %arg5[%c2_28, %c0_29, %c0_30] : memref<9x1x128xf32, #tpu.memory_space<vmem>>, vector<1x1x128xf32>
    %32 = vector.shape_cast %31 : vector<1x1x128xf32> to vector<1x128xf32>
    %33 = vector.shape_cast %32 : vector<1x128xf32> to vector<1x1x128xf32>
    %34 = vector.broadcast %33 : vector<1x1x128xf32> to vector<16x16x128xf32>
    %35 = arith.mulf %30, %34 : vector<16x16x128xf32>
    %36 = arith.addf %29, %35 : vector<16x16x128xf32>
    %c1_31 = arith.constant 1 : index
    %c0_32 = arith.constant 0 : index
    %c0_33 = arith.constant 0 : index
    %37 = vector.load %arg8[%c1_31, %c0_32, %c0_33] : memref<18x18x128xf32, #tpu.memory_space<vmem>>, vector<16x16x128xf32>
    %c3 = arith.constant 3 : index
    %c0_34 = arith.constant 0 : index
    %c0_35 = arith.constant 0 : index
    %38 = vector.load %arg5[%c3, %c0_34, %c0_35] : memref<9x1x128xf32, #tpu.memory_space<vmem>>, vector<1x1x128xf32>
    %39 = vector.shape_cast %38 : vector<1x1x128xf32> to vector<1x128xf32>
    %40 = vector.shape_cast %39 : vector<1x128xf32> to vector<1x1x128xf32>
    %41 = vector.broadcast %40 : vector<1x1x128xf32> to vector<16x16x128xf32>
    %42 = arith.mulf %37, %41 : vector<16x16x128xf32>
    %43 = arith.addf %36, %42 : vector<16x16x128xf32>
    %c1_36 = arith.constant 1 : index
    %c1_37 = arith.constant 1 : index
    %c0_38 = arith.constant 0 : index
    %44 = vector.load %arg8[%c1_36, %c1_37, %c0_38] : memref<18x18x128xf32, #tpu.memory_space<vmem>>, vector<16x16x128xf32>
    %c4 = arith.constant 4 : index
    %c0_39 = arith.constant 0 : index
    %c0_40 = arith.constant 0 : index
    %45 = vector.load %arg5[%c4, %c0_39, %c0_40] : memref<9x1x128xf32, #tpu.memory_space<vmem>>, vector<1x1x128xf32>
    %46 = vector.shape_cast %45 : vector<1x1x128xf32> to vector<1x128xf32>
    %47 = vector.shape_cast %46 : vector<1x128xf32> to vector<1x1x128xf32>
    %48 = vector.broadcast %47 : vector<1x1x128xf32> to vector<16x16x128xf32>
    %49 = arith.mulf %44, %48 : vector<16x16x128xf32>
    %50 = arith.addf %43, %49 : vector<16x16x128xf32>
    %c1_41 = arith.constant 1 : index
    %c2_42 = arith.constant 2 : index
    %c0_43 = arith.constant 0 : index
    %51 = vector.load %arg8[%c1_41, %c2_42, %c0_43] : memref<18x18x128xf32, #tpu.memory_space<vmem>>, vector<16x16x128xf32>
    %c5 = arith.constant 5 : index
    %c0_44 = arith.constant 0 : index
    %c0_45 = arith.constant 0 : index
    %52 = vector.load %arg5[%c5, %c0_44, %c0_45] : memref<9x1x128xf32, #tpu.memory_space<vmem>>, vector<1x1x128xf32>
    %53 = vector.shape_cast %52 : vector<1x1x128xf32> to vector<1x128xf32>
    %54 = vector.shape_cast %53 : vector<1x128xf32> to vector<1x1x128xf32>
    %55 = vector.broadcast %54 : vector<1x1x128xf32> to vector<16x16x128xf32>
    %56 = arith.mulf %51, %55 : vector<16x16x128xf32>
    %57 = arith.addf %50, %56 : vector<16x16x128xf32>
    %c2_46 = arith.constant 2 : index
    %c0_47 = arith.constant 0 : index
    %c0_48 = arith.constant 0 : index
    %58 = vector.load %arg8[%c2_46, %c0_47, %c0_48] : memref<18x18x128xf32, #tpu.memory_space<vmem>>, vector<16x16x128xf32>
    %c6 = arith.constant 6 : index
    %c0_49 = arith.constant 0 : index
    %c0_50 = arith.constant 0 : index
    %59 = vector.load %arg5[%c6, %c0_49, %c0_50] : memref<9x1x128xf32, #tpu.memory_space<vmem>>, vector<1x1x128xf32>
    %60 = vector.shape_cast %59 : vector<1x1x128xf32> to vector<1x128xf32>
    %61 = vector.shape_cast %60 : vector<1x128xf32> to vector<1x1x128xf32>
    %62 = vector.broadcast %61 : vector<1x1x128xf32> to vector<16x16x128xf32>
    %63 = arith.mulf %58, %62 : vector<16x16x128xf32>
    %64 = arith.addf %57, %63 : vector<16x16x128xf32>
    %c2_51 = arith.constant 2 : index
    %c1_52 = arith.constant 1 : index
    %c0_53 = arith.constant 0 : index
    %65 = vector.load %arg8[%c2_51, %c1_52, %c0_53] : memref<18x18x128xf32, #tpu.memory_space<vmem>>, vector<16x16x128xf32>
    %c7 = arith.constant 7 : index
    %c0_54 = arith.constant 0 : index
    %c0_55 = arith.constant 0 : index
    %66 = vector.load %arg5[%c7, %c0_54, %c0_55] : memref<9x1x128xf32, #tpu.memory_space<vmem>>, vector<1x1x128xf32>
    %67 = vector.shape_cast %66 : vector<1x1x128xf32> to vector<1x128xf32>
    %68 = vector.shape_cast %67 : vector<1x128xf32> to vector<1x1x128xf32>
    %69 = vector.broadcast %68 : vector<1x1x128xf32> to vector<16x16x128xf32>
    %70 = arith.mulf %65, %69 : vector<16x16x128xf32>
    %71 = arith.addf %64, %70 : vector<16x16x128xf32>
    %c2_56 = arith.constant 2 : index
    %c2_57 = arith.constant 2 : index
    %c0_58 = arith.constant 0 : index
    %72 = vector.load %arg8[%c2_56, %c2_57, %c0_58] : memref<18x18x128xf32, #tpu.memory_space<vmem>>, vector<16x16x128xf32>
    %c8 = arith.constant 8 : index
    %c0_59 = arith.constant 0 : index
    %c0_60 = arith.constant 0 : index
    %73 = vector.load %arg5[%c8, %c0_59, %c0_60] : memref<9x1x128xf32, #tpu.memory_space<vmem>>, vector<1x1x128xf32>
    %74 = vector.shape_cast %73 : vector<1x1x128xf32> to vector<1x128xf32>
    %75 = vector.shape_cast %74 : vector<1x128xf32> to vector<1x1x128xf32>
    %76 = vector.broadcast %75 : vector<1x1x128xf32> to vector<16x16x128xf32>
    %77 = arith.mulf %72, %76 : vector<16x16x128xf32>
    %78 = arith.addf %71, %77 : vector<16x16x128xf32>
    %c0_61 = arith.constant 0 : index
    %c0_62 = arith.constant 0 : index
    %c0_63 = arith.constant 0 : index
    %c0_64 = arith.constant 0 : index
    %79 = vector.load %arg6[%c0_61, %c0_62, %c0_63, %c0_64] : memref<1x16x16x128xf32, #tpu.memory_space<vmem>>, vector<1x16x16x128xf32>
    %80 = vector.shape_cast %79 : vector<1x16x16x128xf32> to vector<16x16x128xf32>
    %81 = vector.shape_cast %78 : vector<16x16x128xf32> to vector<1x16x16x128xf32>
    tpu.vector_store %arg6[%c0_61, %c0_62, %c0_63, %c0_64], %81 {strides = array<i32>} : memref<1x16x16x128xf32, #tpu.memory_space<vmem>>, vector<1x16x16x128xf32>,
    %cst_65 = arith.constant dense<0.000000e+00> : vector<16x128xf32>
    %82 = vector.multi_reduction <add>, %78, %cst_65 [0] : vector<16x16x128xf32> to vector<16x128xf32>
    %cst_66 = arith.constant dense<0.000000e+00> : vector<128xf32>
    %83 = vector.multi_reduction <add>, %82, %cst_66 [0] : vector<16x128xf32> to vector<128xf32>
    %84 = vector.shape_cast %83 : vector<128xf32> to vector<1x128xf32>
    %85 = arith.mulf %78, %78 : vector<16x16x128xf32>
    %cst_67 = arith.constant dense<0.000000e+00> : vector<16x128xf32>
    %86 = vector.multi_reduction <add>, %85, %cst_67 [0] : vector<16x16x128xf32> to vector<16x128xf32>
    %cst_68 = arith.constant dense<0.000000e+00> : vector<128xf32>
    %87 = vector.multi_reduction <add>, %86, %cst_68 [0] : vector<16x128xf32> to vector<128xf32>
    %88 = vector.shape_cast %87 : vector<128xf32> to vector<1x128xf32>
    %89 = tpu.concatenate %84, %88 in 0 : vector<1x128xf32>, vector<1x128xf32> -> vector<2x128xf32>
    %90 = vector.shape_cast %89 : vector<2x128xf32> to vector<1x2x128xf32>
    %c0_69 = arith.constant 0 : index
    %c0_70 = arith.constant 0 : index
    %c0_71 = arith.constant 0 : index
    %91 = vector.load %arg7[%c0_69, %c0_70, %c0_71] : memref<1x2x128xf32, #tpu.memory_space<vmem>>, vector<1x2x128xf32>
    tpu.vector_store %arg7[%c0_69, %c0_70, %c0_71], %90 {strides = array<i32>} : memref<1x2x128xf32, #tpu.memory_space<vmem>>, vector<1x2x128xf32>,
    return
  }
  func.func @transform_0(%arg0: i32, %arg1: i32) -> (i32, i32, i32, i32) {
    %c0_i32 = arith.constant 0 : i32
    %c0_i32_0 = arith.constant 0 : i32
    %c0_i32_1 = arith.constant 0 : i32
    return %arg0, %c0_i32, %c0_i32_0, %arg1 : i32, i32, i32, i32
  }
  func.func @transform_1(%arg0: i32, %arg1: i32) -> (i32, i32) {
    %c0_i32 = arith.constant 0 : i32
    %c0_i32_0 = arith.constant 0 : i32
    return %c0_i32, %arg1 : i32, i32
  }
  func.func @transform_2(%arg0: i32, %arg1: i32) -> (i32, i32) {
    %c0_i32 = arith.constant 0 : i32
    %c0_i32_0 = arith.constant 0 : i32
    return %c0_i32, %arg1 : i32, i32
  }
  func.func @transform_3(%arg0: i32, %arg1: i32) -> (i32, i32, i32) {
    %c0_i32 = arith.constant 0 : i32
    %c0_i32_0 = arith.constant 0 : i32
    %c0_i32_1 = arith.constant 0 : i32
    return %c0_i32, %c0_i32_0, %arg1 : i32, i32, i32
  }
  func.func @transform_4(%arg0: i32, %arg1: i32) -> (i32, i32, i32, i32) {
    %c0_i32 = arith.constant 0 : i32
    %c0_i32_0 = arith.constant 0 : i32
    %c0_i32_1 = arith.constant 0 : i32
    return %arg0, %c0_i32, %c0_i32_0, %arg1 : i32, i32, i32, i32
  }
  func.func @transform_5(%arg0: i32, %arg1: i32) -> (i32, i32, i32) {
    %c0_i32 = arith.constant 0 : i32
    %c0_i32_0 = arith.constant 0 : i32
    return %arg0, %c0_i32, %arg1 : i32, i32, i32
  }
}

</mosaic_0001>

<llo_original>
// kernel: inverted_residual.4
$region0: #{inverted_residual.4}
  #allocation0 [shape = 'u32[]', space=smem, size = 0x4, offset = 0x4, fixed_abs, tag = 'smem constant byte address 0x4 - core index']
  #allocation1 [shape = 'u32[144,128]{1,0:T(1,128)}', space=vmem, size = 0x12000, scoped, tag = 'internal scratch']
  %s0 = inlined_call_operand.vmem [shape: f32[512,128], index: 0, kind: input, shape index: {}]
  %s1 = inlined_call_operand.vmem [shape: f32[128,128], index: 1, kind: input, shape index: {}]
  %s2 = inlined_call_operand.vmem [shape: f32[512,128], index: 2, kind: output, shape index: {0}]
  %s3 = inlined_call_operand.vmem [shape: f32[2,2,128], index: 3, kind: output, shape index: {1}]
  %4 = xla_tuple %s2, %s3
  %s5 = sld [smem:[#allocation0]]
  $region49: #{inverted_residual.4} parent=0
    _
  %s7 = ssub.s32 1, %s5
  %s8 = scalar_select 0, %s7, %s5
  loop: start=0, step=1, limit=4
  $region2: #{inverted_residual.4} parent=0 // loop_pre_header
    _
  $region3: #{inverted_residual.4} parent=0 // loop_header
    %s10 = sphi 0, %s14
    %p11 = scmp.ge.s32.totalorder %s10, 4
    %s20 = sphi 0, %s22
    %s23 = sphi 0, %s20
    %s24 = sphi 0, %s23
    %s40 = sphi 0, %s24
    %s44 = sphi 0, %s44
    %s46 = sphi 0, %s44
    %s47 = sphi 0, %s46
    %s61 = sphi 0, %s47
    %s67 = sphi 0, %s69
    %s70 = sphi 0, %s67
    %s71 = sphi 0, %s70
    %s87 = sphi 0, %s71
    %s93 = sphi 0, %s95
    %s96 = sphi 0, %s93
    %s97 = sphi 0, %s96
    %s113 = sphi 0, %s97
  $region4: #{inverted_residual.4} parent=0 // loop_header_branch
    %13 = sbr.rel (%p11) target = $region8
  $region5: #{inverted_residual.4} parent=0 // loop_body
    %s15 = ssub.s32 %s10, 1
    %s16 = ssub.s32 %s10, 2
    %s17 = sadd.s32 %s10, 1
    %s18 = ssub.s32 %s10, %s17
    %p19 = scmp.eq.s32.totalorder %s18, 0
    %s21 = sadd.s32 %s20, 1
    %s22 = scalar_select %p19, %s20, %s21
    %p25 = pneg %p19
    %p26 = scmp.eq.s32.totalorder %s10, 1
    %p27 = por %p25, %p26
    %p28 = scmp.ne.s32.totalorder %s20, %s23
    %p29 = scmp.eq.s32.totalorder %s10, 0
    %p30 = por %p28, %p29
    %p31 = scmp.ne.s32.totalorder %s20, %s23
    %p32 = scmp.eq.s32.totalorder %s15, 1
    %p33 = por %p31, %p32
    %p34 = scmp.ne.s32.totalorder %s23, %s24
    %p35 = scmp.eq.s32.totalorder %s15, 0
    %p36 = por %p34, %p35
    %p37 = scmp.ne.s32.totalorder %s23, %s24
    %p38 = scmp.eq.s32.totalorder %s16, 1
    %p39 = por %p37, %p38
    %p41 = scmp.ne.s32.totalorder %s24, %s40
    %p42 = scmp.eq.s32.totalorder %s16, 0
    %p43 = por %p41, %p42
    %s45 = sadd.s32 %s44, 1
    %p48 = scmp.eq.s32.totalorder %s10, 1
    %p49 = scmp.ne.s32.totalorder %s44, %s46
    %p50 = scmp.eq.s32.totalorder %s10, 0
    %p51 = por %p49, %p50
    %p52 = scmp.ne.s32.totalorder %s44, %s46
    %p53 = scmp.eq.s32.totalorder %s15, 1
    %p54 = por %p52, %p53
    %p55 = scmp.ne.s32.totalorder %s46, %s47
    %p56 = scmp.eq.s32.totalorder %s15, 0
    %p57 = por %p55, %p56
    %p58 = scmp.ne.s32.totalorder %s46, %s47
    %p59 = scmp.eq.s32.totalorder %s16, 1
    %p60 = por %p58, %p59
    %p62 = scmp.ne.s32.totalorder %s47, %s61
    %p63 = scmp.eq.s32.totalorder %s16, 0
    %p64 = por %p62, %p63
    %s65 = ssub.s32 %s10, %s17
    %p66 = scmp.eq.s32.totalorder %s65, 0
    %s68 = sadd.s32 %s67, 1
    %s69 = scalar_select %p66, %s67, %s68
    %p72 = pneg %p66
    %p73 = scmp.eq.s32.totalorder %s10, 1
    %p74 = por %p72, %p73
    %p75 = scmp.ne.s32.totalorder %s67, %s70
    %p76 = scmp.eq.s32.totalorder %s10, 0
    %p77 = por %p75, %p76
    %p78 = scmp.ne.s32.totalorder %s67, %s70
    %p79 = scmp.eq.s32.totalorder %s15, 1
    %p80 = por %p78, %p79
    %p81 = scmp.ne.s32.totalorder %s70, %s71
    %p82 = scmp.eq.s32.totalorder %s15, 0
    %p83 = por %p81, %p82
    %p84 = scmp.ne.s32.totalorder %s70, %s71
    %p85 = scmp.eq.s32.totalorder %s16, 1
    %p86 = por %p84, %p85
    %p88 = scmp.ne.s32.totalorder %s71, %s87
    %p89 = scmp.eq.s32.totalorder %s16, 0
    %p90 = por %p88, %p89
    %s91 = ssub.s32 %s10, %s17
    %p92 = scmp.eq.s32.totalorder %s91, 0
    %s94 = sadd.s32 %s93, 1
    %s95 = scalar_select %p92, %s93, %s94
    %p98 = pneg %p92
    %p99 = scmp.eq.s32.totalorder %s10, 1
    %p100 = por %p98, %p99
    %p101 = scmp.ne.s32.totalorder %s93, %s96
    %p102 = scmp.eq.s32.totalorder %s10, 0
    %p103 = por %p101, %p102
    %p104 = scmp.ne.s32.totalorder %s93, %s96
    %p105 = scmp.eq.s32.totalorder %s15, 1
    %p106 = por %p104, %p105
    %p107 = scmp.ne.s32.totalorder %s96, %s97
    %p108 = scmp.eq.s32.totalorder %s15, 0
    %p109 = por %p107, %p108
    %p110 = scmp.ne.s32.totalorder %s96, %s97
    %p111 = scmp.eq.s32.totalorder %s16, 1
    %p112 = por %p110, %p111
    %p114 = scmp.ne.s32.totalorder %s97, %s113
    %p115 = scmp.eq.s32.totalorder %s16, 0
    %p116 = por %p114, %p115
    %p117 = scmp.le.s32.totalorder 1, %s10
    %p118 = scmp.lt.s32.totalorder %s10, 3
    %p119 = pnand %p117, %p118
    %p120 = pneg %p119
    // Predicated region
    $region9: #{inverted_residual.4} parent=5 // pred_check
      _
    $region10: #{inverted_residual.4} parent=5 // pred_check_branch
      %122 = sbr.rel (%p119) target = $region12
    $region11: #{inverted_residual.4} parent=5 // pred_region
      %s123 = ssub.s32 %s10, 1
      // Predicated region
      $region13: #{inverted_residual.4} parent=11 // pred_check
        %p124 = pneg %p57
      $region14: #{inverted_residual.4} parent=11 // pred_check_branch
        %126 = sbr.rel (%p124) target = $region16
      $region15: #{inverted_residual.4} parent=11 // pred_region
        _
      $region16: #{inverted_residual.4} parent=11 // pred_fallthru
        _
    $region12: #{inverted_residual.4} parent=5 // pred_fallthru
      _
    %p127 = scmp.lt.s32.totalorder %s10, 2
    // Predicated region
    $region17: #{inverted_residual.4} parent=5 // pred_check
      %p128 = pneg %p127
    $region18: #{inverted_residual.4} parent=5 // pred_check_branch
      %130 = sbr.rel (%p128) target = $region20
    $region19: #{inverted_residual.4} parent=5 // pred_region
      // Predicated region
      $region21: #{inverted_residual.4} parent=19 // pred_check
        %p131 = pneg %p30
      $region22: #{inverted_residual.4} parent=19 // pred_check_branch
        %133 = sbr.rel (%p131) target = $region24
      $region23: #{inverted_residual.4} parent=19 // pred_region
        %s134 = smul.u32 32, %s10
        %p135 = scmp.lt.s32.totalorder %s134, 63
        %s136 = scalar_select %p135, %s134, 63
        %s137 = smul.addr %s136, 8
        %s138 = scalar_lea.vmem %s0, %s137
        %s139 = smul.u32 32, %s10
      $region24: #{inverted_residual.4} parent=19 // pred_fallthru
        _
    $region20: #{inverted_residual.4} parent=5 // pred_fallthru
      _
    %p140 = scmp.le.s32.totalorder 1, %s10
    %p141 = scmp.lt.s32.totalorder %s10, 3
    %p142 = pnand %p140, %p141
    %p143 = pneg %p142
    // Predicated region
    $region25: #{inverted_residual.4} parent=5 // pred_check
      _
    $region26: #{inverted_residual.4} parent=5 // pred_check_branch
      %145 = sbr.rel (%p142) target = $region28
    $region27: #{inverted_residual.4} parent=5 // pred_region
      %s146 = ssub.s32 %s10, 1
      %s147 = smul.u32 32, %s15
      %p148 = scmp.lt.s32.totalorder %s147, 63
      %s149 = scalar_select %p148, %s147, 63
      %s150 = smul.addr %s149, 8
      %s151 = scalar_lea.vmem %s0, %s150
      %p152 = pneg %p36
      %p153 = pneg %p33
      %p154 = pneg %p57
      %p155 = pneg %p54
      %p156 = pneg %p83
      %p157 = pneg %p80
      %s158 = smul.u32 32, %s15
      %p159 = scmp.lt.s32.totalorder %s158, 63
      %s160 = scalar_select %p159, %s158, 63
      %s161 = smul.addr %s160, 8
      %s162 = scalar_lea.vmem %s2, %s161
      %p163 = pneg %p109
      %p164 = pneg %p106
      %p165 = scmp.lt.s32.totalorder %s15, 1
      %s166 = scalar_select %p165, %s15, 1
      %s167 = smul.addr %s166, 2
      %s168 = scalar_lea.vmem %s3, %s167
      %s169 = smul.u32 32, %s15
      %p170 = scmp.lt.s32.totalorder %s169, 63
      %s171 = scalar_select %p170, %s169, 63
      %s172 = smul.addr %s171, 8
      %s173 = scalar_lea.vmem %s0, %s172
      %s174 = smul.u32 32, %s15
      %s175 = smul.u32 32, %s15
      %p176 = scmp.lt.s32.totalorder %s175, 63
      %s177 = scalar_select %p176, %s175, 63
      %s178 = smul.addr %s177, 8
      %s179 = scalar_lea.vmem %s2, %s178
      %s180 = smul.u32 32, %s15
      %p181 = scmp.lt.s32.totalorder %s15, 1
      %s182 = scalar_select %p181, %s15, 1
      %s183 = smul.addr %s182, 2
      %s184 = scalar_lea.vmem %s3, %s183
      %v185 = vld [vmem:[%s173] sm:$0xff]
      %v186 = vld [vmem:[%s173 + $0x8] sm:$0xff]
      %v187 = vld [vmem:[%s173 + $0x10] sm:$0xff]
      %v188 = vld [vmem:[%s173 + $0x18] sm:$0xff]
      %v189 = vld [vmem:[%s173 + $0x20] sm:$0xff]
      %v190 = vld [vmem:[%s173 + $0x28] sm:$0xff]
      %v191 = vld [vmem:[%s173 + $0x30] sm:$0xff]
      %v192 = vld [vmem:[%s173 + $0x38] sm:$0xff]
      %v193 = vld [vmem:[%s173 + $0x40] sm:$0xff]
      %v194 = vld [vmem:[%s173 + $0x48] sm:$0xff]
      %v195 = vld [vmem:[%s173 + $0x50] sm:$0xff]
      %v196 = vld [vmem:[%s173 + $0x58] sm:$0xff]
      %v197 = vld [vmem:[%s173 + $0x60] sm:$0xff]
      %v198 = vld [vmem:[%s173 + $0x68] sm:$0xff]
      %v199 = vld [vmem:[%s173 + $0x70] sm:$0xff]
      %v200 = vld [vmem:[%s173 + $0x78] sm:$0xff]
      %v201 = vld [vmem:[%s173 + $0x80] sm:$0xff]
      %v202 = vld [vmem:[%s173 + $0x88] sm:$0xff]
      %v203 = vld [vmem:[%s173 + $0x90] sm:$0xff]
      %v204 = vld [vmem:[%s173 + $0x98] sm:$0xff]
      %v205 = vld [vmem:[%s173 + $0xa0] sm:$0xff]
      %v206 = vld [vmem:[%s173 + $0xa8] sm:$0xff]
      %v207 = vld [vmem:[%s173 + $0xb0] sm:$0xff]
      %v208 = vld [vmem:[%s173 + $0xb8] sm:$0xff]
      %v209 = vld [vmem:[%s173 + $0xc0] sm:$0xff]
      %v210 = vld [vmem:[%s173 + $0xc8] sm:$0xff]
      %v211 = vld [vmem:[%s173 + $0xd0] sm:$0xff]
      %v212 = vld [vmem:[%s173 + $0xd8] sm:$0xff]
      %v213 = vld [vmem:[%s173 + $0xe0] sm:$0xff]
      %v214 = vld [vmem:[%s173 + $0xe8] sm:$0xff]
      %v215 = vld [vmem:[%s173 + $0xf0] sm:$0xff]
      %v216 = vld [vmem:[%s173 + $0xf8] sm:$0xff]
      %v217 = vld [vmem:[%s1] sm:$0xff]
      %v218 = vld [vmem:[%s1 + $0x8] sm:$0xff]
      %v219 = vld [vmem:[%s1 + $0x10] sm:$0xff]
      %v220 = vld [vmem:[%s1 + $0x18] sm:$0xff]
      %v221 = vld [vmem:[%s1 + $0x20] sm:$0xff]
      %v222 = vld [vmem:[%s1 + $0x28] sm:$0xff]
      %v223 = vld [vmem:[%s1 + $0x30] sm:$0xff]
      %v224 = vld [vmem:[%s1 + $0x38] sm:$0xff]
      %v225 = vld [vmem:[%s1 + $0x40] sm:$0xff]
      %v226 = vld [vmem:[%s1 + $0x48] sm:$0xff]
      %v227 = vld [vmem:[%s1 + $0x50] sm:$0xff]
      %v228 = vld [vmem:[%s1 + $0x58] sm:$0xff]
      %v229 = vld [vmem:[%s1 + $0x60] sm:$0xff]
      %v230 = vld [vmem:[%s1 + $0x68] sm:$0xff]
      %v231 = vld [vmem:[%s1 + $0x70] sm:$0xff]
      %v232 = vld [vmem:[%s1 + $0x78] sm:$0xff]
      %233 = vmatprep.subr.mxu0 0.0
      %234 = vmatpush1.msra.mxu0 %v217
      %235 = vmatprep.subr.mxu0 0.0
      %236 = vmatpush1.msra.mxu0 %v218
      %237 = vmatprep.subr.mxu0 0.0
      %238 = vmatpush1.msra.mxu0 %v219
      %239 = vmatprep.subr.mxu0 0.0
      %240 = vmatpush1.msra.mxu0 %v220
      %241 = vmatprep.subr.mxu0 0.0
      %242 = vmatpush1.msra.mxu0 %v221
      %243 = vmatprep.subr.mxu0 0.0
      %244 = vmatpush1.msra.mxu0 %v222
      %245 = vmatprep.subr.mxu0 0.0
      %246 = vmatpush1.msra.mxu0 %v223
      %247 = vmatprep.subr.mxu0 0.0
      %248 = vmatpush1.msra.mxu0 %v224
      %249 = vmatprep.subr.mxu0 0.0
      %250 = vmatpush1.msra.mxu0 %v225
      %251 = vmatprep.subr.mxu0 0.0
      %252 = vmatpush1.msra.mxu0 %v226
      %253 = vmatprep.subr.mxu0 0.0
      %254 = vmatpush1.msra.mxu0 %v227
      %255 = vmatprep.subr.mxu0 0.0
      %256 = vmatpush1.msra.mxu0 %v228
      %257 = vmatprep.subr.mxu0 0.0
      %258 = vmatpush1.msra.mxu0 %v229
      %259 = vmatprep.subr.mxu0 0.0
      %260 = vmatpush1.msra.mxu0 %v230
      %261 = vmatprep.subr.mxu0 0.0
      %262 = vmatpush1.msra.mxu0 %v231
      %263 = vmatprep.subr.mxu0 0.0
      %264 = vmatpush1.msra.mxu0 %v232
      %265 = vmatprep.subr.mxu0 0.0
      %266 = vmatpush1.msra.mxu0 0.0
      %267 = vmatprep.subr.mxu0 0.0
      %268 = vmatpush1.msra.mxu0 0.0
      %269 = vmatprep.subr.mxu0 0.0
      %270 = vmatpush1.msra.mxu0 0.0
      %271 = vmatprep.subr.mxu0 0.0
      %272 = vmatpush1.msra.mxu0 0.0
      %273 = vmatprep.subr.mxu0 0.0
      %274 = vmatpush1.msra.mxu0 0.0
      %275 = vmatprep.subr.mxu0 0.0
      %276 = vmatpush1.msra.mxu0 0.0
      %277 = vmatprep.subr.mxu0 0.0
      %278 = vmatpush1.msra.mxu0 0.0
      %279 = vmatprep.subr.mxu0 0.0
      %280 = vmatpush1.msra.mxu0 0.0
      %281 = vmatprep.subr.mxu0 0.0
      %282 = vmatpush1.msra.mxu0 0.0
      %283 = vmatprep.subr.mxu0 0.0
      %284 = vmatpush1.msra.mxu0 0.0
      %285 = vmatprep.subr.mxu0 0.0
      %286 = vmatpush1.msra.mxu0 0.0
      %287 = vmatprep.subr.mxu0 0.0
      %288 = vmatpush1.msra.mxu0 0.0
      %289 = vmatprep.subr.mxu0 0.0
      %290 = vmatpush1.msra.mxu0 0.0
      %291 = vmatprep.subr.mxu0 0.0
      %292 = vmatpush1.msra.mxu0 0.0
      %293 = vmatprep.subr.mxu0 0.0
      %294 = vmatpush1.msra.mxu0 0.0
      %295 = vmatprep.subr.mxu0 0.0
      %296 = vmatpush1.msra.mxu0 0.0
      %297 = vmatprep.mubr.f32.mxu0 0.0
      %298 = vmatmul.mubr.f32.gmra.mrb[0].mxu0 %v185
      %v299 = vpop.f32.mrb[0].mxu0
      %v300 = vadd.f32 0.0, %v299
      %v301 = vpop.f32.mrb[0].mxu0
      %302 = vmatprep.mubr.f32.mxu0 0.0
      %303 = vmatmul.mubr.f32.gmra.mrb[0].mxu0 %v186
      %v304 = vpop.f32.mrb[0].mxu0
      %v305 = vadd.f32 0.0, %v304
      %v306 = vpop.f32.mrb[0].mxu0
      %307 = vmatprep.mubr.f32.mxu0 0.0
      %308 = vmatmul.mubr.f32.gmra.mrb[0].mxu0 %v187
      %v309 = vpop.f32.mrb[0].mxu0
      %v310 = vadd.f32 0.0, %v309
      %v311 = vpop.f32.mrb[0].mxu0
      %312 = vmatprep.mubr.f32.mxu0 0.0
      %313 = vmatmul.mubr.f32.gmra.mrb[0].mxu0 %v188
      %v314 = vpop.f32.mrb[0].mxu0
      %v315 = vadd.f32 0.0, %v314
      %v316 = vpop.f32.mrb[0].mxu0
      %317 = vmatprep.mubr.f32.mxu0 0.0
      %318 = vmatmul.mubr.f32.gmra.mrb[0].mxu0 %v189
      %v319 = vpop.f32.mrb[0].mxu0
      %v320 = vadd.f32 0.0, %v319
      %v321 = vpop.f32.mrb[0].mxu0
      %322 = vmatprep.mubr.f32.mxu0 0.0
      %323 = vmatmul.mubr.f32.gmra.mrb[0].mxu0 %v190
      %v324 = vpop.f32.mrb[0].mxu0
      %v325 = vadd.f32 0.0, %v324
      %v326 = vpop.f32.mrb[0].mxu0
      %327 = vmatprep.mubr.f32.mxu0 0.0
      %328 = vmatmul.mubr.f32.gmra.mrb[0].mxu0 %v191
      %v329 = vpop.f32.mrb[0].mxu0
      %v330 = vadd.f32 0.0, %v329
      %v331 = vpop.f32.mrb[0].mxu0
      %332 = vmatprep.mubr.f32.mxu0 0.0
      %333 = vmatmul.mubr.f32.gmra.mrb[0].mxu0 %v192
      %v334 = vpop.f32.mrb[0].mxu0
      %v335 = vadd.f32 0.0, %v334
      %v336 = vpop.f32.mrb[0].mxu0
      %337 = vmatprep.mubr.f32.mxu0 0.0
      %338 = vmatmul.mubr.f32.gmra.mrb[0].mxu0 %v193
      %v339 = vpop.f32.mrb[0].mxu0
      %v340 = vadd.f32 0.0, %v339
      %v341 = vpop.f32.mrb[0].mxu0
      %342 = vmatprep.mubr.f32.mxu0 0.0
      %343 = vmatmul.mubr.f32.gmra.mrb[0].mxu0 %v194
      %v344 = vpop.f32.mrb[0].mxu0
      %v345 = vadd.f32 0.0, %v344
      %v346 = vpop.f32.mrb[0].mxu0
      %347 = vmatprep.mubr.f32.mxu0 0.0
      %348 = vmatmul.mubr.f32.gmra.mrb[0].mxu0 %v195
      %v349 = vpop.f32.mrb[0].mxu0
      %v350 = vadd.f32 0.0, %v349
      %v351 = vpop.f32.mrb[0].mxu0
      %352 = vmatprep.mubr.f32.mxu0 0.0
      %353 = vmatmul.mubr.f32.gmra.mrb[0].mxu0 %v196
      %v354 = vpop.f32.mrb[0].mxu0
      %v355 = vadd.f32 0.0, %v354
      %v356 = vpop.f32.mrb[0].mxu0
      %357 = vmatprep.mubr.f32.mxu0 0.0
      %358 = vmatmul.mubr.f32.gmra.mrb[0].mxu0 %v197
      %v359 = vpop.f32.mrb[0].mxu0
      %v360 = vadd.f32 0.0, %v359
      %v361 = vpop.f32.mrb[0].mxu0
      %362 = vmatprep.mubr.f32.mxu0 0.0
      %363 = vmatmul.mubr.f32.gmra.mrb[0].mxu0 %v198
      %v364 = vpop.f32.mrb[0].mxu0
      %v365 = vadd.f32 0.0, %v364
      %v366 = vpop.f32.mrb[0].mxu0
      %367 = vmatprep.mubr.f32.mxu0 0.0
      %368 = vmatmul.mubr.f32.gmra.mrb[0].mxu0 %v199
      %v369 = vpop.f32.mrb[0].mxu0
      %v370 = vadd.f32 0.0, %v369
      %v371 = vpop.f32.mrb[0].mxu0
      %372 = vmatprep.mubr.f32.mxu0 0.0
      %373 = vmatmul.mubr.f32.gmra.mrb[0].mxu0 %v200
      %v374 = vpop.f32.mrb[0].mxu0
      %v375 = vadd.f32 0.0, %v374
      %v376 = vpop.f32.mrb[0].mxu0
      %377 = vmatprep.mubr.f32.mxu0 0.0
      %378 = vmatmul.mubr.f32.gmra.mrb[0].mxu0 %v201
      %v379 = vpop.f32.mrb[0].mxu0
      %v380 = vadd.f32 0.0, %v379
      %v381 = vpop.f32.mrb[0].mxu0
      %382 = vmatprep.mubr.f32.mxu0 0.0
      %383 = vmatmul.mubr.f32.gmra.mrb[0].mxu0 %v202
      %v384 = vpop.f32.mrb[0].mxu0
      %v385 = vadd.f32 0.0, %v384
      %v386 = vpop.f32.mrb[0].mxu0
      %387 = vmatprep.mubr.f32.mxu0 0.0
      %388 = vmatmul.mubr.f32.gmra.mrb[0].mxu0 %v203
      %v389 = vpop.f32.mrb[0].mxu0
      %v390 = vadd.f32 0.0, %v389
      %v391 = vpop.f32.mrb[0].mxu0
      %392 = vmatprep.mubr.f32.mxu0 0.0
      %393 = vmatmul.mubr.f32.gmra.mrb[0].mxu0 %v204
      %v394 = vpop.f32.mrb[0].mxu0
      %v395 = vadd.f32 0.0, %v394
      %v396 = vpop.f32.mrb[0].mxu0
      %397 = vmatprep.mubr.f32.mxu0 0.0
      %398 = vmatmul.mubr.f32.gmra.mrb[0].mxu0 %v205
      %v399 = vpop.f32.mrb[0].mxu0
      %v400 = vadd.f32 0.0, %v399
      %v401 = vpop.f32.mrb[0].mxu0
      %402 = vmatprep.mubr.f32.mxu0 0.0
      %403 = vmatmul.mubr.f32.gmra.mrb[0].mxu0 %v206
      %v404 = vpop.f32.mrb[0].mxu0
      %v405 = vadd.f32 0.0, %v404
      %v406 = vpop.f32.mrb[0].mxu0
      %407 = vmatprep.mubr.f32.mxu0 0.0
      %408 = vmatmul.mubr.f32.gmra.mrb[0].mxu0 %v207
      %v409 = vpop.f32.mrb[0].mxu0
      %v410 = vadd.f32 0.0, %v409
      %v411 = vpop.f32.mrb[0].mxu0
      %412 = vmatprep.mubr.f32.mxu0 0.0
      %413 = vmatmul.mubr.f32.gmra.mrb[0].mxu0 %v208
      %v414 = vpop.f32.mrb[0].mxu0
      %v415 = vadd.f32 0.0, %v414
      %v416 = vpop.f32.mrb[0].mxu0
      %417 = vmatprep.mubr.f32.mxu0 0.0
      %418 = vmatmul.mubr.f32.gmra.mrb[0].mxu0 %v209
      %v419 = vpop.f32.mrb[0].mxu0
      %v420 = vadd.f32 0.0, %v419
      %v421 = vpop.f32.mrb[0].mxu0
      %422 = vmatprep.mubr.f32.mxu0 0.0
      %423 = vmatmul.mubr.f32.gmra.mrb[0].mxu0 %v210
      %v424 = vpop.f32.mrb[0].mxu0
      %v425 = vadd.f32 0.0, %v424
      %v426 = vpop.f32.mrb[0].mxu0
      %427 = vmatprep.mubr.f32.mxu0 0.0
      %428 = vmatmul.mubr.f32.gmra.mrb[0].mxu0 %v211
      %v429 = vpop.f32.mrb[0].mxu0
      %v430 = vadd.f32 0.0, %v429
      %v431 = vpop.f32.mrb[0].mxu0
      %432 = vmatprep.mubr.f32.mxu0 0.0
      %433 = vmatmul.mubr.f32.gmra.mrb[0].mxu0 %v212
      %v434 = vpop.f32.mrb[0].mxu0
      %v435 = vadd.f32 0.0, %v434
      %v436 = vpop.f32.mrb[0].mxu0
      %437 = vmatprep.mubr.f32.mxu0 0.0
      %438 = vmatmul.mubr.f32.gmra.mrb[0].mxu0 %v213
      %v439 = vpop.f32.mrb[0].mxu0
      %v440 = vadd.f32 0.0, %v439
      %v441 = vpop.f32.mrb[0].mxu0
      %442 = vmatprep.mubr.f32.mxu0 0.0
      %443 = vmatmul.mubr.f32.gmra.mrb[0].mxu0 %v214
      %v444 = vpop.f32.mrb[0].mxu0
      %v445 = vadd.f32 0.0, %v444
      %v446 = vpop.f32.mrb[0].mxu0
      %447 = vmatprep.mubr.f32.mxu0 0.0
      %448 = vmatmul.mubr.f32.gmra.mrb[0].mxu0 %v215
      %v449 = vpop.f32.mrb[0].mxu0
      %v450 = vadd.f32 0.0, %v449
      %v451 = vpop.f32.mrb[0].mxu0
      %452 = vmatprep.mubr.f32.mxu0 0.0
      %453 = vmatmul.mubr.f32.gmra.mrb[0].mxu0 %v216
      %v454 = vpop.f32.mrb[0].mxu0
      %v455 = vadd.f32 0.0, %v454
      %v456 = vpop.f32.mrb[0].mxu0
      %457 = vdwg.mxu0
      %458 = vst [vmem:[%s179] sm:$0xff] %v300
      %459 = vst [vmem:[%s179 + $0x8] sm:$0xff] %v305
      %460 = vst [vmem:[%s179 + $0x10] sm:$0xff] %v310
      %461 = vst [vmem:[%s179 + $0x18] sm:$0xff] %v315
      %462 = vst [vmem:[%s179 + $0x20] sm:$0xff] %v320
      %463 = vst [vmem:[%s179 + $0x28] sm:$0xff] %v325
      %464 = vst [vmem:[%s179 + $0x30] sm:$0xff] %v330
      %465 = vst [vmem:[%s179 + $0x38] sm:$0xff] %v335
      %466 = vst [vmem:[%s179 + $0x40] sm:$0xff] %v340
      %467 = vst [vmem:[%s179 + $0x48] sm:$0xff] %v345
      %468 = vst [vmem:[%s179 + $0x50] sm:$0xff] %v350
      %469 = vst [vmem:[%s179 + $0x58] sm:$0xff] %v355
      %470 = vst [vmem:[%s179 + $0x60] sm:$0xff] %v360
      %471 = vst [vmem:[%s179 + $0x68] sm:$0xff] %v365
      %472 = vst [vmem:[%s179 + $0x70] sm:$0xff] %v370
      %473 = vst [vmem:[%s179 + $0x78] sm:$0xff] %v375
      %474 = vst [vmem:[%s179 + $0x80] sm:$0xff] %v380
      %475 = vst [vmem:[%s179 + $0x88] sm:$0xff] %v385
      %476 = vst [vmem:[%s179 + $0x90] sm:$0xff] %v390
      %477 = vst [vmem:[%s179 + $0x98] sm:$0xff] %v395
      %478 = vst [vmem:[%s179 + $0xa0] sm:$0xff] %v400
      %479 = vst [vmem:[%s179 + $0xa8] sm:$0xff] %v405
      %480 = vst [vmem:[%s179 + $0xb0] sm:$0xff] %v410
      %481 = vst [vmem:[%s179 + $0xb8] sm:$0xff] %v415
      %482 = vst [vmem:[%s179 + $0xc0] sm:$0xff] %v420
      %483 = vst [vmem:[%s179 + $0xc8] sm:$0xff] %v425
      %484 = vst [vmem:[%s179 + $0xd0] sm:$0xff] %v430
      %485 = vst [vmem:[%s179 + $0xd8] sm:$0xff] %v435
      %486 = vst [vmem:[%s179 + $0xe0] sm:$0xff] %v440
      %487 = vst [vmem:[%s179 + $0xe8] sm:$0xff] %v445
      %488 = vst [vmem:[%s179 + $0xf0] sm:$0xff] %v450
      %489 = vst [vmem:[%s179 + $0xf8] sm:$0xff] %v455
      %v490 = vadd.f32 %v300, %v305
      %v491 = vadd.f32 %v490, %v310
      %v492 = vadd.f32 %v491, %v315
      %v493 = vadd.f32 %v492, %v320
      %v494 = vadd.f32 %v493, %v325
      %v495 = vadd.f32 %v494, %v330
      %v496 = vadd.f32 %v495, %v335
      %v497 = vadd.f32 %v496, %v340
      %v498 = vadd.f32 %v497, %v345
      %v499 = vadd.f32 %v498, %v350
      %v500 = vadd.f32 %v499, %v355
      %v501 = vadd.f32 %v500, %v360
      %v502 = vadd.f32 %v501, %v365
      %v503 = vadd.f32 %v502, %v370
      %v504 = vadd.f32 %v503, %v375
      %v505 = vadd.f32 %v504, %v380
      %v506 = vadd.f32 %v505, %v385
      %v507 = vadd.f32 %v506, %v390
      %v508 = vadd.f32 %v507, %v395
      %v509 = vadd.f32 %v508, %v400
      %v510 = vadd.f32 %v509, %v405
      %v511 = vadd.f32 %v510, %v410
      %v512 = vadd.f32 %v511, %v415
      %v513 = vadd.f32 %v512, %v420
      %v514 = vadd.f32 %v513, %v425
      %v515 = vadd.f32 %v514, %v430
      %v516 = vadd.f32 %v515, %v435
      %v517 = vadd.f32 %v516, %v440
      %v518 = vadd.f32 %v517, %v445
      %v519 = vadd.f32 %v518, %v450
      %v520 = vadd.f32 %v519, %v455
      %v521 = vrot.slane %v520, 4
      %v522 = vadd.f32 %v520, %v521
      %v523 = vrot.slane %v522, 2
      %v524 = vadd.f32 %v522, %v523
      %v525 = vrot.slane %v524, 1
      %v526 = vadd.f32 %v524, %v525
      %v527 = vmul.f32 %v300, %v300
      %v528 = vmul.f32 %v305, %v305
      %v529 = vmul.f32 %v310, %v310
      %v530 = vmul.f32 %v315, %v315
      %v531 = vmul.f32 %v320, %v320
      %v532 = vmul.f32 %v325, %v325
      %v533 = vmul.f32 %v330, %v330
      %v534 = vmul.f32 %v335, %v335
      %v535 = vmul.f32 %v340, %v340
      %v536 = vmul.f32 %v345, %v345
      %v537 = vmul.f32 %v350, %v350
      %v538 = vmul.f32 %v355, %v355
      %v539 = vmul.f32 %v360, %v360
      %v540 = vmul.f32 %v365, %v365
      %v541 = vmul.f32 %v370, %v370
      %v542 = vmul.f32 %v375, %v375
      %v543 = vmul.f32 %v380, %v380
      %v544 = vmul.f32 %v385, %v385
      %v545 = vmul.f32 %v390, %v390
      %v546 = vmul.f32 %v395, %v395
      %v547 = vmul.f32 %v400, %v400
      %v548 = vmul.f32 %v405, %v405
      %v549 = vmul.f32 %v410, %v410
      %v550 = vmul.f32 %v415, %v415
      %v551 = vmul.f32 %v420, %v420
      %v552 = vmul.f32 %v425, %v425
      %v553 = vmul.f32 %v430, %v430
      %v554 = vmul.f32 %v435, %v435
      %v555 = vmul.f32 %v440, %v440
      %v556 = vmul.f32 %v445, %v445
      %v557 = vmul.f32 %v450, %v450
      %v558 = vmul.f32 %v455, %v455
      %v559 = vadd.f32 %v527, %v528
      %v560 = vadd.f32 %v559, %v529
      %v561 = vadd.f32 %v560, %v530
      %v562 = vadd.f32 %v561, %v531
      %v563 = vadd.f32 %v562, %v532
      %v564 = vadd.f32 %v563, %v533
      %v565 = vadd.f32 %v564, %v534
      %v566 = vadd.f32 %v565, %v535
      %v567 = vadd.f32 %v566, %v536
      %v568 = vadd.f32 %v567, %v537
      %v569 = vadd.f32 %v568, %v538
      %v570 = vadd.f32 %v569, %v539
      %v571 = vadd.f32 %v570, %v540
      %v572 = vadd.f32 %v571, %v541
      %v573 = vadd.f32 %v572, %v542
      %v574 = vadd.f32 %v573, %v543
      %v575 = vadd.f32 %v574, %v544
      %v576 = vadd.f32 %v575, %v545
      %v577 = vadd.f32 %v576, %v546
      %v578 = vadd.f32 %v577, %v547
      %v579 = vadd.f32 %v578, %v548
      %v580 = vadd.f32 %v579, %v549
      %v581 = vadd.f32 %v580, %v550
      %v582 = vadd.f32 %v581, %v551
      %v583 = vadd.f32 %v582, %v552
      %v584 = vadd.f32 %v583, %v553
      %v585 = vadd.f32 %v584, %v554
      %v586 = vadd.f32 %v585, %v555
      %v587 = vadd.f32 %v586, %v556
      %v588 = vadd.f32 %v587, %v557
      %v589 = vadd.f32 %v588, %v558
      %v590 = vrot.slane %v589, 4
      %v591 = vadd.f32 %v589, %v590
      %v592 = vrot.slane %v591, 2
      %v593 = vadd.f32 %v591, %v592
      %v594 = vrot.slane %v593, 1
      %v595 = vadd.f32 %v593, %v594
      %vm596 = vcmask 1040384
      %v597 = vsel %vm596, %v526, %v595
      %598 = vst [vmem:[%s184] sm:$0x3] %v597
      %s599 = smul.u32 32, %s15
      %p600 = scmp.lt.s32.totalorder %s599, 63
      %s601 = scalar_select %p600, %s599, 63
      %s602 = smul.addr %s601, 8
      %s603 = scalar_lea.vmem %s2, %s602
      %p604 = scmp.lt.s32.totalorder %s15, 1
      %s605 = scalar_select %p604, %s15, 1
      %s606 = smul.addr %s605, 2
      %s607 = scalar_lea.vmem %s3, %s606
      // Predicated region
      $region29: #{inverted_residual.4} parent=27 // pred_check
        %p608 = pneg %p80
      $region30: #{inverted_residual.4} parent=27 // pred_check_branch
        %610 = sbr.rel (%p608) target = $region32
      $region31: #{inverted_residual.4} parent=27 // pred_region
        %s611 = smul.u32 32, %s15
      $region32: #{inverted_residual.4} parent=27 // pred_fallthru
        _
      // Predicated region
      $region33: #{inverted_residual.4} parent=27 // pred_check
        %p612 = pneg %p106
      $region34: #{inverted_residual.4} parent=27 // pred_check_branch
        %614 = sbr.rel (%p612) target = $region36
      $region35: #{inverted_residual.4} parent=27 // pred_region
        _
      $region36: #{inverted_residual.4} parent=27 // pred_fallthru
        _
    $region28: #{inverted_residual.4} parent=5 // pred_fallthru
      _
    %p615 = scmp.le.s32.totalorder 2, %s10
    // Predicated region
    $region37: #{inverted_residual.4} parent=5 // pred_check
      %p616 = pneg %p615
    $region38: #{inverted_residual.4} parent=5 // pred_check_branch
      %618 = sbr.rel (%p616) target = $region40
    $region39: #{inverted_residual.4} parent=5 // pred_region
      %s619 = ssub.s32 %s10, 2
      // Predicated region
      $region41: #{inverted_residual.4} parent=39 // pred_check
        %p620 = pneg %p86
      $region42: #{inverted_residual.4} parent=39 // pred_check_branch
        %622 = sbr.rel (%p620) target = $region44
      $region43: #{inverted_residual.4} parent=39 // pred_region
        %s623 = smul.u32 32, %s16
        %p624 = scmp.lt.s32.totalorder %s623, 63
        %s625 = scalar_select %p624, %s623, 63
        %s626 = smul.addr %s625, 8
        %s627 = scalar_lea.vmem %s2, %s626
      $region44: #{inverted_residual.4} parent=39 // pred_fallthru
        _
      // Predicated region
      $region45: #{inverted_residual.4} parent=39 // pred_check
        %p628 = pneg %p112
      $region46: #{inverted_residual.4} parent=39 // pred_check_branch
        %630 = sbr.rel (%p628) target = $region48
      $region47: #{inverted_residual.4} parent=39 // pred_region
        %p631 = scmp.lt.s32.totalorder %s16, 1
        %s632 = scalar_select %p631, %s16, 1
        %s633 = smul.addr %s632, 2
        %s634 = scalar_lea.vmem %s3, %s633
      $region48: #{inverted_residual.4} parent=39 // pred_fallthru
        _
    $region40: #{inverted_residual.4} parent=5 // pred_fallthru
      _
  $region6: #{inverted_residual.4} parent=0 // loop_footer
    %s14 = sadd.s32 1, %s10
  $region7: #{inverted_residual.4} parent=0 // loop_footer_branch
    %9 = sbr.rel target = $region3
  $region8: #{inverted_residual.4} parent=0 // loop_exit
    _

// kernel: inverted_residual.6
$region0: #{inverted_residual.6}
  #allocation0 [shape = 'u32[]', space=smem, size = 0x4, offset = 0x4, fixed_abs, tag = 'smem constant byte address 0x4 - core index']
  #allocation1 [shape = 'u32[144,128]{1,0:T(1,128)}', space=vmem, size = 0x12000, scoped, tag = 'internal scratch']
  %s0 = inlined_call_operand.vmem [shape: f32[512,128], index: 0, kind: input, shape index: {}]
  %s1 = inlined_call_operand.vmem [shape: f32[1,128], index: 1, kind: input, shape index: {}]
  %s2 = inlined_call_operand.vmem [shape: f32[1,128], index: 2, kind: input, shape index: {}]
  %s3 = inlined_call_operand.vmem [shape: f32[128,128], index: 3, kind: input, shape index: {}]
  %s4 = inlined_call_operand.vmem [shape: f32[512,128], index: 4, kind: output, shape index: {0}]
  %s5 = inlined_call_operand.vmem [shape: f32[2,2,128], index: 5, kind: output, shape index: {1}]
  %6 = xla_tuple %s4, %s5
  %s7 = sld [smem:[#allocation0]]
  $region57: #{inverted_residual.6} parent=0
    _
  %s9 = ssub.s32 1, %s7
  %s10 = scalar_select 0, %s9, %s7
  loop: start=0, step=1, limit=4
  $region2: #{inverted_residual.6} parent=0 // loop_pre_header
    _
  $region3: #{inverted_residual.6} parent=0 // loop_header
    %s12 = sphi 0, %s16
    %p13 = scmp.ge.s32.totalorder %s12, 4
    %s22 = sphi 0, %s24
    %s25 = sphi 0, %s22
    %s26 = sphi 0, %s25
    %s42 = sphi 0, %s26
    %s46 = sphi 0, %s46
    %s48 = sphi 0, %s46
    %s49 = sphi 0, %s48
    %s63 = sphi 0, %s49
    %s67 = sphi 0, %s67
    %s69 = sphi 0, %s67
    %s70 = sphi 0, %s69
    %s84 = sphi 0, %s70
    %s88 = sphi 0, %s88
    %s90 = sphi 0, %s88
    %s91 = sphi 0, %s90
    %s105 = sphi 0, %s91
    %s111 = sphi 0, %s113
    %s114 = sphi 0, %s111
    %s115 = sphi 0, %s114
    %s131 = sphi 0, %s115
    %s137 = sphi 0, %s139
    %s140 = sphi 0, %s137
    %s141 = sphi 0, %s140
    %s157 = sphi 0, %s141
  $region4: #{inverted_residual.6} parent=0 // loop_header_branch
    %15 = sbr.rel (%p13) target = $region8
  $region5: #{inverted_residual.6} parent=0 // loop_body
    %s17 = ssub.s32 %s12, 1
    %s18 = ssub.s32 %s12, 2
    %s19 = sadd.s32 %s12, 1
    %s20 = ssub.s32 %s12, %s19
    %p21 = scmp.eq.s32.totalorder %s20, 0
    %s23 = sadd.s32 %s22, 1
    %s24 = scalar_select %p21, %s22, %s23
    %p27 = pneg %p21
    %p28 = scmp.eq.s32.totalorder %s12, 1
    %p29 = por %p27, %p28
    %p30 = scmp.ne.s32.totalorder %s22, %s25
    %p31 = scmp.eq.s32.totalorder %s12, 0
    %p32 = por %p30, %p31
    %p33 = scmp.ne.s32.totalorder %s22, %s25
    %p34 = scmp.eq.s32.totalorder %s17, 1
    %p35 = por %p33, %p34
    %p36 = scmp.ne.s32.totalorder %s25, %s26
    %p37 = scmp.eq.s32.totalorder %s17, 0
    %p38 = por %p36, %p37
    %p39 = scmp.ne.s32.totalorder %s25, %s26
    %p40 = scmp.eq.s32.totalorder %s18, 1
    %p41 = por %p39, %p40
    %p43 = scmp.ne.s32.totalorder %s26, %s42
    %p44 = scmp.eq.s32.totalorder %s18, 0
    %p45 = por %p43, %p44
    %s47 = sadd.s32 %s46, 1
    %p50 = scmp.eq.s32.totalorder %s12, 1
    %p51 = scmp.ne.s32.totalorder %s46, %s48
    %p52 = scmp.eq.s32.totalorder %s12, 0
    %p53 = por %p51, %p52
    %p54 = scmp.ne.s32.totalorder %s46, %s48
    %p55 = scmp.eq.s32.totalorder %s17, 1
    %p56 = por %p54, %p55
    %p57 = scmp.ne.s32.totalorder %s48, %s49
    %p58 = scmp.eq.s32.totalorder %s17, 0
    %p59 = por %p57, %p58
    %p60 = scmp.ne.s32.totalorder %s48, %s49
    %p61 = scmp.eq.s32.totalorder %s18, 1
    %p62 = por %p60, %p61
    %p64 = scmp.ne.s32.totalorder %s49, %s63
    %p65 = scmp.eq.s32.totalorder %s18, 0
    %p66 = por %p64, %p65
    %s68 = sadd.s32 %s67, 1
    %p71 = scmp.eq.s32.totalorder %s12, 1
    %p72 = scmp.ne.s32.totalorder %s67, %s69
    %p73 = scmp.eq.s32.totalorder %s12, 0
    %p74 = por %p72, %p73
    %p75 = scmp.ne.s32.totalorder %s67, %s69
    %p76 = scmp.eq.s32.totalorder %s17, 1
    %p77 = por %p75, %p76
    %p78 = scmp.ne.s32.totalorder %s69, %s70
    %p79 = scmp.eq.s32.totalorder %s17, 0
    %p80 = por %p78, %p79
    %p81 = scmp.ne.s32.totalorder %s69, %s70
    %p82 = scmp.eq.s32.totalorder %s18, 1
    %p83 = por %p81, %p82
    %p85 = scmp.ne.s32.totalorder %s70, %s84
    %p86 = scmp.eq.s32.totalorder %s18, 0
    %p87 = por %p85, %p86
    %s89 = sadd.s32 %s88, 1
    %p92 = scmp.eq.s32.totalorder %s12, 1
    %p93 = scmp.ne.s32.totalorder %s88, %s90
    %p94 = scmp.eq.s32.totalorder %s12, 0
    %p95 = por %p93, %p94
    %p96 = scmp.ne.s32.totalorder %s88, %s90
    %p97 = scmp.eq.s32.totalorder %s17, 1
    %p98 = por %p96, %p97
    %p99 = scmp.ne.s32.totalorder %s90, %s91
    %p100 = scmp.eq.s32.totalorder %s17, 0
    %p101 = por %p99, %p100
    %p102 = scmp.ne.s32.totalorder %s90, %s91
    %p103 = scmp.eq.s32.totalorder %s18, 1
    %p104 = por %p102, %p103
    %p106 = scmp.ne.s32.totalorder %s91, %s105
    %p107 = scmp.eq.s32.totalorder %s18, 0
    %p108 = por %p106, %p107
    %s109 = ssub.s32 %s12, %s19
    %p110 = scmp.eq.s32.totalorder %s109, 0
    %s112 = sadd.s32 %s111, 1
    %s113 = scalar_select %p110, %s111, %s112
    %p116 = pneg %p110
    %p117 = scmp.eq.s32.totalorder %s12, 1
    %p118 = por %p116, %p117
    %p119 = scmp.ne.s32.totalorder %s111, %s114
    %p120 = scmp.eq.s32.totalorder %s12, 0
    %p121 = por %p119, %p120
    %p122 = scmp.ne.s32.totalorder %s111, %s114
    %p123 = scmp.eq.s32.totalorder %s17, 1
    %p124 = por %p122, %p123
    %p125 = scmp.ne.s32.totalorder %s114, %s115
    %p126 = scmp.eq.s32.totalorder %s17, 0
    %p127 = por %p125, %p126
    %p128 = scmp.ne.s32.totalorder %s114, %s115
    %p129 = scmp.eq.s32.totalorder %s18, 1
    %p130 = por %p128, %p129
    %p132 = scmp.ne.s32.totalorder %s115, %s131
    %p133 = scmp.eq.s32.totalorder %s18, 0
    %p134 = por %p132, %p133
    %s135 = ssub.s32 %s12, %s19
    %p136 = scmp.eq.s32.totalorder %s135, 0
    %s138 = sadd.s32 %s137, 1
    %s139 = scalar_select %p136, %s137, %s138
    %p142 = pneg %p136
    %p143 = scmp.eq.s32.totalorder %s12, 1
    %p144 = por %p142, %p143
    %p145 = scmp.ne.s32.totalorder %s137, %s140
    %p146 = scmp.eq.s32.totalorder %s12, 0
    %p147 = por %p145, %p146
    %p148 = scmp.ne.s32.totalorder %s137, %s140
    %p149 = scmp.eq.s32.totalorder %s17, 1
    %p150 = por %p148, %p149
    %p151 = scmp.ne.s32.totalorder %s140, %s141
    %p152 = scmp.eq.s32.totalorder %s17, 0
    %p153 = por %p151, %p152
    %p154 = scmp.ne.s32.totalorder %s140, %s141
    %p155 = scmp.eq.s32.totalorder %s18, 1
    %p156 = por %p154, %p155
    %p158 = scmp.ne.s32.totalorder %s141, %s157
    %p159 = scmp.eq.s32.totalorder %s18, 0
    %p160 = por %p158, %p159
    %p161 = scmp.le.s32.totalorder 1, %s12
    %p162 = scmp.lt.s32.totalorder %s12, 3
    %p163 = pnand %p161, %p162
    %p164 = pneg %p163
    // Predicated region
    $region9: #{inverted_residual.6} parent=5 // pred_check
      _
    $region10: #{inverted_residual.6} parent=5 // pred_check_branch
      %166 = sbr.rel (%p163) target = $region12
    $region11: #{inverted_residual.6} parent=5 // pred_region
      %s167 = ssub.s32 %s12, 1
      // Predicated region
      $region13: #{inverted_residual.6} parent=11 // pred_check
        %p168 = pneg %p59
      $region14: #{inverted_residual.6} parent=11 // pred_check_branch
        %170 = sbr.rel (%p168) target = $region16
      $region15: #{inverted_residual.6} parent=11 // pred_region
        _
      $region16: #{inverted_residual.6} parent=11 // pred_fallthru
        _
      // Predicated region
      $region17: #{inverted_residual.6} parent=11 // pred_check
        %p171 = pneg %p80
      $region18: #{inverted_residual.6} parent=11 // pred_check_branch
        %173 = sbr.rel (%p171) target = $region20
      $region19: #{inverted_residual.6} parent=11 // pred_region
        _
      $region20: #{inverted_residual.6} parent=11 // pred_fallthru
        _
      // Predicated region
      $region21: #{inverted_residual.6} parent=11 // pred_check
        %p174 = pneg %p101
      $region22: #{inverted_residual.6} parent=11 // pred_check_branch
        %176 = sbr.rel (%p174) target = $region24
      $region23: #{inverted_residual.6} parent=11 // pred_region
        _
      $region24: #{inverted_residual.6} parent=11 // pred_fallthru
        _
    $region12: #{inverted_residual.6} parent=5 // pred_fallthru
      _
    %p177 = scmp.lt.s32.totalorder %s12, 2
    // Predicated region
    $region25: #{inverted_residual.6} parent=5 // pred_check
      %p178 = pneg %p177
    $region26: #{inverted_residual.6} parent=5 // pred_check_branch
      %180 = sbr.rel (%p178) target = $region28
    $region27: #{inverted_residual.6} parent=5 // pred_region
      // Predicated region
      $region29: #{inverted_residual.6} parent=27 // pred_check
        %p181 = pneg %p32
      $region30: #{inverted_residual.6} parent=27 // pred_check_branch
        %183 = sbr.rel (%p181) target = $region32
      $region31: #{inverted_residual.6} parent=27 // pred_region
        %s184 = smul.u32 32, %s12
        %p185 = scmp.lt.s32.totalorder %s184, 63
        %s186 = scalar_select %p185, %s184, 63
        %s187 = smul.addr %s186, 8
        %s188 = scalar_lea.vmem %s0, %s187
        %s189 = smul.u32 32, %s12
      $region32: #{inverted_residual.6} parent=27 // pred_fallthru
        _
    $region28: #{inverted_residual.6} parent=5 // pred_fallthru
      _
    %p190 = scmp.le.s32.totalorder 1, %s12
    %p191 = scmp.lt.s32.totalorder %s12, 3
    %p192 = pnand %p190, %p191
    %p193 = pneg %p192
    // Predicated region
    $region33: #{inverted_residual.6} parent=5 // pred_check
      _
    $region34: #{inverted_residual.6} parent=5 // pred_check_branch
      %195 = sbr.rel (%p192) target = $region36
    $region35: #{inverted_residual.6} parent=5 // pred_region
      %s196 = ssub.s32 %s12, 1
      %s197 = smul.u32 32, %s17
      %p198 = scmp.lt.s32.totalorder %s197, 63
      %s199 = scalar_select %p198, %s197, 63
      %s200 = smul.addr %s199, 8
      %s201 = scalar_lea.vmem %s0, %s200
      %p202 = pneg %p38
      %p203 = pneg %p35
      %p204 = pneg %p59
      %p205 = pneg %p56
      %p206 = pneg %p80
      %p207 = pneg %p77
      %p208 = pneg %p101
      %p209 = pneg %p98
      %p210 = pneg %p127
      %p211 = pneg %p124
      %s212 = smul.u32 32, %s17
      %p213 = scmp.lt.s32.totalorder %s212, 63
      %s214 = scalar_select %p213, %s212, 63
      %s215 = smul.addr %s214, 8
      %s216 = scalar_lea.vmem %s4, %s215
      %p217 = pneg %p153
      %p218 = pneg %p150
      %p219 = scmp.lt.s32.totalorder %s17, 1
      %s220 = scalar_select %p219, %s17, 1
      %s221 = smul.addr %s220, 2
      %s222 = scalar_lea.vmem %s5, %s221
      %s223 = smul.u32 32, %s17
      %p224 = scmp.lt.s32.totalorder %s223, 63
      %s225 = scalar_select %p224, %s223, 63
      %s226 = smul.addr %s225, 8
      %s227 = scalar_lea.vmem %s0, %s226
      %s228 = smul.u32 32, %s17
      %s229 = smul.u32 32, %s17
      %p230 = scmp.lt.s32.totalorder %s229, 63
      %s231 = scalar_select %p230, %s229, 63
      %s232 = smul.addr %s231, 8
      %s233 = scalar_lea.vmem %s4, %s232
      %s234 = smul.u32 32, %s17
      %p235 = scmp.lt.s32.totalorder %s17, 1
      %s236 = scalar_select %p235, %s17, 1
      %s237 = smul.addr %s236, 2
      %s238 = scalar_lea.vmem %s5, %s237
      %v239 = vld [vmem:[%s227] sm:$0xff]
      %v240 = vld [vmem:[%s227 + $0x8] sm:$0xff]
      %v241 = vld [vmem:[%s227 + $0x10] sm:$0xff]
      %v242 = vld [vmem:[%s227 + $0x18] sm:$0xff]
      %v243 = vld [vmem:[%s227 + $0x20] sm:$0xff]
      %v244 = vld [vmem:[%s227 + $0x28] sm:$0xff]
      %v245 = vld [vmem:[%s227 + $0x30] sm:$0xff]
      %v246 = vld [vmem:[%s227 + $0x38] sm:$0xff]
      %v247 = vld [vmem:[%s227 + $0x40] sm:$0xff]
      %v248 = vld [vmem:[%s227 + $0x48] sm:$0xff]
      %v249 = vld [vmem:[%s227 + $0x50] sm:$0xff]
      %v250 = vld [vmem:[%s227 + $0x58] sm:$0xff]
      %v251 = vld [vmem:[%s227 + $0x60] sm:$0xff]
      %v252 = vld [vmem:[%s227 + $0x68] sm:$0xff]
      %v253 = vld [vmem:[%s227 + $0x70] sm:$0xff]
      %v254 = vld [vmem:[%s227 + $0x78] sm:$0xff]
      %v255 = vld [vmem:[%s227 + $0x80] sm:$0xff]
      %v256 = vld [vmem:[%s227 + $0x88] sm:$0xff]
      %v257 = vld [vmem:[%s227 + $0x90] sm:$0xff]
      %v258 = vld [vmem:[%s227 + $0x98] sm:$0xff]
      %v259 = vld [vmem:[%s227 + $0xa0] sm:$0xff]
      %v260 = vld [vmem:[%s227 + $0xa8] sm:$0xff]
      %v261 = vld [vmem:[%s227 + $0xb0] sm:$0xff]
      %v262 = vld [vmem:[%s227 + $0xb8] sm:$0xff]
      %v263 = vld [vmem:[%s227 + $0xc0] sm:$0xff]
      %v264 = vld [vmem:[%s227 + $0xc8] sm:$0xff]
      %v265 = vld [vmem:[%s227 + $0xd0] sm:$0xff]
      %v266 = vld [vmem:[%s227 + $0xd8] sm:$0xff]
      %v267 = vld [vmem:[%s227 + $0xe0] sm:$0xff]
      %v268 = vld [vmem:[%s227 + $0xe8] sm:$0xff]
      %v269 = vld [vmem:[%s227 + $0xf0] sm:$0xff]
      %v270 = vld [vmem:[%s227 + $0xf8] sm:$0xff]
      %v271 = vld [vmem:[%s1] sm:$0x1]
      %v273 = vlaneseq
      %v274 = vshrl.u32 %v273, 7
      %v275 = vsub.s32 0, %v274
      %v276 = vrot.slane %v271, %v275
      %v278 = vmul.f32 %v239, %v276
      %v279 = vmul.f32 %v240, %v276
      %v280 = vmul.f32 %v241, %v276
      %v281 = vmul.f32 %v242, %v276
      %v282 = vmul.f32 %v243, %v276
      %v283 = vmul.f32 %v244, %v276
      %v284 = vmul.f32 %v245, %v276
      %v285 = vmul.f32 %v246, %v276
      %v286 = vmul.f32 %v247, %v276
      %v287 = vmul.f32 %v248, %v276
      %v288 = vmul.f32 %v249, %v276
      %v289 = vmul.f32 %v250, %v276
      %v290 = vmul.f32 %v251, %v276
      %v291 = vmul.f32 %v252, %v276
      %v292 = vmul.f32 %v253, %v276
      %v293 = vmul.f32 %v254, %v276
      %v294 = vmul.f32 %v255, %v276
      %v295 = vmul.f32 %v256, %v276
      %v296 = vmul.f32 %v257, %v276
      %v297 = vmul.f32 %v258, %v276
      %v298 = vmul.f32 %v259, %v276
      %v299 = vmul.f32 %v260, %v276
      %v300 = vmul.f32 %v261, %v276
      %v301 = vmul.f32 %v262, %v276
      %v302 = vmul.f32 %v263, %v276
      %v303 = vmul.f32 %v264, %v276
      %v304 = vmul.f32 %v265, %v276
      %v305 = vmul.f32 %v266, %v276
      %v306 = vmul.f32 %v267, %v276
      %v307 = vmul.f32 %v268, %v276
      %v308 = vmul.f32 %v269, %v276
      %v309 = vmul.f32 %v270, %v276
      %v310 = vld [vmem:[%s2] sm:$0x1]
      %v312 = vlaneseq
      %v313 = vshrl.u32 %v312, 7
      %v314 = vsub.s32 0, %v313
      %v315 = vrot.slane %v310, %v314
      %v317 = vadd.f32 %v278, %v315
      %v318 = vadd.f32 %v279, %v315
      %v319 = vadd.f32 %v280, %v315
      %v320 = vadd.f32 %v281, %v315
      %v321 = vadd.f32 %v282, %v315
      %v322 = vadd.f32 %v283, %v315
      %v323 = vadd.f32 %v284, %v315
      %v324 = vadd.f32 %v285, %v315
      %v325 = vadd.f32 %v286, %v315
      %v326 = vadd.f32 %v287, %v315
      %v327 = vadd.f32 %v288, %v315
      %v328 = vadd.f32 %v289, %v315
      %v329 = vadd.f32 %v290, %v315
      %v330 = vadd.f32 %v291, %v315
      %v331 = vadd.f32 %v292, %v315
      %v332 = vadd.f32 %v293, %v315
      %v333 = vadd.f32 %v294, %v315
      %v334 = vadd.f32 %v295, %v315
      %v335 = vadd.f32 %v296, %v315
      %v336 = vadd.f32 %v297, %v315
      %v337 = vadd.f32 %v298, %v315
      %v338 = vadd.f32 %v299, %v315
      %v339 = vadd.f32 %v300, %v315
      %v340 = vadd.f32 %v301, %v315
      %v341 = vadd.f32 %v302, %v315
      %v342 = vadd.f32 %v303, %v315
      %v343 = vadd.f32 %v304, %v315
      %v344 = vadd.f32 %v305, %v315
      %v345 = vadd.f32 %v306, %v315
      %v346 = vadd.f32 %v307, %v315
      %v347 = vadd.f32 %v308, %v315
      %v348 = vadd.f32 %v309, %v315
      %v349 = vmax.f32 %v317, 0.0
      %v350 = vmax.f32 %v318, 0.0
      %v351 = vmax.f32 %v319, 0.0
      %v352 = vmax.f32 %v320, 0.0
      %v353 = vmax.f32 %v321, 0.0
      %v354 = vmax.f32 %v322, 0.0
      %v355 = vmax.f32 %v323, 0.0
      %v356 = vmax.f32 %v324, 0.0
      %v357 = vmax.f32 %v325, 0.0
      %v358 = vmax.f32 %v326, 0.0
      %v359 = vmax.f32 %v327, 0.0
      %v360 = vmax.f32 %v328, 0.0
      %v361 = vmax.f32 %v329, 0.0
      %v362 = vmax.f32 %v330, 0.0
      %v363 = vmax.f32 %v331, 0.0
      %v364 = vmax.f32 %v332, 0.0
      %v365 = vmax.f32 %v333, 0.0
      %v366 = vmax.f32 %v334, 0.0
      %v367 = vmax.f32 %v335, 0.0
      %v368 = vmax.f32 %v336, 0.0
      %v369 = vmax.f32 %v337, 0.0
      %v370 = vmax.f32 %v338, 0.0
      %v371 = vmax.f32 %v339, 0.0
      %v372 = vmax.f32 %v340, 0.0
      %v373 = vmax.f32 %v341, 0.0
      %v374 = vmax.f32 %v342, 0.0
      %v375 = vmax.f32 %v343, 0.0
      %v376 = vmax.f32 %v344, 0.0
      %v377 = vmax.f32 %v345, 0.0
      %v378 = vmax.f32 %v346, 0.0
      %v379 = vmax.f32 %v347, 0.0
      %v380 = vmax.f32 %v348, 0.0
      %v381 = vld [vmem:[%s3] sm:$0xff]
      %v382 = vld [vmem:[%s3 + $0x8] sm:$0xff]
      %v383 = vld [vmem:[%s3 + $0x10] sm:$0xff]
      %v384 = vld [vmem:[%s3 + $0x18] sm:$0xff]
      %v385 = vld [vmem:[%s3 + $0x20] sm:$0xff]
      %v386 = vld [vmem:[%s3 + $0x28] sm:$0xff]
      %v387 = vld [vmem:[%s3 + $0x30] sm:$0xff]
      %v388 = vld [vmem:[%s3 + $0x38] sm:$0xff]
      %v389 = vld [vmem:[%s3 + $0x40] sm:$0xff]
      %v390 = vld [vmem:[%s3 + $0x48] sm:$0xff]
      %v391 = vld [vmem:[%s3 + $0x50] sm:$0xff]
      %v392 = vld [vmem:[%s3 + $0x58] sm:$0xff]
      %v393 = vld [vmem:[%s3 + $0x60] sm:$0xff]
      %v394 = vld [vmem:[%s3 + $0x68] sm:$0xff]
      %v395 = vld [vmem:[%s3 + $0x70] sm:$0xff]
      %v396 = vld [vmem:[%s3 + $0x78] sm:$0xff]
      %397 = vmatprep.subr.mxu0 0.0
      %398 = vmatpush1.msra.mxu0 %v381
      %399 = vmatprep.subr.mxu0 0.0
      %400 = vmatpush1.msra.mxu0 %v382
      %401 = vmatprep.subr.mxu0 0.0
      %402 = vmatpush1.msra.mxu0 %v383
      %403 = vmatprep.subr.mxu0 0.0
      %404 = vmatpush1.msra.mxu0 %v384
      %405 = vmatprep.subr.mxu0 0.0
      %406 = vmatpush1.msra.mxu0 %v385
      %407 = vmatprep.subr.mxu0 0.0
      %408 = vmatpush1.msra.mxu0 %v386
      %409 = vmatprep.subr.mxu0 0.0
      %410 = vmatpush1.msra.mxu0 %v387
      %411 = vmatprep.subr.mxu0 0.0
      %412 = vmatpush1.msra.mxu0 %v388
      %413 = vmatprep.subr.mxu0 0.0
      %414 = vmatpush1.msra.mxu0 %v389
      %415 = vmatprep.subr.mxu0 0.0
      %416 = vmatpush1.msra.mxu0 %v390
      %417 = vmatprep.subr.mxu0 0.0
      %418 = vmatpush1.msra.mxu0 %v391
      %419 = vmatprep.subr.mxu0 0.0
      %420 = vmatpush1.msra.mxu0 %v392
      %421 = vmatprep.subr.mxu0 0.0
      %422 = vmatpush1.msra.mxu0 %v393
      %423 = vmatprep.subr.mxu0 0.0
      %424 = vmatpush1.msra.mxu0 %v394
      %425 = vmatprep.subr.mxu0 0.0
      %426 = vmatpush1.msra.mxu0 %v395
      %427 = vmatprep.subr.mxu0 0.0
      %428 = vmatpush1.msra.mxu0 %v396
      %429 = vmatprep.subr.mxu0 0.0
      %430 = vmatpush1.msra.mxu0 0.0
      %431 = vmatprep.subr.mxu0 0.0
      %432 = vmatpush1.msra.mxu0 0.0
      %433 = vmatprep.subr.mxu0 0.0
      %434 = vmatpush1.msra.mxu0 0.0
      %435 = vmatprep.subr.mxu0 0.0
      %436 = vmatpush1.msra.mxu0 0.0
      %437 = vmatprep.subr.mxu0 0.0
      %438 = vmatpush1.msra.mxu0 0.0
      %439 = vmatprep.subr.mxu0 0.0
      %440 = vmatpush1.msra.mxu0 0.0
      %441 = vmatprep.subr.mxu0 0.0
      %442 = vmatpush1.msra.mxu0 0.0
      %443 = vmatprep.subr.mxu0 0.0
      %444 = vmatpush1.msra.mxu0 0.0
      %445 = vmatprep.subr.mxu0 0.0
      %446 = vmatpush1.msra.mxu0 0.0
      %447 = vmatprep.subr.mxu0 0.0
      %448 = vmatpush1.msra.mxu0 0.0
      %449 = vmatprep.subr.mxu0 0.0
      %450 = vmatpush1.msra.mxu0 0.0
      %451 = vmatprep.subr.mxu0 0.0
      %452 = vmatpush1.msra.mxu0 0.0
      %453 = vmatprep.subr.mxu0 0.0
      %454 = vmatpush1.msra.mxu0 0.0
      %455 = vmatprep.subr.mxu0 0.0
      %456 = vmatpush1.msra.mxu0 0.0
      %457 = vmatprep.subr.mxu0 0.0
      %458 = vmatpush1.msra.mxu0 0.0
      %459 = vmatprep.subr.mxu0 0.0
      %460 = vmatpush1.msra.mxu0 0.0
      %461 = vmatprep.mubr.f32.mxu0 0.0
      %462 = vmatmul.mubr.f32.gmra.mrb[0].mxu0 %v349
      %v463 = vpop.f32.mrb[0].mxu0
      %v464 = vadd.f32 0.0, %v463
      %v465 = vpop.f32.mrb[0].mxu0
      %466 = vmatprep.mubr.f32.mxu0 0.0
      %467 = vmatmul.mubr.f32.gmra.mrb[0].mxu0 %v350
      %v468 = vpop.f32.mrb[0].mxu0
      %v469 = vadd.f32 0.0, %v468
      %v470 = vpop.f32.mrb[0].mxu0
      %471 = vmatprep.mubr.f32.mxu0 0.0
      %472 = vmatmul.mubr.f32.gmra.mrb[0].mxu0 %v351
      %v473 = vpop.f32.mrb[0].mxu0
      %v474 = vadd.f32 0.0, %v473
      %v475 = vpop.f32.mrb[0].mxu0
      %476 = vmatprep.mubr.f32.mxu0 0.0
      %477 = vmatmul.mubr.f32.gmra.mrb[0].mxu0 %v352
      %v478 = vpop.f32.mrb[0].mxu0
      %v479 = vadd.f32 0.0, %v478
      %v480 = vpop.f32.mrb[0].mxu0
      %481 = vmatprep.mubr.f32.mxu0 0.0
      %482 = vmatmul.mubr.f32.gmra.mrb[0].mxu0 %v353
      %v483 = vpop.f32.mrb[0].mxu0
      %v484 = vadd.f32 0.0, %v483
      %v485 = vpop.f32.mrb[0].mxu0
      %486 = vmatprep.mubr.f32.mxu0 0.0
      %487 = vmatmul.mubr.f32.gmra.mrb[0].mxu0 %v354
      %v488 = vpop.f32.mrb[0].mxu0
      %v489 = vadd.f32 0.0, %v488
      %v490 = vpop.f32.mrb[0].mxu0
      %491 = vmatprep.mubr.f32.mxu0 0.0
      %492 = vmatmul.mubr.f32.gmra.mrb[0].mxu0 %v355
      %v493 = vpop.f32.mrb[0].mxu0
      %v494 = vadd.f32 0.0, %v493
      %v495 = vpop.f32.mrb[0].mxu0
      %496 = vmatprep.mubr.f32.mxu0 0.0
      %497 = vmatmul.mubr.f32.gmra.mrb[0].mxu0 %v356
      %v498 = vpop.f32.mrb[0].mxu0
      %v499 = vadd.f32 0.0, %v498
      %v500 = vpop.f32.mrb[0].mxu0
      %501 = vmatprep.mubr.f32.mxu0 0.0
      %502 = vmatmul.mubr.f32.gmra.mrb[0].mxu0 %v357
      %v503 = vpop.f32.mrb[0].mxu0
      %v504 = vadd.f32 0.0, %v503
      %v505 = vpop.f32.mrb[0].mxu0
      %506 = vmatprep.mubr.f32.mxu0 0.0
      %507 = vmatmul.mubr.f32.gmra.mrb[0].mxu0 %v358
      %v508 = vpop.f32.mrb[0].mxu0
      %v509 = vadd.f32 0.0, %v508
      %v510 = vpop.f32.mrb[0].mxu0
      %511 = vmatprep.mubr.f32.mxu0 0.0
      %512 = vmatmul.mubr.f32.gmra.mrb[0].mxu0 %v359
      %v513 = vpop.f32.mrb[0].mxu0
      %v514 = vadd.f32 0.0, %v513
      %v515 = vpop.f32.mrb[0].mxu0
      %516 = vmatprep.mubr.f32.mxu0 0.0
      %517 = vmatmul.mubr.f32.gmra.mrb[0].mxu0 %v360
      %v518 = vpop.f32.mrb[0].mxu0
      %v519 = vadd.f32 0.0, %v518
      %v520 = vpop.f32.mrb[0].mxu0
      %521 = vmatprep.mubr.f32.mxu0 0.0
      %522 = vmatmul.mubr.f32.gmra.mrb[0].mxu0 %v361
      %v523 = vpop.f32.mrb[0].mxu0
      %v524 = vadd.f32 0.0, %v523
      %v525 = vpop.f32.mrb[0].mxu0
      %526 = vmatprep.mubr.f32.mxu0 0.0
      %527 = vmatmul.mubr.f32.gmra.mrb[0].mxu0 %v362
      %v528 = vpop.f32.mrb[0].mxu0
      %v529 = vadd.f32 0.0, %v528
      %v530 = vpop.f32.mrb[0].mxu0
      %531 = vmatprep.mubr.f32.mxu0 0.0
      %532 = vmatmul.mubr.f32.gmra.mrb[0].mxu0 %v363
      %v533 = vpop.f32.mrb[0].mxu0
      %v534 = vadd.f32 0.0, %v533
      %v535 = vpop.f32.mrb[0].mxu0
      %536 = vmatprep.mubr.f32.mxu0 0.0
      %537 = vmatmul.mubr.f32.gmra.mrb[0].mxu0 %v364
      %v538 = vpop.f32.mrb[0].mxu0
      %v539 = vadd.f32 0.0, %v538
      %v540 = vpop.f32.mrb[0].mxu0
      %541 = vmatprep.mubr.f32.mxu0 0.0
      %542 = vmatmul.mubr.f32.gmra.mrb[0].mxu0 %v365
      %v543 = vpop.f32.mrb[0].mxu0
      %v544 = vadd.f32 0.0, %v543
      %v545 = vpop.f32.mrb[0].mxu0
      %546 = vmatprep.mubr.f32.mxu0 0.0
      %547 = vmatmul.mubr.f32.gmra.mrb[0].mxu0 %v366
      %v548 = vpop.f32.mrb[0].mxu0
      %v549 = vadd.f32 0.0, %v548
      %v550 = vpop.f32.mrb[0].mxu0
      %551 = vmatprep.mubr.f32.mxu0 0.0
      %552 = vmatmul.mubr.f32.gmra.mrb[0].mxu0 %v367
      %v553 = vpop.f32.mrb[0].mxu0
      %v554 = vadd.f32 0.0, %v553
      %v555 = vpop.f32.mrb[0].mxu0
      %556 = vmatprep.mubr.f32.mxu0 0.0
      %557 = vmatmul.mubr.f32.gmra.mrb[0].mxu0 %v368
      %v558 = vpop.f32.mrb[0].mxu0
      %v559 = vadd.f32 0.0, %v558
      %v560 = vpop.f32.mrb[0].mxu0
      %561 = vmatprep.mubr.f32.mxu0 0.0
      %562 = vmatmul.mubr.f32.gmra.mrb[0].mxu0 %v369
      %v563 = vpop.f32.mrb[0].mxu0
      %v564 = vadd.f32 0.0, %v563
      %v565 = vpop.f32.mrb[0].mxu0
      %566 = vmatprep.mubr.f32.mxu0 0.0
      %567 = vmatmul.mubr.f32.gmra.mrb[0].mxu0 %v370
      %v568 = vpop.f32.mrb[0].mxu0
      %v569 = vadd.f32 0.0, %v568
      %v570 = vpop.f32.mrb[0].mxu0
      %571 = vmatprep.mubr.f32.mxu0 0.0
      %572 = vmatmul.mubr.f32.gmra.mrb[0].mxu0 %v371
      %v573 = vpop.f32.mrb[0].mxu0
      %v574 = vadd.f32 0.0, %v573
      %v575 = vpop.f32.mrb[0].mxu0
      %576 = vmatprep.mubr.f32.mxu0 0.0
      %577 = vmatmul.mubr.f32.gmra.mrb[0].mxu0 %v372
      %v578 = vpop.f32.mrb[0].mxu0
      %v579 = vadd.f32 0.0, %v578
      %v580 = vpop.f32.mrb[0].mxu0
      %581 = vmatprep.mubr.f32.mxu0 0.0
      %582 = vmatmul.mubr.f32.gmra.mrb[0].mxu0 %v373
      %v583 = vpop.f32.mrb[0].mxu0
      %v584 = vadd.f32 0.0, %v583
      %v585 = vpop.f32.mrb[0].mxu0
      %586 = vmatprep.mubr.f32.mxu0 0.0
      %587 = vmatmul.mubr.f32.gmra.mrb[0].mxu0 %v374
      %v588 = vpop.f32.mrb[0].mxu0
      %v589 = vadd.f32 0.0, %v588
      %v590 = vpop.f32.mrb[0].mxu0
      %591 = vmatprep.mubr.f32.mxu0 0.0
      %592 = vmatmul.mubr.f32.gmra.mrb[0].mxu0 %v375
      %v593 = vpop.f32.mrb[0].mxu0
      %v594 = vadd.f32 0.0, %v593
      %v595 = vpop.f32.mrb[0].mxu0
      %596 = vmatprep.mubr.f32.mxu0 0.0
      %597 = vmatmul.mubr.f32.gmra.mrb[0].mxu0 %v376
      %v598 = vpop.f32.mrb[0].mxu0
      %v599 = vadd.f32 0.0, %v598
      %v600 = vpop.f32.mrb[0].mxu0
      %601 = vmatprep.mubr.f32.mxu0 0.0
      %602 = vmatmul.mubr.f32.gmra.mrb[0].mxu0 %v377
      %v603 = vpop.f32.mrb[0].mxu0
      %v604 = vadd.f32 0.0, %v603
      %v605 = vpop.f32.mrb[0].mxu0
      %606 = vmatprep.mubr.f32.mxu0 0.0
      %607 = vmatmul.mubr.f32.gmra.mrb[0].mxu0 %v378
      %v608 = vpop.f32.mrb[0].mxu0
      %v609 = vadd.f32 0.0, %v608
      %v610 = vpop.f32.mrb[0].mxu0
      %611 = vmatprep.mubr.f32.mxu0 0.0
      %612 = vmatmul.mubr.f32.gmra.mrb[0].mxu0 %v379
      %v613 = vpop.f32.mrb[0].mxu0
      %v614 = vadd.f32 0.0, %v613
      %v615 = vpop.f32.mrb[0].mxu0
      %616 = vmatprep.mubr.f32.mxu0 0.0
      %617 = vmatmul.mubr.f32.gmra.mrb[0].mxu0 %v380
      %v618 = vpop.f32.mrb[0].mxu0
      %v619 = vadd.f32 0.0, %v618
      %v620 = vpop.f32.mrb[0].mxu0
      %621 = vdwg.mxu0
      %622 = vst [vmem:[%s233] sm:$0xff] %v464
      %623 = vst [vmem:[%s233 + $0x8] sm:$0xff] %v469
      %624 = vst [vmem:[%s233 + $0x10] sm:$0xff] %v474
      %625 = vst [vmem:[%s233 + $0x18] sm:$0xff] %v479
      %626 = vst [vmem:[%s233 + $0x20] sm:$0xff] %v484
      %627 = vst [vmem:[%s233 + $0x28] sm:$0xff] %v489
      %628 = vst [vmem:[%s233 + $0x30] sm:$0xff] %v494
      %629 = vst [vmem:[%s233 + $0x38] sm:$0xff] %v499
      %630 = vst [vmem:[%s233 + $0x40] sm:$0xff] %v504
      %631 = vst [vmem:[%s233 + $0x48] sm:$0xff] %v509
      %632 = vst [vmem:[%s233 + $0x50] sm:$0xff] %v514
      %633 = vst [vmem:[%s233 + $0x58] sm:$0xff] %v519
      %634 = vst [vmem:[%s233 + $0x60] sm:$0xff] %v524
      %635 = vst [vmem:[%s233 + $0x68] sm:$0xff] %v529
      %636 = vst [vmem:[%s233 + $0x70] sm:$0xff] %v534
      %637 = vst [vmem:[%s233 + $0x78] sm:$0xff] %v539
      %638 = vst [vmem:[%s233 + $0x80] sm:$0xff] %v544
      %639 = vst [vmem:[%s233 + $0x88] sm:$0xff] %v549
      %640 = vst [vmem:[%s233 + $0x90] sm:$0xff] %v554
      %641 = vst [vmem:[%s233 + $0x98] sm:$0xff] %v559
      %642 = vst [vmem:[%s233 + $0xa0] sm:$0xff] %v564
      %643 = vst [vmem:[%s233 + $0xa8] sm:$0xff] %v569
      %644 = vst [vmem:[%s233 + $0xb0] sm:$0xff] %v574
      %645 = vst [vmem:[%s233 + $0xb8] sm:$0xff] %v579
      %646 = vst [vmem:[%s233 + $0xc0] sm:$0xff] %v584
      %647 = vst [vmem:[%s233 + $0xc8] sm:$0xff] %v589
      %648 = vst [vmem:[%s233 + $0xd0] sm:$0xff] %v594
      %649 = vst [vmem:[%s233 + $0xd8] sm:$0xff] %v599
      %650 = vst [vmem:[%s233 + $0xe0] sm:$0xff] %v604
      %651 = vst [vmem:[%s233 + $0xe8] sm:$0xff] %v609
      %652 = vst [vmem:[%s233 + $0xf0] sm:$0xff] %v614
      %653 = vst [vmem:[%s233 + $0xf8] sm:$0xff] %v619
      %v654 = vadd.f32 %v464, %v469
      %v655 = vadd.f32 %v654, %v474
      %v656 = vadd.f32 %v655, %v479
      %v657 = vadd.f32 %v656, %v484
      %v658 = vadd.f32 %v657, %v489
      %v659 = vadd.f32 %v658, %v494
      %v660 = vadd.f32 %v659, %v499
      %v661 = vadd.f32 %v660, %v504
      %v662 = vadd.f32 %v661, %v509
      %v663 = vadd.f32 %v662, %v514
      %v664 = vadd.f32 %v663, %v519
      %v665 = vadd.f32 %v664, %v524
      %v666 = vadd.f32 %v665, %v529
      %v667 = vadd.f32 %v666, %v534
      %v668 = vadd.f32 %v667, %v539
      %v669 = vadd.f32 %v668, %v544
      %v670 = vadd.f32 %v669, %v549
      %v671 = vadd.f32 %v670, %v554
      %v672 = vadd.f32 %v671, %v559
      %v673 = vadd.f32 %v672, %v564
      %v674 = vadd.f32 %v673, %v569
      %v675 = vadd.f32 %v674, %v574
      %v676 = vadd.f32 %v675, %v579
      %v677 = vadd.f32 %v676, %v584
      %v678 = vadd.f32 %v677, %v589
      %v679 = vadd.f32 %v678, %v594
      %v680 = vadd.f32 %v679, %v599
      %v681 = vadd.f32 %v680, %v604
      %v682 = vadd.f32 %v681, %v609
      %v683 = vadd.f32 %v682, %v614
      %v684 = vadd.f32 %v683, %v619
      %v685 = vrot.slane %v684, 4
      %v686 = vadd.f32 %v684, %v685
      %v687 = vrot.slane %v686, 2
      %v688 = vadd.f32 %v686, %v687
      %v689 = vrot.slane %v688, 1
      %v690 = vadd.f32 %v688, %v689
      %v691 = vmul.f32 %v464, %v464
      %v692 = vmul.f32 %v469, %v469
      %v693 = vmul.f32 %v474, %v474
      %v694 = vmul.f32 %v479, %v479
      %v695 = vmul.f32 %v484, %v484
      %v696 = vmul.f32 %v489, %v489
      %v697 = vmul.f32 %v494, %v494
      %v698 = vmul.f32 %v499, %v499
      %v699 = vmul.f32 %v504, %v504
      %v700 = vmul.f32 %v509, %v509
      %v701 = vmul.f32 %v514, %v514
      %v702 = vmul.f32 %v519, %v519
      %v703 = vmul.f32 %v524, %v524
      %v704 = vmul.f32 %v529, %v529
      %v705 = vmul.f32 %v534, %v534
      %v706 = vmul.f32 %v539, %v539
      %v707 = vmul.f32 %v544, %v544
      %v708 = vmul.f32 %v549, %v549
      %v709 = vmul.f32 %v554, %v554
      %v710 = vmul.f32 %v559, %v559
      %v711 = vmul.f32 %v564, %v564
      %v712 = vmul.f32 %v569, %v569
      %v713 = vmul.f32 %v574, %v574
      %v714 = vmul.f32 %v579, %v579
      %v715 = vmul.f32 %v584, %v584
      %v716 = vmul.f32 %v589, %v589
      %v717 = vmul.f32 %v594, %v594
      %v718 = vmul.f32 %v599, %v599
      %v719 = vmul.f32 %v604, %v604
      %v720 = vmul.f32 %v609, %v609
      %v721 = vmul.f32 %v614, %v614
      %v722 = vmul.f32 %v619, %v619
      %v723 = vadd.f32 %v691, %v692
      %v724 = vadd.f32 %v723, %v693
      %v725 = vadd.f32 %v724, %v694
      %v726 = vadd.f32 %v725, %v695
      %v727 = vadd.f32 %v726, %v696
      %v728 = vadd.f32 %v727, %v697
      %v729 = vadd.f32 %v728, %v698
      %v730 = vadd.f32 %v729, %v699
      %v731 = vadd.f32 %v730, %v700
      %v732 = vadd.f32 %v731, %v701
      %v733 = vadd.f32 %v732, %v702
      %v734 = vadd.f32 %v733, %v703
      %v735 = vadd.f32 %v734, %v704
      %v736 = vadd.f32 %v735, %v705
      %v737 = vadd.f32 %v736, %v706
      %v738 = vadd.f32 %v737, %v707
      %v739 = vadd.f32 %v738, %v708
      %v740 = vadd.f32 %v739, %v709
      %v741 = vadd.f32 %v740, %v710
      %v742 = vadd.f32 %v741, %v711
      %v743 = vadd.f32 %v742, %v712
      %v744 = vadd.f32 %v743, %v713
      %v745 = vadd.f32 %v744, %v714
      %v746 = vadd.f32 %v745, %v715
      %v747 = vadd.f32 %v746, %v716
      %v748 = vadd.f32 %v747, %v717
      %v749 = vadd.f32 %v748, %v718
      %v750 = vadd.f32 %v749, %v719
      %v751 = vadd.f32 %v750, %v720
      %v752 = vadd.f32 %v751, %v721
      %v753 = vadd.f32 %v752, %v722
      %v754 = vrot.slane %v753, 4
      %v755 = vadd.f32 %v753, %v754
      %v756 = vrot.slane %v755, 2
      %v757 = vadd.f32 %v755, %v756
      %v758 = vrot.slane %v757, 1
      %v759 = vadd.f32 %v757, %v758
      %vm760 = vcmask 1040384
      %v761 = vsel %vm760, %v690, %v759
      %762 = vst [vmem:[%s238] sm:$0x3] %v761
      %s763 = smul.u32 32, %s17
      %p764 = scmp.lt.s32.totalorder %s763, 63
      %s765 = scalar_select %p764, %s763, 63
      %s766 = smul.addr %s765, 8
      %s767 = scalar_lea.vmem %s4, %s766
      %p768 = scmp.lt.s32.totalorder %s17, 1
      %s769 = scalar_select %p768, %s17, 1
      %s770 = smul.addr %s769, 2
      %s771 = scalar_lea.vmem %s5, %s770
      // Predicated region
      $region37: #{inverted_residual.6} parent=35 // pred_check
        %p772 = pneg %p124
      $region38: #{inverted_residual.6} parent=35 // pred_check_branch
        %774 = sbr.rel (%p772) target = $region40
      $region39: #{inverted_residual.6} parent=35 // pred_region
        %s775 = smul.u32 32, %s17
      $region40: #{inverted_residual.6} parent=35 // pred_fallthru
        _
      // Predicated region
      $region41: #{inverted_residual.6} parent=35 // pred_check
        %p776 = pneg %p150
      $region42: #{inverted_residual.6} parent=35 // pred_check_branch
        %778 = sbr.rel (%p776) target = $region44
      $region43: #{inverted_residual.6} parent=35 // pred_region
        _
      $region44: #{inverted_residual.6} parent=35 // pred_fallthru
        _
    $region36: #{inverted_residual.6} parent=5 // pred_fallthru
      _
    %p779 = scmp.le.s32.totalorder 2, %s12
    // Predicated region
    $region45: #{inverted_residual.6} parent=5 // pred_check
      %p780 = pneg %p779
    $region46: #{inverted_residual.6} parent=5 // pred_check_branch
      %782 = sbr.rel (%p780) target = $region48
    $region47: #{inverted_residual.6} parent=5 // pred_region
      %s783 = ssub.s32 %s12, 2
      // Predicated region
      $region49: #{inverted_residual.6} parent=47 // pred_check
        %p784 = pneg %p130
      $region50: #{inverted_residual.6} parent=47 // pred_check_branch
        %786 = sbr.rel (%p784) target = $region52
      $region51: #{inverted_residual.6} parent=47 // pred_region
        %s787 = smul.u32 32, %s18
        %p788 = scmp.lt.s32.totalorder %s787, 63
        %s789 = scalar_select %p788, %s787, 63
        %s790 = smul.addr %s789, 8
        %s791 = scalar_lea.vmem %s4, %s790
      $region52: #{inverted_residual.6} parent=47 // pred_fallthru
        _
      // Predicated region
      $region53: #{inverted_residual.6} parent=47 // pred_check
        %p792 = pneg %p156
      $region54: #{inverted_residual.6} parent=47 // pred_check_branch
        %794 = sbr.rel (%p792) target = $region56
      $region55: #{inverted_residual.6} parent=47 // pred_region
        %p795 = scmp.lt.s32.totalorder %s18, 1
        %s796 = scalar_select %p795, %s18, 1
        %s797 = smul.addr %s796, 2
        %s798 = scalar_lea.vmem %s5, %s797
      $region56: #{inverted_residual.6} parent=47 // pred_fallthru
        _
    $region48: #{inverted_residual.6} parent=5 // pred_fallthru
      _
  $region6: #{inverted_residual.6} parent=0 // loop_footer
    %s16 = sadd.s32 1, %s12
  $region7: #{inverted_residual.6} parent=0 // loop_footer_branch
    %11 = sbr.rel target = $region3
  $region8: #{inverted_residual.6} parent=0 // loop_exit
    _

// kernel: inverted_residual.7
$region0: #{inverted_residual.7}
  #allocation0 [shape = 'u32[]', space=smem, size = 0x4, offset = 0x4, fixed_abs, tag = 'smem constant byte address 0x4 - core index']
  #allocation1 [shape = 'u32[144,128]{1,0:T(1,128)}', space=vmem, size = 0x12000, scoped, tag = 'internal scratch']
  %s0 = inlined_call_operand.vmem [shape: f32[512,128], index: 0, kind: input, shape index: {}]
  %s1 = inlined_call_operand.vmem [shape: f32[1,128], index: 1, kind: input, shape index: {}]
  %s2 = inlined_call_operand.vmem [shape: f32[1,128], index: 2, kind: input, shape index: {}]
  %s3 = inlined_call_operand.vmem [shape: f32[512,128], index: 3, kind: input, shape index: {}]
  %s4 = inlined_call_operand.vmem [shape: f32[512,128], index: 4, kind: output, shape index: {}]
  %s5 = sld [smem:[#allocation0]]
  $region49: #{inverted_residual.7} parent=0
    _
  %s7 = ssub.s32 1, %s5
  %s8 = scalar_select 0, %s7, %s5
  loop: start=0, step=1, limit=4
  $region2: #{inverted_residual.7} parent=0 // loop_pre_header
    _
  $region3: #{inverted_residual.7} parent=0 // loop_header
    %s10 = sphi 0, %s14
    %p11 = scmp.ge.s32.totalorder %s10, 4
    %s20 = sphi 0, %s22
    %s23 = sphi 0, %s20
    %s24 = sphi 0, %s23
    %s40 = sphi 0, %s24
    %s44 = sphi 0, %s44
    %s46 = sphi 0, %s44
    %s47 = sphi 0, %s46
    %s61 = sphi 0, %s47
    %s65 = sphi 0, %s65
    %s67 = sphi 0, %s65
    %s68 = sphi 0, %s67
    %s82 = sphi 0, %s68
    %s88 = sphi 0, %s90
    %s91 = sphi 0, %s88
    %s92 = sphi 0, %s91
    %s108 = sphi 0, %s92
    %s114 = sphi 0, %s116
    %s117 = sphi 0, %s114
    %s118 = sphi 0, %s117
    %s134 = sphi 0, %s118
  $region4: #{inverted_residual.7} parent=0 // loop_header_branch
    %13 = sbr.rel (%p11) target = $region8
  $region5: #{inverted_residual.7} parent=0 // loop_body
    %s15 = ssub.s32 %s10, 1
    %s16 = ssub.s32 %s10, 2
    %s17 = sadd.s32 %s10, 1
    %s18 = ssub.s32 %s10, %s17
    %p19 = scmp.eq.s32.totalorder %s18, 0
    %s21 = sadd.s32 %s20, 1
    %s22 = scalar_select %p19, %s20, %s21
    %p25 = pneg %p19
    %p26 = scmp.eq.s32.totalorder %s10, 1
    %p27 = por %p25, %p26
    %p28 = scmp.ne.s32.totalorder %s20, %s23
    %p29 = scmp.eq.s32.totalorder %s10, 0
    %p30 = por %p28, %p29
    %p31 = scmp.ne.s32.totalorder %s20, %s23
    %p32 = scmp.eq.s32.totalorder %s15, 1
    %p33 = por %p31, %p32
    %p34 = scmp.ne.s32.totalorder %s23, %s24
    %p35 = scmp.eq.s32.totalorder %s15, 0
    %p36 = por %p34, %p35
    %p37 = scmp.ne.s32.totalorder %s23, %s24
    %p38 = scmp.eq.s32.totalorder %s16, 1
    %p39 = por %p37, %p38
    %p41 = scmp.ne.s32.totalorder %s24, %s40
    %p42 = scmp.eq.s32.totalorder %s16, 0
    %p43 = por %p41, %p42
    %s45 = sadd.s32 %s44, 1
    %p48 = scmp.eq.s32.totalorder %s10, 1
    %p49 = scmp.ne.s32.totalorder %s44, %s46
    %p50 = scmp.eq.s32.totalorder %s10, 0
    %p51 = por %p49, %p50
    %p52 = scmp.ne.s32.totalorder %s44, %s46
    %p53 = scmp.eq.s32.totalorder %s15, 1
    %p54 = por %p52, %p53
    %p55 = scmp.ne.s32.totalorder %s46, %s47
    %p56 = scmp.eq.s32.totalorder %s15, 0
    %p57 = por %p55, %p56
    %p58 = scmp.ne.s32.totalorder %s46, %s47
    %p59 = scmp.eq.s32.totalorder %s16, 1
    %p60 = por %p58, %p59
    %p62 = scmp.ne.s32.totalorder %s47, %s61
    %p63 = scmp.eq.s32.totalorder %s16, 0
    %p64 = por %p62, %p63
    %s66 = sadd.s32 %s65, 1
    %p69 = scmp.eq.s32.totalorder %s10, 1
    %p70 = scmp.ne.s32.totalorder %s65, %s67
    %p71 = scmp.eq.s32.totalorder %s10, 0
    %p72 = por %p70, %p71
    %p73 = scmp.ne.s32.totalorder %s65, %s67
    %p74 = scmp.eq.s32.totalorder %s15, 1
    %p75 = por %p73, %p74
    %p76 = scmp.ne.s32.totalorder %s67, %s68
    %p77 = scmp.eq.s32.totalorder %s15, 0
    %p78 = por %p76, %p77
    %p79 = scmp.ne.s32.totalorder %s67, %s68
    %p80 = scmp.eq.s32.totalorder %s16, 1
    %p81 = por %p79, %p80
    %p83 = scmp.ne.s32.totalorder %s68, %s82
    %p84 = scmp.eq.s32.totalorder %s16, 0
    %p85 = por %p83, %p84
    %s86 = ssub.s32 %s10, %s17
    %p87 = scmp.eq.s32.totalorder %s86, 0
    %s89 = sadd.s32 %s88, 1
    %s90 = scalar_select %p87, %s88, %s89
    %p93 = pneg %p87
    %p94 = scmp.eq.s32.totalorder %s10, 1
    %p95 = por %p93, %p94
    %p96 = scmp.ne.s32.totalorder %s88, %s91
    %p97 = scmp.eq.s32.totalorder %s10, 0
    %p98 = por %p96, %p97
    %p99 = scmp.ne.s32.totalorder %s88, %s91
    %p100 = scmp.eq.s32.totalorder %s15, 1
    %p101 = por %p99, %p100
    %p102 = scmp.ne.s32.totalorder %s91, %s92
    %p103 = scmp.eq.s32.totalorder %s15, 0
    %p104 = por %p102, %p103
    %p105 = scmp.ne.s32.totalorder %s91, %s92
    %p106 = scmp.eq.s32.totalorder %s16, 1
    %p107 = por %p105, %p106
    %p109 = scmp.ne.s32.totalorder %s92, %s108
    %p110 = scmp.eq.s32.totalorder %s16, 0
    %p111 = por %p109, %p110
    %s112 = ssub.s32 %s10, %s17
    %p113 = scmp.eq.s32.totalorder %s112, 0
    %s115 = sadd.s32 %s114, 1
    %s116 = scalar_select %p113, %s114, %s115
    %p119 = pneg %p113
    %p120 = scmp.eq.s32.totalorder %s10, 1
    %p121 = por %p119, %p120
    %p122 = scmp.ne.s32.totalorder %s114, %s117
    %p123 = scmp.eq.s32.totalorder %s10, 0
    %p124 = por %p122, %p123
    %p125 = scmp.ne.s32.totalorder %s114, %s117
    %p126 = scmp.eq.s32.totalorder %s15, 1
    %p127 = por %p125, %p126
    %p128 = scmp.ne.s32.totalorder %s117, %s118
    %p129 = scmp.eq.s32.totalorder %s15, 0
    %p130 = por %p128, %p129
    %p131 = scmp.ne.s32.totalorder %s117, %s118
    %p132 = scmp.eq.s32.totalorder %s16, 1
    %p133 = por %p131, %p132
    %p135 = scmp.ne.s32.totalorder %s118, %s134
    %p136 = scmp.eq.s32.totalorder %s16, 0
    %p137 = por %p135, %p136
    %p138 = scmp.le.s32.totalorder 1, %s10
    %p139 = scmp.lt.s32.totalorder %s10, 3
    %p140 = pnand %p138, %p139
    %p141 = pneg %p140
    // Predicated region
    $region9: #{inverted_residual.7} parent=5 // pred_check
      _
    $region10: #{inverted_residual.7} parent=5 // pred_check_branch
      %143 = sbr.rel (%p140) target = $region12
    $region11: #{inverted_residual.7} parent=5 // pred_region
      %s144 = ssub.s32 %s10, 1
      // Predicated region
      $region13: #{inverted_residual.7} parent=11 // pred_check
        %p145 = pneg %p57
      $region14: #{inverted_residual.7} parent=11 // pred_check_branch
        %147 = sbr.rel (%p145) target = $region16
      $region15: #{inverted_residual.7} parent=11 // pred_region
        _
      $region16: #{inverted_residual.7} parent=11 // pred_fallthru
        _
      // Predicated region
      $region17: #{inverted_residual.7} parent=11 // pred_check
        %p148 = pneg %p78
      $region18: #{inverted_residual.7} parent=11 // pred_check_branch
        %150 = sbr.rel (%p148) target = $region20
      $region19: #{inverted_residual.7} parent=11 // pred_region
        _
      $region20: #{inverted_residual.7} parent=11 // pred_fallthru
        _
    $region12: #{inverted_residual.7} parent=5 // pred_fallthru
      _
    %p151 = scmp.lt.s32.totalorder %s10, 2
    // Predicated region
    $region21: #{inverted_residual.7} parent=5 // pred_check
      %p152 = pneg %p151
    $region22: #{inverted_residual.7} parent=5 // pred_check_branch
      %154 = sbr.rel (%p152) target = $region24
    $region23: #{inverted_residual.7} parent=5 // pred_region
      // Predicated region
      $region25: #{inverted_residual.7} parent=23 // pred_check
        %p155 = pneg %p30
      $region26: #{inverted_residual.7} parent=23 // pred_check_branch
        %157 = sbr.rel (%p155) target = $region28
      $region27: #{inverted_residual.7} parent=23 // pred_region
        %s158 = smul.u32 32, %s10
        %p159 = scmp.lt.s32.totalorder %s158, 63
        %s160 = scalar_select %p159, %s158, 63
        %s161 = smul.addr %s160, 8
        %s162 = scalar_lea.vmem %s0, %s161
        %s163 = smul.u32 32, %s10
      $region28: #{inverted_residual.7} parent=23 // pred_fallthru
        _
      // Predicated region
      $region29: #{inverted_residual.7} parent=23 // pred_check
        %p164 = pneg %p98
      $region30: #{inverted_residual.7} parent=23 // pred_check_branch
        %166 = sbr.rel (%p164) target = $region32
      $region31: #{inverted_residual.7} parent=23 // pred_region
        %s167 = smul.u32 32, %s10
        %p168 = scmp.lt.s32.totalorder %s167, 63
        %s169 = scalar_select %p168, %s167, 63
        %s170 = smul.addr %s169, 8
        %s171 = scalar_lea.vmem %s3, %s170
        %s172 = smul.u32 32, %s10
      $region32: #{inverted_residual.7} parent=23 // pred_fallthru
        _
    $region24: #{inverted_residual.7} parent=5 // pred_fallthru
      _
    %p173 = scmp.le.s32.totalorder 1, %s10
    %p174 = scmp.lt.s32.totalorder %s10, 3
    %p175 = pnand %p173, %p174
    %p176 = pneg %p175
    // Predicated region
    $region33: #{inverted_residual.7} parent=5 // pred_check
      _
    $region34: #{inverted_residual.7} parent=5 // pred_check_branch
      %178 = sbr.rel (%p175) target = $region36
    $region35: #{inverted_residual.7} parent=5 // pred_region
      %s179 = ssub.s32 %s10, 1
      %s180 = smul.u32 32, %s15
      %p181 = scmp.lt.s32.totalorder %s180, 63
      %s182 = scalar_select %p181, %s180, 63
      %s183 = smul.addr %s182, 8
      %s184 = scalar_lea.vmem %s0, %s183
      %p185 = pneg %p36
      %p186 = pneg %p33
      %p187 = pneg %p57
      %p188 = pneg %p54
      %p189 = pneg %p78
      %p190 = pneg %p75
      %s191 = smul.u32 32, %s15
      %p192 = scmp.lt.s32.totalorder %s191, 63
      %s193 = scalar_select %p192, %s191, 63
      %s194 = smul.addr %s193, 8
      %s195 = scalar_lea.vmem %s3, %s194
      %p196 = pneg %p104
      %p197 = pneg %p101
      %p198 = pneg %p130
      %p199 = pneg %p127
      %s200 = smul.u32 32, %s15
      %p201 = scmp.lt.s32.totalorder %s200, 63
      %s202 = scalar_select %p201, %s200, 63
      %s203 = smul.addr %s202, 8
      %s204 = scalar_lea.vmem %s4, %s203
      %s205 = smul.u32 32, %s15
      %p206 = scmp.lt.s32.totalorder %s205, 63
      %s207 = scalar_select %p206, %s205, 63
      %s208 = smul.addr %s207, 8
      %s209 = scalar_lea.vmem %s0, %s208
      %s210 = smul.u32 32, %s15
      %s211 = smul.u32 32, %s15
      %p212 = scmp.lt.s32.totalorder %s211, 63
      %s213 = scalar_select %p212, %s211, 63
      %s214 = smul.addr %s213, 8
      %s215 = scalar_lea.vmem %s3, %s214
      %s216 = smul.u32 32, %s15
      %s217 = smul.u32 32, %s15
      %p218 = scmp.lt.s32.totalorder %s217, 63
      %s219 = scalar_select %p218, %s217, 63
      %s220 = smul.addr %s219, 8
      %s221 = scalar_lea.vmem %s4, %s220
      %s222 = smul.u32 32, %s15
      %v223 = vld [vmem:[%s209] sm:$0xff]
      %v224 = vld [vmem:[%s209 + $0x8] sm:$0xff]
      %v225 = vld [vmem:[%s209 + $0x10] sm:$0xff]
      %v226 = vld [vmem:[%s209 + $0x18] sm:$0xff]
      %v227 = vld [vmem:[%s209 + $0x20] sm:$0xff]
      %v228 = vld [vmem:[%s209 + $0x28] sm:$0xff]
      %v229 = vld [vmem:[%s209 + $0x30] sm:$0xff]
      %v230 = vld [vmem:[%s209 + $0x38] sm:$0xff]
      %v231 = vld [vmem:[%s209 + $0x40] sm:$0xff]
      %v232 = vld [vmem:[%s209 + $0x48] sm:$0xff]
      %v233 = vld [vmem:[%s209 + $0x50] sm:$0xff]
      %v234 = vld [vmem:[%s209 + $0x58] sm:$0xff]
      %v235 = vld [vmem:[%s209 + $0x60] sm:$0xff]
      %v236 = vld [vmem:[%s209 + $0x68] sm:$0xff]
      %v237 = vld [vmem:[%s209 + $0x70] sm:$0xff]
      %v238 = vld [vmem:[%s209 + $0x78] sm:$0xff]
      %v239 = vld [vmem:[%s209 + $0x80] sm:$0xff]
      %v240 = vld [vmem:[%s209 + $0x88] sm:$0xff]
      %v241 = vld [vmem:[%s209 + $0x90] sm:$0xff]
      %v242 = vld [vmem:[%s209 + $0x98] sm:$0xff]
      %v243 = vld [vmem:[%s209 + $0xa0] sm:$0xff]
      %v244 = vld [vmem:[%s209 + $0xa8] sm:$0xff]
      %v245 = vld [vmem:[%s209 + $0xb0] sm:$0xff]
      %v246 = vld [vmem:[%s209 + $0xb8] sm:$0xff]
      %v247 = vld [vmem:[%s209 + $0xc0] sm:$0xff]
      %v248 = vld [vmem:[%s209 + $0xc8] sm:$0xff]
      %v249 = vld [vmem:[%s209 + $0xd0] sm:$0xff]
      %v250 = vld [vmem:[%s209 + $0xd8] sm:$0xff]
      %v251 = vld [vmem:[%s209 + $0xe0] sm:$0xff]
      %v252 = vld [vmem:[%s209 + $0xe8] sm:$0xff]
      %v253 = vld [vmem:[%s209 + $0xf0] sm:$0xff]
      %v254 = vld [vmem:[%s209 + $0xf8] sm:$0xff]
      %v255 = vld [vmem:[%s1] sm:$0x1]
      %v257 = vlaneseq
      %v258 = vshrl.u32 %v257, 7
      %v259 = vsub.s32 0, %v258
      %v260 = vrot.slane %v255, %v259
      %v262 = vmul.f32 %v223, %v260
      %v263 = vmul.f32 %v224, %v260
      %v264 = vmul.f32 %v225, %v260
      %v265 = vmul.f32 %v226, %v260
      %v266 = vmul.f32 %v227, %v260
      %v267 = vmul.f32 %v228, %v260
      %v268 = vmul.f32 %v229, %v260
      %v269 = vmul.f32 %v230, %v260
      %v270 = vmul.f32 %v231, %v260
      %v271 = vmul.f32 %v232, %v260
      %v272 = vmul.f32 %v233, %v260
      %v273 = vmul.f32 %v234, %v260
      %v274 = vmul.f32 %v235, %v260
      %v275 = vmul.f32 %v236, %v260
      %v276 = vmul.f32 %v237, %v260
      %v277 = vmul.f32 %v238, %v260
      %v278 = vmul.f32 %v239, %v260
      %v279 = vmul.f32 %v240, %v260
      %v280 = vmul.f32 %v241, %v260
      %v281 = vmul.f32 %v242, %v260
      %v282 = vmul.f32 %v243, %v260
      %v283 = vmul.f32 %v244, %v260
      %v284 = vmul.f32 %v245, %v260
      %v285 = vmul.f32 %v246, %v260
      %v286 = vmul.f32 %v247, %v260
      %v287 = vmul.f32 %v248, %v260
      %v288 = vmul.f32 %v249, %v260
      %v289 = vmul.f32 %v250, %v260
      %v290 = vmul.f32 %v251, %v260
      %v291 = vmul.f32 %v252, %v260
      %v292 = vmul.f32 %v253, %v260
      %v293 = vmul.f32 %v254, %v260
      %v294 = vld [vmem:[%s2] sm:$0x1]
      %v296 = vlaneseq
      %v297 = vshrl.u32 %v296, 7
      %v298 = vsub.s32 0, %v297
      %v299 = vrot.slane %v294, %v298
      %v301 = vadd.f32 %v262, %v299
      %v302 = vadd.f32 %v263, %v299
      %v303 = vadd.f32 %v264, %v299
      %v304 = vadd.f32 %v265, %v299
      %v305 = vadd.f32 %v266, %v299
      %v306 = vadd.f32 %v267, %v299
      %v307 = vadd.f32 %v268, %v299
      %v308 = vadd.f32 %v269, %v299
      %v309 = vadd.f32 %v270, %v299
      %v310 = vadd.f32 %v271, %v299
      %v311 = vadd.f32 %v272, %v299
      %v312 = vadd.f32 %v273, %v299
      %v313 = vadd.f32 %v274, %v299
      %v314 = vadd.f32 %v275, %v299
      %v315 = vadd.f32 %v276, %v299
      %v316 = vadd.f32 %v277, %v299
      %v317 = vadd.f32 %v278, %v299
      %v318 = vadd.f32 %v279, %v299
      %v319 = vadd.f32 %v280, %v299
      %v320 = vadd.f32 %v281, %v299
      %v321 = vadd.f32 %v282, %v299
      %v322 = vadd.f32 %v283, %v299
      %v323 = vadd.f32 %v284, %v299
      %v324 = vadd.f32 %v285, %v299
      %v325 = vadd.f32 %v286, %v299
      %v326 = vadd.f32 %v287, %v299
      %v327 = vadd.f32 %v288, %v299
      %v328 = vadd.f32 %v289, %v299
      %v329 = vadd.f32 %v290, %v299
      %v330 = vadd.f32 %v291, %v299
      %v331 = vadd.f32 %v292, %v299
      %v332 = vadd.f32 %v293, %v299
      %v333 = vld [vmem:[%s215] sm:$0xff]
      %v334 = vld [vmem:[%s215 + $0x8] sm:$0xff]
      %v335 = vld [vmem:[%s215 + $0x10] sm:$0xff]
      %v336 = vld [vmem:[%s215 + $0x18] sm:$0xff]
      %v337 = vld [vmem:[%s215 + $0x20] sm:$0xff]
      %v338 = vld [vmem:[%s215 + $0x28] sm:$0xff]
      %v339 = vld [vmem:[%s215 + $0x30] sm:$0xff]
      %v340 = vld [vmem:[%s215 + $0x38] sm:$0xff]
      %v341 = vld [vmem:[%s215 + $0x40] sm:$0xff]
      %v342 = vld [vmem:[%s215 + $0x48] sm:$0xff]
      %v343 = vld [vmem:[%s215 + $0x50] sm:$0xff]
      %v344 = vld [vmem:[%s215 + $0x58] sm:$0xff]
      %v345 = vld [vmem:[%s215 + $0x60] sm:$0xff]
      %v346 = vld [vmem:[%s215 + $0x68] sm:$0xff]
      %v347 = vld [vmem:[%s215 + $0x70] sm:$0xff]
      %v348 = vld [vmem:[%s215 + $0x78] sm:$0xff]
      %v349 = vld [vmem:[%s215 + $0x80] sm:$0xff]
      %v350 = vld [vmem:[%s215 + $0x88] sm:$0xff]
      %v351 = vld [vmem:[%s215 + $0x90] sm:$0xff]
      %v352 = vld [vmem:[%s215 + $0x98] sm:$0xff]
      %v353 = vld [vmem:[%s215 + $0xa0] sm:$0xff]
      %v354 = vld [vmem:[%s215 + $0xa8] sm:$0xff]
      %v355 = vld [vmem:[%s215 + $0xb0] sm:$0xff]
      %v356 = vld [vmem:[%s215 + $0xb8] sm:$0xff]
      %v357 = vld [vmem:[%s215 + $0xc0] sm:$0xff]
      %v358 = vld [vmem:[%s215 + $0xc8] sm:$0xff]
      %v359 = vld [vmem:[%s215 + $0xd0] sm:$0xff]
      %v360 = vld [vmem:[%s215 + $0xd8] sm:$0xff]
      %v361 = vld [vmem:[%s215 + $0xe0] sm:$0xff]
      %v362 = vld [vmem:[%s215 + $0xe8] sm:$0xff]
      %v363 = vld [vmem:[%s215 + $0xf0] sm:$0xff]
      %v364 = vld [vmem:[%s215 + $0xf8] sm:$0xff]
      %v365 = vadd.f32 %v301, %v333
      %v366 = vadd.f32 %v302, %v334
      %v367 = vadd.f32 %v303, %v335
      %v368 = vadd.f32 %v304, %v336
      %v369 = vadd.f32 %v305, %v337
      %v370 = vadd.f32 %v306, %v338
      %v371 = vadd.f32 %v307, %v339
      %v372 = vadd.f32 %v308, %v340
      %v373 = vadd.f32 %v309, %v341
      %v374 = vadd.f32 %v310, %v342
      %v375 = vadd.f32 %v311, %v343
      %v376 = vadd.f32 %v312, %v344
      %v377 = vadd.f32 %v313, %v345
      %v378 = vadd.f32 %v314, %v346
      %v379 = vadd.f32 %v315, %v347
      %v380 = vadd.f32 %v316, %v348
      %v381 = vadd.f32 %v317, %v349
      %v382 = vadd.f32 %v318, %v350
      %v383 = vadd.f32 %v319, %v351
      %v384 = vadd.f32 %v320, %v352
      %v385 = vadd.f32 %v321, %v353
      %v386 = vadd.f32 %v322, %v354
      %v387 = vadd.f32 %v323, %v355
      %v388 = vadd.f32 %v324, %v356
      %v389 = vadd.f32 %v325, %v357
      %v390 = vadd.f32 %v326, %v358
      %v391 = vadd.f32 %v327, %v359
      %v392 = vadd.f32 %v328, %v360
      %v393 = vadd.f32 %v329, %v361
      %v394 = vadd.f32 %v330, %v362
      %v395 = vadd.f32 %v331, %v363
      %v396 = vadd.f32 %v332, %v364
      %397 = vst [vmem:[%s221] sm:$0xff] %v365
      %398 = vst [vmem:[%s221 + $0x8] sm:$0xff] %v366
      %399 = vst [vmem:[%s221 + $0x10] sm:$0xff] %v367
      %400 = vst [vmem:[%s221 + $0x18] sm:$0xff] %v368
      %401 = vst [vmem:[%s221 + $0x20] sm:$0xff] %v369
      %402 = vst [vmem:[%s221 + $0x28] sm:$0xff] %v370
      %403 = vst [vmem:[%s221 + $0x30] sm:$0xff] %v371
      %404 = vst [vmem:[%s221 + $0x38] sm:$0xff] %v372
      %405 = vst [vmem:[%s221 + $0x40] sm:$0xff] %v373
      %406 = vst [vmem:[%s221 + $0x48] sm:$0xff] %v374
      %407 = vst [vmem:[%s221 + $0x50] sm:$0xff] %v375
      %408 = vst [vmem:[%s221 + $0x58] sm:$0xff] %v376
      %409 = vst [vmem:[%s221 + $0x60] sm:$0xff] %v377
      %410 = vst [vmem:[%s221 + $0x68] sm:$0xff] %v378
      %411 = vst [vmem:[%s221 + $0x70] sm:$0xff] %v379
      %412 = vst [vmem:[%s221 + $0x78] sm:$0xff] %v380
      %413 = vst [vmem:[%s221 + $0x80] sm:$0xff] %v381
      %414 = vst [vmem:[%s221 + $0x88] sm:$0xff] %v382
      %415 = vst [vmem:[%s221 + $0x90] sm:$0xff] %v383
      %416 = vst [vmem:[%s221 + $0x98] sm:$0xff] %v384
      %417 = vst [vmem:[%s221 + $0xa0] sm:$0xff] %v385
      %418 = vst [vmem:[%s221 + $0xa8] sm:$0xff] %v386
      %419 = vst [vmem:[%s221 + $0xb0] sm:$0xff] %v387
      %420 = vst [vmem:[%s221 + $0xb8] sm:$0xff] %v388
      %421 = vst [vmem:[%s221 + $0xc0] sm:$0xff] %v389
      %422 = vst [vmem:[%s221 + $0xc8] sm:$0xff] %v390
      %423 = vst [vmem:[%s221 + $0xd0] sm:$0xff] %v391
      %424 = vst [vmem:[%s221 + $0xd8] sm:$0xff] %v392
      %425 = vst [vmem:[%s221 + $0xe0] sm:$0xff] %v393
      %426 = vst [vmem:[%s221 + $0xe8] sm:$0xff] %v394
      %427 = vst [vmem:[%s221 + $0xf0] sm:$0xff] %v395
      %428 = vst [vmem:[%s221 + $0xf8] sm:$0xff] %v396
      %s429 = smul.u32 32, %s15
      %p430 = scmp.lt.s32.totalorder %s429, 63
      %s431 = scalar_select %p430, %s429, 63
      %s432 = smul.addr %s431, 8
      %s433 = scalar_lea.vmem %s4, %s432
      // Predicated region
      $region37: #{inverted_residual.7} parent=35 // pred_check
        %p434 = pneg %p127
      $region38: #{inverted_residual.7} parent=35 // pred_check_branch
        %436 = sbr.rel (%p434) target = $region40
      $region39: #{inverted_residual.7} parent=35 // pred_region
        %s437 = smul.u32 32, %s15
      $region40: #{inverted_residual.7} parent=35 // pred_fallthru
        _
    $region36: #{inverted_residual.7} parent=5 // pred_fallthru
      _
    %p438 = scmp.le.s32.totalorder 2, %s10
    // Predicated region
    $region41: #{inverted_residual.7} parent=5 // pred_check
      %p439 = pneg %p438
    $region42: #{inverted_residual.7} parent=5 // pred_check_branch
      %441 = sbr.rel (%p439) target = $region44
    $region43: #{inverted_residual.7} parent=5 // pred_region
      %s442 = ssub.s32 %s10, 2
      // Predicated region
      $region45: #{inverted_residual.7} parent=43 // pred_check
        %p443 = pneg %p133
      $region46: #{inverted_residual.7} parent=43 // pred_check_branch
        %445 = sbr.rel (%p443) target = $region48
      $region47: #{inverted_residual.7} parent=43 // pred_region
        %s446 = smul.u32 32, %s16
        %p447 = scmp.lt.s32.totalorder %s446, 63
        %s448 = scalar_select %p447, %s446, 63
        %s449 = smul.addr %s448, 8
        %s450 = scalar_lea.vmem %s4, %s449
      $region48: #{inverted_residual.7} parent=43 // pred_fallthru
        _
    $region44: #{inverted_residual.7} parent=5 // pred_fallthru
      _
  $region6: #{inverted_residual.7} parent=0 // loop_footer
    %s14 = sadd.s32 1, %s10
  $region7: #{inverted_residual.7} parent=0 // loop_footer_branch
    %9 = sbr.rel target = $region3
  $region8: #{inverted_residual.7} parent=0 // loop_exit
    _

// kernel: inverted_residual.5
$region0: #{inverted_residual.5}
  #allocation0 [shape = 'u32[]', space=smem, size = 0x4, offset = 0x4, fixed_abs, tag = 'smem constant byte address 0x4 - core index']
  #allocation1 [shape = 'u32[144,128]{1,0:T(1,128)}', space=vmem, size = 0x12000, scoped, tag = 'internal scratch']
  #allocation2 [shape = 'f32[18,18,128]{2,1,0:T(8,128)}', space=vmem, size = 0x36000, scoped, tag = 'scratch operand']
  %s0 = inlined_call_operand.vmem [shape: f32[2,16,16,128], index: 0, kind: input, shape index: {}]
  %s1 = inlined_call_operand.vmem [shape: f32[1,128], index: 1, kind: input, shape index: {}]
  %s2 = inlined_call_operand.vmem [shape: f32[1,128], index: 2, kind: input, shape index: {}]
  %s3 = inlined_call_operand.vmem [shape: f32[9,1,128], index: 3, kind: input, shape index: {}]
  %s4 = inlined_call_operand.vmem [shape: f32[2,16,16,128], index: 4, kind: output, shape index: {0}]
  %s5 = inlined_call_operand.vmem [shape: f32[2,2,128], index: 5, kind: output, shape index: {1}]
  %6 = xla_tuple %s4, %s5
  %s7 = sld [smem:[#allocation0]]
  $region57: #{inverted_residual.5} parent=0
    _
  %s9 = ssub.s32 1, %s7
  %s10 = scalar_select 0, %s9, %s7
  loop: start=0, step=1, limit=4
  $region2: #{inverted_residual.5} parent=0 // loop_pre_header
    _
  $region3: #{inverted_residual.5} parent=0 // loop_header
    %s12 = sphi 0, %s16
    %p13 = scmp.ge.s32.totalorder %s12, 4
    %s19 = sphi 0, %s31
    %s20 = sphi 0, %s27
    %s21 = sphi 0, %s19
    %s22 = sphi 0, %s20
    %s23 = sphi 0, %s21
    %s24 = sphi 0, %s22
    %s36 = sphi 0, %s38
    %s39 = sphi 0, %s36
    %s40 = sphi 0, %s39
    %s56 = sphi 0, %s40
    %s62 = sphi 0, %s64
    %s65 = sphi 0, %s62
    %s66 = sphi 0, %s65
    %s82 = sphi 0, %s66
    %s88 = sphi 0, %s90
    %s91 = sphi 0, %s88
    %s92 = sphi 0, %s91
    %s108 = sphi 0, %s92
    %s114 = sphi 0, %s116
    %s117 = sphi 0, %s114
    %s118 = sphi 0, %s117
    %s134 = sphi 0, %s118
    %s142 = sphi 0, %s144
    %s145 = sphi 0, %s142
    %s146 = sphi 0, %s145
    %s162 = sphi 0, %s146
    %s170 = sphi 0, %s172
    %s173 = sphi 0, %s170
    %s174 = sphi 0, %s173
    %s190 = sphi 0, %s174
  $region4: #{inverted_residual.5} parent=0 // loop_header_branch
    %15 = sbr.rel (%p13) target = $region8
  $region5: #{inverted_residual.5} parent=0 // loop_body
    %s17 = ssub.s32 %s12, 1
    %s18 = ssub.s32 %s12, 2
    %s25 = sadd.s32 1, %s20
    %p26 = scmp.ge.s32.totalorder %s25, 1
    %s27 = scalar_select %p26, 0, %s25
    %s28 = sadd.s32 1, %s19
    %s29 = scalar_select %p26, %s28, %s19
    %p30 = scmp.ge.s32.totalorder %s29, 2
    %s31 = scalar_select %p30, 0, %s29
    %s32 = ssub.s32 %s19, %s31
    %s33 = ssub.s32 %s20, %s27
    %s34 = sor.u32 %s32, %s33
    %p35 = scmp.eq.s32.totalorder %s34, 0
    %s37 = sadd.s32 %s36, 1
    %s38 = scalar_select %p35, %s36, %s37
    %p41 = pneg %p35
    %p42 = scmp.eq.s32.totalorder %s12, 1
    %p43 = por %p41, %p42
    %p44 = scmp.ne.s32.totalorder %s36, %s39
    %p45 = scmp.eq.s32.totalorder %s12, 0
    %p46 = por %p44, %p45
    %p47 = scmp.ne.s32.totalorder %s36, %s39
    %p48 = scmp.eq.s32.totalorder %s17, 1
    %p49 = por %p47, %p48
    %p50 = scmp.ne.s32.totalorder %s39, %s40
    %p51 = scmp.eq.s32.totalorder %s17, 0
    %p52 = por %p50, %p51
    %p53 = scmp.ne.s32.totalorder %s39, %s40
    %p54 = scmp.eq.s32.totalorder %s18, 1
    %p55 = por %p53, %p54
    %p57 = scmp.ne.s32.totalorder %s40, %s56
    %p58 = scmp.eq.s32.totalorder %s18, 0
    %p59 = por %p57, %p58
    %s60 = ssub.s32 %s20, %s27
    %p61 = scmp.eq.s32.totalorder %s60, 0
    %s63 = sadd.s32 %s62, 1
    %s64 = scalar_select %p61, %s62, %s63
    %p67 = pneg %p61
    %p68 = scmp.eq.s32.totalorder %s12, 1
    %p69 = por %p67, %p68
    %p70 = scmp.ne.s32.totalorder %s62, %s65
    %p71 = scmp.eq.s32.totalorder %s12, 0
    %p72 = por %p70, %p71
    %p73 = scmp.ne.s32.totalorder %s62, %s65
    %p74 = scmp.eq.s32.totalorder %s17, 1
    %p75 = por %p73, %p74
    %p76 = scmp.ne.s32.totalorder %s65, %s66
    %p77 = scmp.eq.s32.totalorder %s17, 0
    %p78 = por %p76, %p77
    %p79 = scmp.ne.s32.totalorder %s65, %s66
    %p80 = scmp.eq.s32.totalorder %s18, 1
    %p81 = por %p79, %p80
    %p83 = scmp.ne.s32.totalorder %s66, %s82
    %p84 = scmp.eq.s32.totalorder %s18, 0
    %p85 = por %p83, %p84
    %s86 = ssub.s32 %s20, %s27
    %p87 = scmp.eq.s32.totalorder %s86, 0
    %s89 = sadd.s32 %s88, 1
    %s90 = scalar_select %p87, %s88, %s89
    %p93 = pneg %p87
    %p94 = scmp.eq.s32.totalorder %s12, 1
    %p95 = por %p93, %p94
    %p96 = scmp.ne.s32.totalorder %s88, %s91
    %p97 = scmp.eq.s32.totalorder %s12, 0
    %p98 = por %p96, %p97
    %p99 = scmp.ne.s32.totalorder %s88, %s91
    %p100 = scmp.eq.s32.totalorder %s17, 1
    %p101 = por %p99, %p100
    %p102 = scmp.ne.s32.totalorder %s91, %s92
    %p103 = scmp.eq.s32.totalorder %s17, 0
    %p104 = por %p102, %p103
    %p105 = scmp.ne.s32.totalorder %s91, %s92
    %p106 = scmp.eq.s32.totalorder %s18, 1
    %p107 = por %p105, %p106
    %p109 = scmp.ne.s32.totalorder %s92, %s108
    %p110 = scmp.eq.s32.totalorder %s18, 0
    %p111 = por %p109, %p110
    %s112 = ssub.s32 %s20, %s27
    %p113 = scmp.eq.s32.totalorder %s112, 0
    %s115 = sadd.s32 %s114, 1
    %s116 = scalar_select %p113, %s114, %s115
    %p119 = pneg %p113
    %p120 = scmp.eq.s32.totalorder %s12, 1
    %p121 = por %p119, %p120
    %p122 = scmp.ne.s32.totalorder %s114, %s117
    %p123 = scmp.eq.s32.totalorder %s12, 0
    %p124 = por %p122, %p123
    %p125 = scmp.ne.s32.totalorder %s114, %s117
    %p126 = scmp.eq.s32.totalorder %s17, 1
    %p127 = por %p125, %p126
    %p128 = scmp.ne.s32.totalorder %s117, %s118
    %p129 = scmp.eq.s32.totalorder %s17, 0
    %p130 = por %p128, %p129
    %p131 = scmp.ne.s32.totalorder %s117, %s118
    %p132 = scmp.eq.s32.totalorder %s18, 1
    %p133 = por %p131, %p132
    %p135 = scmp.ne.s32.totalorder %s118, %s134
    %p136 = scmp.eq.s32.totalorder %s18, 0
    %p137 = por %p135, %p136
    %s138 = ssub.s32 %s19, %s31
    %s139 = ssub.s32 %s20, %s27
    %s140 = sor.u32 %s138, %s139
    %p141 = scmp.eq.s32.totalorder %s140, 0
    %s143 = sadd.s32 %s142, 1
    %s144 = scalar_select %p141, %s142, %s143
    %p147 = pneg %p141
    %p148 = scmp.eq.s32.totalorder %s12, 1
    %p149 = por %p147, %p148
    %p150 = scmp.ne.s32.totalorder %s142, %s145
    %p151 = scmp.eq.s32.totalorder %s12, 0
    %p152 = por %p150, %p151
    %p153 = scmp.ne.s32.totalorder %s142, %s145
    %p154 = scmp.eq.s32.totalorder %s17, 1
    %p155 = por %p153, %p154
    %p156 = scmp.ne.s32.totalorder %s145, %s146
    %p157 = scmp.eq.s32.totalorder %s17, 0
    %p158 = por %p156, %p157
    %p159 = scmp.ne.s32.totalorder %s145, %s146
    %p160 = scmp.eq.s32.totalorder %s18, 1
    %p161 = por %p159, %p160
    %p163 = scmp.ne.s32.totalorder %s146, %s162
    %p164 = scmp.eq.s32.totalorder %s18, 0
    %p165 = por %p163, %p164
    %s166 = ssub.s32 %s19, %s31
    %s167 = ssub.s32 %s20, %s27
    %s168 = sor.u32 %s166, %s167
    %p169 = scmp.eq.s32.totalorder %s168, 0
    %s171 = sadd.s32 %s170, 1
    %s172 = scalar_select %p169, %s170, %s171
    %p175 = pneg %p169
    %p176 = scmp.eq.s32.totalorder %s12, 1
    %p177 = por %p175, %p176
    %p178 = scmp.ne.s32.totalorder %s170, %s173
    %p179 = scmp.eq.s32.totalorder %s12, 0
    %p180 = por %p178, %p179
    %p181 = scmp.ne.s32.totalorder %s170, %s173
    %p182 = scmp.eq.s32.totalorder %s17, 1
    %p183 = por %p181, %p182
    %p184 = scmp.ne.s32.totalorder %s173, %s174
    %p185 = scmp.eq.s32.totalorder %s17, 0
    %p186 = por %p184, %p185
    %p187 = scmp.ne.s32.totalorder %s173, %s174
    %p188 = scmp.eq.s32.totalorder %s18, 1
    %p189 = por %p187, %p188
    %p191 = scmp.ne.s32.totalorder %s174, %s190
    %p192 = scmp.eq.s32.totalorder %s18, 0
    %p193 = por %p191, %p192
    %p194 = scmp.le.s32.totalorder 1, %s12
    %p195 = scmp.lt.s32.totalorder %s12, 3
    %p196 = pnand %p194, %p195
    %p197 = pneg %p196
    // Predicated region
    $region9: #{inverted_residual.5} parent=5 // pred_check
      _
    $region10: #{inverted_residual.5} parent=5 // pred_check_branch
      %199 = sbr.rel (%p196) target = $region12
    $region11: #{inverted_residual.5} parent=5 // pred_region
      %s200 = ssub.s32 %s12, 1
      // Predicated region
      $region13: #{inverted_residual.5} parent=11 // pred_check
        %p201 = pneg %p78
      $region14: #{inverted_residual.5} parent=11 // pred_check_branch
        %203 = sbr.rel (%p201) target = $region16
      $region15: #{inverted_residual.5} parent=11 // pred_region
        %p204 = scmp.lt.s32.totalorder %s22, 0
        %s205 = scalar_select %p204, %s22, 0
        %s206 = scalar_lea.vmem %s1, %s205
      $region16: #{inverted_residual.5} parent=11 // pred_fallthru
        _
      // Predicated region
      $region17: #{inverted_residual.5} parent=11 // pred_check
        %p207 = pneg %p104
      $region18: #{inverted_residual.5} parent=11 // pred_check_branch
        %209 = sbr.rel (%p207) target = $region20
      $region19: #{inverted_residual.5} parent=11 // pred_region
        %p210 = scmp.lt.s32.totalorder %s22, 0
        %s211 = scalar_select %p210, %s22, 0
        %s212 = scalar_lea.vmem %s2, %s211
      $region20: #{inverted_residual.5} parent=11 // pred_fallthru
        _
      // Predicated region
      $region21: #{inverted_residual.5} parent=11 // pred_check
        %p213 = pneg %p130
      $region22: #{inverted_residual.5} parent=11 // pred_check_branch
        %215 = sbr.rel (%p213) target = $region24
      $region23: #{inverted_residual.5} parent=11 // pred_region
        %p216 = scmp.lt.s32.totalorder %s22, 0
        %s217 = scalar_select %p216, %s22, 0
        %s218 = scalar_lea.vmem %s3, %s217
      $region24: #{inverted_residual.5} parent=11 // pred_fallthru
        _
    $region12: #{inverted_residual.5} parent=5 // pred_fallthru
      _
    %p219 = scmp.lt.s32.totalorder %s12, 2
    // Predicated region
    $region25: #{inverted_residual.5} parent=5 // pred_check
      %p220 = pneg %p219
    $region26: #{inverted_residual.5} parent=5 // pred_check_branch
      %222 = sbr.rel (%p220) target = $region28
    $region27: #{inverted_residual.5} parent=5 // pred_region
      // Predicated region
      $region29: #{inverted_residual.5} parent=27 // pred_check
        %p223 = pneg %p46
      $region30: #{inverted_residual.5} parent=27 // pred_check_branch
        %225 = sbr.rel (%p223) target = $region32
      $region31: #{inverted_residual.5} parent=27 // pred_region
        %p226 = scmp.lt.s32.totalorder %s19, 1
        %s227 = scalar_select %p226, %s19, 1
        %p228 = scmp.lt.s32.totalorder %s20, 0
        %s229 = scalar_select %p228, %s20, 0
        %s230 = smul.addr %s227, 32
        %s231 = sadd.s32 %s229, %s230
        %s232 = smul.addr %s231, 8
        %s233 = scalar_lea.vmem %s0, %s232
      $region32: #{inverted_residual.5} parent=27 // pred_fallthru
        _
    $region28: #{inverted_residual.5} parent=5 // pred_fallthru
      _
    %p234 = scmp.le.s32.totalorder 1, %s12
    %p235 = scmp.lt.s32.totalorder %s12, 3
    %p236 = pnand %p234, %p235
    %p237 = pneg %p236
    // Predicated region
    $region33: #{inverted_residual.5} parent=5 // pred_check
      _
    $region34: #{inverted_residual.5} parent=5 // pred_check_branch
      %239 = sbr.rel (%p236) target = $region36
    $region35: #{inverted_residual.5} parent=5 // pred_region
      %s240 = ssub.s32 %s12, 1
      %p241 = scmp.lt.s32.totalorder %s21, 1
      %s242 = scalar_select %p241, %s21, 1
      %p243 = scmp.lt.s32.totalorder %s22, 0
      %s244 = scalar_select %p243, %s22, 0
      %s245 = smul.addr %s242, 32
      %s246 = sadd.s32 %s244, %s245
      %s247 = smul.addr %s246, 8
      %s248 = scalar_lea.vmem %s0, %s247
      %p249 = pneg %p52
      %p250 = pneg %p49
      %p251 = scmp.lt.s32.totalorder %s22, 0
      %s252 = scalar_select %p251, %s22, 0
      %s253 = scalar_lea.vmem %s1, %s252
      %p254 = pneg %p78
      %p255 = pneg %p75
      %p256 = scmp.lt.s32.totalorder %s22, 0
      %s257 = scalar_select %p256, %s22, 0
      %s258 = scalar_lea.vmem %s2, %s257
      %p259 = pneg %p104
      %p260 = pneg %p101
      %p261 = scmp.lt.s32.totalorder %s22, 0
      %s262 = scalar_select %p261, %s22, 0
      %s263 = scalar_lea.vmem %s3, %s262
      %p264 = pneg %p130
      %p265 = pneg %p127
      %p266 = pneg %p158
      %p267 = pneg %p155
      %p268 = scmp.lt.s32.totalorder %s21, 1
      %s269 = scalar_select %p268, %s21, 1
      %p270 = scmp.lt.s32.totalorder %s22, 0
      %s271 = scalar_select %p270, %s22, 0
      %s272 = smul.addr %s269, 32
      %s273 = sadd.s32 %s271, %s272
      %s274 = smul.addr %s273, 8
      %s275 = scalar_lea.vmem %s4, %s274
      %p276 = pneg %p186
      %p277 = pneg %p183
      %p278 = scmp.lt.s32.totalorder %s21, 1
      %s279 = scalar_select %p278, %s21, 1
      %p280 = scmp.lt.s32.totalorder %s22, 0
      %s281 = scalar_select %p280, %s22, 0
      %s282 = sadd.s32 %s281, %s279
      %s283 = smul.addr %s282, 2
      %s284 = scalar_lea.vmem %s5, %s283
      %p285 = scmp.lt.s32.totalorder %s21, 1
      %s286 = scalar_select %p285, %s21, 1
      %p287 = scmp.lt.s32.totalorder %s22, 0
      %s288 = scalar_select %p287, %s22, 0
      %s289 = smul.addr %s286, 32
      %s290 = sadd.s32 %s288, %s289
      %s291 = smul.addr %s290, 8
      %s292 = scalar_lea.vmem %s0, %s291
      %p293 = scmp.lt.s32.totalorder %s22, 0
      %s294 = scalar_select %p293, %s22, 0
      %s295 = scalar_lea.vmem %s1, %s294
      %p296 = scmp.lt.s32.totalorder %s22, 0
      %s297 = scalar_select %p296, %s22, 0
      %s298 = scalar_lea.vmem %s2, %s297
      %p299 = scmp.lt.s32.totalorder %s22, 0
      %s300 = scalar_select %p299, %s22, 0
      %s301 = scalar_lea.vmem %s3, %s300
      %p302 = scmp.lt.s32.totalorder %s21, 1
      %s303 = scalar_select %p302, %s21, 1
      %p304 = scmp.lt.s32.totalorder %s22, 0
      %s305 = scalar_select %p304, %s22, 0
      %s306 = smul.addr %s303, 32
      %s307 = sadd.s32 %s305, %s306
      %s308 = smul.addr %s307, 8
      %s309 = scalar_lea.vmem %s4, %s308
      %p310 = scmp.lt.s32.totalorder %s21, 1
      %s311 = scalar_select %p310, %s21, 1
      %p312 = scmp.lt.s32.totalorder %s22, 0
      %s313 = scalar_select %p312, %s22, 0
      %s314 = sadd.s32 %s313, %s311
      %s315 = smul.addr %s314, 2
      %s316 = scalar_lea.vmem %s5, %s315
      %v317 = vld [vmem:[%s292] sm:$0xff]
      %v318 = vld [vmem:[%s292 + $0x8] sm:$0xff]
      %v319 = vld [vmem:[%s292 + $0x10] sm:$0xff]
      %v320 = vld [vmem:[%s292 + $0x18] sm:$0xff]
      %v321 = vld [vmem:[%s292 + $0x20] sm:$0xff]
      %v322 = vld [vmem:[%s292 + $0x28] sm:$0xff]
      %v323 = vld [vmem:[%s292 + $0x30] sm:$0xff]
      %v324 = vld [vmem:[%s292 + $0x38] sm:$0xff]
      %v325 = vld [vmem:[%s292 + $0x40] sm:$0xff]
      %v326 = vld [vmem:[%s292 + $0x48] sm:$0xff]
      %v327 = vld [vmem:[%s292 + $0x50] sm:$0xff]
      %v328 = vld [vmem:[%s292 + $0x58] sm:$0xff]
      %v329 = vld [vmem:[%s292 + $0x60] sm:$0xff]
      %v330 = vld [vmem:[%s292 + $0x68] sm:$0xff]
      %v331 = vld [vmem:[%s292 + $0x70] sm:$0xff]
      %v332 = vld [vmem:[%s292 + $0x78] sm:$0xff]
      %v333 = vld [vmem:[%s292 + $0x80] sm:$0xff]
      %v334 = vld [vmem:[%s292 + $0x88] sm:$0xff]
      %v335 = vld [vmem:[%s292 + $0x90] sm:$0xff]
      %v336 = vld [vmem:[%s292 + $0x98] sm:$0xff]
      %v337 = vld [vmem:[%s292 + $0xa0] sm:$0xff]
      %v338 = vld [vmem:[%s292 + $0xa8] sm:$0xff]
      %v339 = vld [vmem:[%s292 + $0xb0] sm:$0xff]
      %v340 = vld [vmem:[%s292 + $0xb8] sm:$0xff]
      %v341 = vld [vmem:[%s292 + $0xc0] sm:$0xff]
      %v342 = vld [vmem:[%s292 + $0xc8] sm:$0xff]
      %v343 = vld [vmem:[%s292 + $0xd0] sm:$0xff]
      %v344 = vld [vmem:[%s292 + $0xd8] sm:$0xff]
      %v345 = vld [vmem:[%s292 + $0xe0] sm:$0xff]
      %v346 = vld [vmem:[%s292 + $0xe8] sm:$0xff]
      %v347 = vld [vmem:[%s292 + $0xf0] sm:$0xff]
      %v348 = vld [vmem:[%s292 + $0xf8] sm:$0xff]
      %v349 = vld [vmem:[%s295] sm:$0x1]
      %v351 = vlaneseq
      %v352 = vshrl.u32 %v351, 7
      %v353 = vsub.s32 0, %v352
      %v354 = vrot.slane %v349, %v353
      %v356 = vmul.f32 %v317, %v354
      %v357 = vmul.f32 %v318, %v354
      %v358 = vmul.f32 %v319, %v354
      %v359 = vmul.f32 %v320, %v354
      %v360 = vmul.f32 %v321, %v354
      %v361 = vmul.f32 %v322, %v354
      %v362 = vmul.f32 %v323, %v354
      %v363 = vmul.f32 %v324, %v354
      %v364 = vmul.f32 %v325, %v354
      %v365 = vmul.f32 %v326, %v354
      %v366 = vmul.f32 %v327, %v354
      %v367 = vmul.f32 %v328, %v354
      %v368 = vmul.f32 %v329, %v354
      %v369 = vmul.f32 %v330, %v354
      %v370 = vmul.f32 %v331, %v354
      %v371 = vmul.f32 %v332, %v354
      %v372 = vmul.f32 %v333, %v354
      %v373 = vmul.f32 %v334, %v354
      %v374 = vmul.f32 %v335, %v354
      %v375 = vmul.f32 %v336, %v354
      %v376 = vmul.f32 %v337, %v354
      %v377 = vmul.f32 %v338, %v354
      %v378 = vmul.f32 %v339, %v354
      %v379 = vmul.f32 %v340, %v354
      %v380 = vmul.f32 %v341, %v354
      %v381 = vmul.f32 %v342, %v354
      %v382 = vmul.f32 %v343, %v354
      %v383 = vmul.f32 %v344, %v354
      %v384 = vmul.f32 %v345, %v354
      %v385 = vmul.f32 %v346, %v354
      %v386 = vmul.f32 %v347, %v354
      %v387 = vmul.f32 %v348, %v354
      %v388 = vld [vmem:[%s298] sm:$0x1]
      %v390 = vlaneseq
      %v391 = vshrl.u32 %v390, 7
      %v392 = vsub.s32 0, %v391
      %v393 = vrot.slane %v388, %v392
      %v395 = vadd.f32 %v356, %v393
      %v396 = vadd.f32 %v357, %v393
      %v397 = vadd.f32 %v358, %v393
      %v398 = vadd.f32 %v359, %v393
      %v399 = vadd.f32 %v360, %v393
      %v400 = vadd.f32 %v361, %v393
      %v401 = vadd.f32 %v362, %v393
      %v402 = vadd.f32 %v363, %v393
      %v403 = vadd.f32 %v364, %v393
      %v404 = vadd.f32 %v365, %v393
      %v405 = vadd.f32 %v366, %v393
      %v406 = vadd.f32 %v367, %v393
      %v407 = vadd.f32 %v368, %v393
      %v408 = vadd.f32 %v369, %v393
      %v409 = vadd.f32 %v370, %v393
      %v410 = vadd.f32 %v371, %v393
      %v411 = vadd.f32 %v372, %v393
      %v412 = vadd.f32 %v373, %v393
      %v413 = vadd.f32 %v374, %v393
      %v414 = vadd.f32 %v375, %v393
      %v415 = vadd.f32 %v376, %v393
      %v416 = vadd.f32 %v377, %v393
      %v417 = vadd.f32 %v378, %v393
      %v418 = vadd.f32 %v379, %v393
      %v419 = vadd.f32 %v380, %v393
      %v420 = vadd.f32 %v381, %v393
      %v421 = vadd.f32 %v382, %v393
      %v422 = vadd.f32 %v383, %v393
      %v423 = vadd.f32 %v384, %v393
      %v424 = vadd.f32 %v385, %v393
      %v425 = vadd.f32 %v386, %v393
      %v426 = vadd.f32 %v387, %v393
      %v427 = vmax.f32 %v395, 0.0
      %v428 = vmax.f32 %v396, 0.0
      %v429 = vmax.f32 %v397, 0.0
      %v430 = vmax.f32 %v398, 0.0
      %v431 = vmax.f32 %v399, 0.0
      %v432 = vmax.f32 %v400, 0.0
      %v433 = vmax.f32 %v401, 0.0
      %v434 = vmax.f32 %v402, 0.0
      %v435 = vmax.f32 %v403, 0.0
      %v436 = vmax.f32 %v404, 0.0
      %v437 = vmax.f32 %v405, 0.0
      %v438 = vmax.f32 %v406, 0.0
      %v439 = vmax.f32 %v407, 0.0
      %v440 = vmax.f32 %v408, 0.0
      %v441 = vmax.f32 %v409, 0.0
      %v442 = vmax.f32 %v410, 0.0
      %v443 = vmax.f32 %v411, 0.0
      %v444 = vmax.f32 %v412, 0.0
      %v445 = vmax.f32 %v413, 0.0
      %v446 = vmax.f32 %v414, 0.0
      %v447 = vmax.f32 %v415, 0.0
      %v448 = vmax.f32 %v416, 0.0
      %v449 = vmax.f32 %v417, 0.0
      %v450 = vmax.f32 %v418, 0.0
      %v451 = vmax.f32 %v419, 0.0
      %v452 = vmax.f32 %v420, 0.0
      %v453 = vmax.f32 %v421, 0.0
      %v454 = vmax.f32 %v422, 0.0
      %v455 = vmax.f32 %v423, 0.0
      %v456 = vmax.f32 %v424, 0.0
      %v457 = vmax.f32 %v425, 0.0
      %v458 = vmax.f32 %v426, 0.0
      %459 = vst [vmem:[#allocation2] sm:$0xff] 0.0
      %460 = vst [vmem:[#allocation2 + $0x8] sm:$0xff] 0.0
      %461 = vst [vmem:[#allocation2 + $0x10] sm:$0x3] 0.0
      %462 = vst [vmem:[#allocation2 + $0x18] sm:$0xff] 0.0
      %463 = vst [vmem:[#allocation2 + $0x20] sm:$0xff] 0.0
      %464 = vst [vmem:[#allocation2 + $0x28] sm:$0x3] 0.0
      %465 = vst [vmem:[#allocation2 + $0x30] sm:$0xff] 0.0
      %466 = vst [vmem:[#allocation2 + $0x38] sm:$0xff] 0.0
      %467 = vst [vmem:[#allocation2 + $0x40] sm:$0x3] 0.0
      %468 = vst [vmem:[#allocation2 + $0x48] sm:$0xff] 0.0
      %469 = vst [vmem:[#allocation2 + $0x50] sm:$0xff] 0.0
      %470 = vst [vmem:[#allocation2 + $0x58] sm:$0x3] 0.0
      %471 = vst [vmem:[#allocation2 + $0x60] sm:$0xff] 0.0
      %472 = vst [vmem:[#allocation2 + $0x68] sm:$0xff] 0.0
      %473 = vst [vmem:[#allocation2 + $0x70] sm:$0x3] 0.0
      %474 = vst [vmem:[#allocation2 + $0x78] sm:$0xff] 0.0
      %475 = vst [vmem:[#allocation2 + $0x80] sm:$0xff] 0.0
      %476 = vst [vmem:[#allocation2 + $0x88] sm:$0x3] 0.0
      %477 = vst [vmem:[#allocation2 + $0x90] sm:$0xff] 0.0
      %478 = vst [vmem:[#allocation2 + $0x98] sm:$0xff] 0.0
      %479 = vst [vmem:[#allocation2 + $0xa0] sm:$0x3] 0.0
      %480 = vst [vmem:[#allocation2 + $0xa8] sm:$0xff] 0.0
      %481 = vst [vmem:[#allocation2 + $0xb0] sm:$0xff] 0.0
      %482 = vst [vmem:[#allocation2 + $0xb8] sm:$0x3] 0.0
      %483 = vst [vmem:[#allocation2 + $0xc0] sm:$0xff] 0.0
      %484 = vst [vmem:[#allocation2 + $0xc8] sm:$0xff] 0.0
      %485 = vst [vmem:[#allocation2 + $0xd0] sm:$0x3] 0.0
      %486 = vst [vmem:[#allocation2 + $0xd8] sm:$0xff] 0.0
      %487 = vst [vmem:[#allocation2 + $0xe0] sm:$0xff] 0.0
      %488 = vst [vmem:[#allocation2 + $0xe8] sm:$0x3] 0.0
      %489 = vst [vmem:[#allocation2 + $0xf0] sm:$0xff] 0.0
      %490 = vst [vmem:[#allocation2 + $0xf8] sm:$0xff] 0.0
      %491 = vst [vmem:[#allocation2 + $0x100] sm:$0x3] 0.0
      %492 = vst [vmem:[#allocation2 + $0x108] sm:$0xff] 0.0
      %493 = vst [vmem:[#allocation2 + $0x110] sm:$0xff] 0.0
      %494 = vst [vmem:[#allocation2 + $0x118] sm:$0x3] 0.0
      %495 = vst [vmem:[#allocation2 + $0x120] sm:$0xff] 0.0
      %496 = vst [vmem:[#allocation2 + $0x128] sm:$0xff] 0.0
      %497 = vst [vmem:[#allocation2 + $0x130] sm:$0x3] 0.0
      %498 = vst [vmem:[#allocation2 + $0x138] sm:$0xff] 0.0
      %499 = vst [vmem:[#allocation2 + $0x140] sm:$0xff] 0.0
      %500 = vst [vmem:[#allocation2 + $0x148] sm:$0x3] 0.0
      %501 = vst [vmem:[#allocation2 + $0x150] sm:$0xff] 0.0
      %502 = vst [vmem:[#allocation2 + $0x158] sm:$0xff] 0.0
      %503 = vst [vmem:[#allocation2 + $0x160] sm:$0x3] 0.0
      %504 = vst [vmem:[#allocation2 + $0x168] sm:$0xff] 0.0
      %505 = vst [vmem:[#allocation2 + $0x170] sm:$0xff] 0.0
      %506 = vst [vmem:[#allocation2 + $0x178] sm:$0x3] 0.0
      %507 = vst [vmem:[#allocation2 + $0x180] sm:$0xff] 0.0
      %508 = vst [vmem:[#allocation2 + $0x188] sm:$0xff] 0.0
      %509 = vst [vmem:[#allocation2 + $0x190] sm:$0x3] 0.0
      %510 = vst [vmem:[#allocation2 + $0x198] sm:$0xff] 0.0
      %511 = vst [vmem:[#allocation2 + $0x1a0] sm:$0xff] 0.0
      %512 = vst [vmem:[#allocation2 + $0x1a8] sm:$0x3] 0.0
      %s513 = scalar_lea.vmem [#allocation2], 24
      %514 = vst [vmem:[%s513 + $0x1] sm:$0xff] %v427
      %515 = vst [vmem:[%s513 + $0x9] sm:$0xff] %v428
      %516 = vst [vmem:[%s513 + $0x19] sm:$0xff] %v429
      %517 = vst [vmem:[%s513 + $0x21] sm:$0xff] %v430
      %518 = vst [vmem:[%s513 + $0x31] sm:$0xff] %v431
      %519 = vst [vmem:[%s513 + $0x39] sm:$0xff] %v432
      %520 = vst [vmem:[%s513 + $0x49] sm:$0xff] %v433
      %521 = vst [vmem:[%s513 + $0x51] sm:$0xff] %v434
      %522 = vst [vmem:[%s513 + $0x61] sm:$0xff] %v435
      %523 = vst [vmem:[%s513 + $0x69] sm:$0xff] %v436
      %524 = vst [vmem:[%s513 + $0x79] sm:$0xff] %v437
      %525 = vst [vmem:[%s513 + $0x81] sm:$0xff] %v438
      %526 = vst [vmem:[%s513 + $0x91] sm:$0xff] %v439
      %527 = vst [vmem:[%s513 + $0x99] sm:$0xff] %v440
      %528 = vst [vmem:[%s513 + $0xa9] sm:$0xff] %v441
      %529 = vst [vmem:[%s513 + $0xb1] sm:$0xff] %v442
      %530 = vst [vmem:[%s513 + $0xc1] sm:$0xff] %v443
      %531 = vst [vmem:[%s513 + $0xc9] sm:$0xff] %v444
      %532 = vst [vmem:[%s513 + $0xd9] sm:$0xff] %v445
      %533 = vst [vmem:[%s513 + $0xe1] sm:$0xff] %v446
      %534 = vst [vmem:[%s513 + $0xf1] sm:$0xff] %v447
      %535 = vst [vmem:[%s513 + $0xf9] sm:$0xff] %v448
      %536 = vst [vmem:[%s513 + $0x109] sm:$0xff] %v449
      %537 = vst [vmem:[%s513 + $0x111] sm:$0xff] %v450
      %538 = vst [vmem:[%s513 + $0x121] sm:$0xff] %v451
      %539 = vst [vmem:[%s513 + $0x129] sm:$0xff] %v452
      %540 = vst [vmem:[%s513 + $0x139] sm:$0xff] %v453
      %541 = vst [vmem:[%s513 + $0x141] sm:$0xff] %v454
      %542 = vst [vmem:[%s513 + $0x151] sm:$0xff] %v455
      %543 = vst [vmem:[%s513 + $0x159] sm:$0xff] %v456
      %544 = vst [vmem:[%s513 + $0x169] sm:$0xff] %v457
      %545 = vst [vmem:[%s513 + $0x171] sm:$0xff] %v458
      %v546 = vld [vmem:[#allocation2] sm:$0xff]
      %v547 = vld [vmem:[#allocation2 + $0x8] sm:$0xff]
      %v548 = vld [vmem:[#allocation2 + $0x18] sm:$0xff]
      %v549 = vld [vmem:[#allocation2 + $0x20] sm:$0xff]
      %v550 = vld [vmem:[#allocation2 + $0x30] sm:$0xff]
      %v551 = vld [vmem:[#allocation2 + $0x38] sm:$0xff]
      %v552 = vld [vmem:[#allocation2 + $0x48] sm:$0xff]
      %v553 = vld [vmem:[#allocation2 + $0x50] sm:$0xff]
      %v554 = vld [vmem:[#allocation2 + $0x60] sm:$0xff]
      %v555 = vld [vmem:[#allocation2 + $0x68] sm:$0xff]
      %v556 = vld [vmem:[#allocation2 + $0x78] sm:$0xff]
      %v557 = vld [vmem:[#allocation2 + $0x80] sm:$0xff]
      %v558 = vld [vmem:[#allocation2 + $0x90] sm:$0xff]
      %v559 = vld [vmem:[#allocation2 + $0x98] sm:$0xff]
      %v560 = vld [vmem:[#allocation2 + $0xa8] sm:$0xff]
      %v561 = vld [vmem:[#allocation2 + $0xb0] sm:$0xff]
      %v562 = vld [vmem:[#allocation2 + $0xc0] sm:$0xff]
      %v563 = vld [vmem:[#allocation2 + $0xc8] sm:$0xff]
      %v564 = vld [vmem:[#allocation2 + $0xd8] sm:$0xff]
      %v565 = vld [vmem:[#allocation2 + $0xe0] sm:$0xff]
      %v566 = vld [vmem:[#allocation2 + $0xf0] sm:$0xff]
      %v567 = vld [vmem:[#allocation2 + $0xf8] sm:$0xff]
      %v568 = vld [vmem:[#allocation2 + $0x108] sm:$0xff]
      %v569 = vld [vmem:[#allocation2 + $0x110] sm:$0xff]
      %v570 = vld [vmem:[#allocation2 + $0x120] sm:$0xff]
      %v571 = vld [vmem:[#allocation2 + $0x128] sm:$0xff]
      %v572 = vld [vmem:[#allocation2 + $0x138] sm:$0xff]
      %v573 = vld [vmem:[#allocation2 + $0x140] sm:$0xff]
      %v574 = vld [vmem:[#allocation2 + $0x150] sm:$0xff]
      %v575 = vld [vmem:[#allocation2 + $0x158] sm:$0xff]
      %v576 = vld [vmem:[#allocation2 + $0x168] sm:$0xff]
      %v577 = vld [vmem:[#allocation2 + $0x170] sm:$0xff]
      %v578 = vld [vmem:[%s301] sm:$0x1]
      %v580 = vlaneseq
      %v581 = vshrl.u32 %v580, 7
      %v582 = vsub.s32 0, %v581
      %v583 = vrot.slane %v578, %v582
      %v585 = vmul.f32 %v546, %v583
      %v586 = vmul.f32 %v547, %v583
      %v587 = vmul.f32 %v548, %v583
      %v588 = vmul.f32 %v549, %v583
      %v589 = vmul.f32 %v550, %v583
      %v590 = vmul.f32 %v551, %v583
      %v591 = vmul.f32 %v552, %v583
      %v592 = vmul.f32 %v553, %v583
      %v593 = vmul.f32 %v554, %v583
      %v594 = vmul.f32 %v555, %v583
      %v595 = vmul.f32 %v556, %v583
      %v596 = vmul.f32 %v557, %v583
      %v597 = vmul.f32 %v558, %v583
      %v598 = vmul.f32 %v559, %v583
      %v599 = vmul.f32 %v560, %v583
      %v600 = vmul.f32 %v561, %v583
      %v601 = vmul.f32 %v562, %v583
      %v602 = vmul.f32 %v563, %v583
      %v603 = vmul.f32 %v564, %v583
      %v604 = vmul.f32 %v565, %v583
      %v605 = vmul.f32 %v566, %v583
      %v606 = vmul.f32 %v567, %v583
      %v607 = vmul.f32 %v568, %v583
      %v608 = vmul.f32 %v569, %v583
      %v609 = vmul.f32 %v570, %v583
      %v610 = vmul.f32 %v571, %v583
      %v611 = vmul.f32 %v572, %v583
      %v612 = vmul.f32 %v573, %v583
      %v613 = vmul.f32 %v574, %v583
      %v614 = vmul.f32 %v575, %v583
      %v615 = vmul.f32 %v576, %v583
      %v616 = vmul.f32 %v577, %v583
      %v617 = vadd.f32 %v585, 0.0
      %v618 = vadd.f32 %v586, 0.0
      %v619 = vadd.f32 %v587, 0.0
      %v620 = vadd.f32 %v588, 0.0
      %v621 = vadd.f32 %v589, 0.0
      %v622 = vadd.f32 %v590, 0.0
      %v623 = vadd.f32 %v591, 0.0
      %v624 = vadd.f32 %v592, 0.0
      %v625 = vadd.f32 %v593, 0.0
      %v626 = vadd.f32 %v594, 0.0
      %v627 = vadd.f32 %v595, 0.0
      %v628 = vadd.f32 %v596, 0.0
      %v629 = vadd.f32 %v597, 0.0
      %v630 = vadd.f32 %v598, 0.0
      %v631 = vadd.f32 %v599, 0.0
      %v632 = vadd.f32 %v600, 0.0
      %v633 = vadd.f32 %v601, 0.0
      %v634 = vadd.f32 %v602, 0.0
      %v635 = vadd.f32 %v603, 0.0
      %v636 = vadd.f32 %v604, 0.0
      %v637 = vadd.f32 %v605, 0.0
      %v638 = vadd.f32 %v606, 0.0
      %v639 = vadd.f32 %v607, 0.0
      %v640 = vadd.f32 %v608, 0.0
      %v641 = vadd.f32 %v609, 0.0
      %v642 = vadd.f32 %v610, 0.0
      %v643 = vadd.f32 %v611, 0.0
      %v644 = vadd.f32 %v612, 0.0
      %v645 = vadd.f32 %v613, 0.0
      %v646 = vadd.f32 %v614, 0.0
      %v647 = vadd.f32 %v615, 0.0
      %v648 = vadd.f32 %v616, 0.0
      %v649 = vld [vmem:[#allocation2 + $0x1] sm:$0xff]
      %v650 = vld [vmem:[#allocation2 + $0x9] sm:$0xff]
      %v651 = vld [vmem:[#allocation2 + $0x19] sm:$0xff]
      %v652 = vld [vmem:[#allocation2 + $0x21] sm:$0xff]
      %v653 = vld [vmem:[#allocation2 + $0x31] sm:$0xff]
      %v654 = vld [vmem:[#allocation2 + $0x39] sm:$0xff]
      %v655 = vld [vmem:[#allocation2 + $0x49] sm:$0xff]
      %v656 = vld [vmem:[#allocation2 + $0x51] sm:$0xff]
      %v657 = vld [vmem:[#allocation2 + $0x61] sm:$0xff]
      %v658 = vld [vmem:[#allocation2 + $0x69] sm:$0xff]
      %v659 = vld [vmem:[#allocation2 + $0x79] sm:$0xff]
      %v660 = vld [vmem:[#allocation2 + $0x81] sm:$0xff]
      %v661 = vld [vmem:[#allocation2 + $0x91] sm:$0xff]
      %v662 = vld [vmem:[#allocation2 + $0x99] sm:$0xff]
      %v663 = vld [vmem:[#allocation2 + $0xa9] sm:$0xff]
      %v664 = vld [vmem:[#allocation2 + $0xb1] sm:$0xff]
      %v665 = vld [vmem:[#allocation2 + $0xc1] sm:$0xff]
      %v666 = vld [vmem:[#allocation2 + $0xc9] sm:$0xff]
      %v667 = vld [vmem:[#allocation2 + $0xd9] sm:$0xff]
      %v668 = vld [vmem:[#allocation2 + $0xe1] sm:$0xff]
      %v669 = vld [vmem:[#allocation2 + $0xf1] sm:$0xff]
      %v670 = vld [vmem:[#allocation2 + $0xf9] sm:$0xff]
      %v671 = vld [vmem:[#allocation2 + $0x109] sm:$0xff]
      %v672 = vld [vmem:[#allocation2 + $0x111] sm:$0xff]
      %v673 = vld [vmem:[#allocation2 + $0x121] sm:$0xff]
      %v674 = vld [vmem:[#allocation2 + $0x129] sm:$0xff]
      %v675 = vld [vmem:[#allocation2 + $0x139] sm:$0xff]
      %v676 = vld [vmem:[#allocation2 + $0x141] sm:$0xff]
      %v677 = vld [vmem:[#allocation2 + $0x151] sm:$0xff]
      %v678 = vld [vmem:[#allocation2 + $0x159] sm:$0xff]
      %v679 = vld [vmem:[#allocation2 + $0x169] sm:$0xff]
      %v680 = vld [vmem:[#allocation2 + $0x171] sm:$0xff]
      %s681 = scalar_lea.vmem %s301, 1
      %v682 = vld [vmem:[%s681] sm:$0x1]
      %v684 = vlaneseq
      %v685 = vshrl.u32 %v684, 7
      %v686 = vsub.s32 0, %v685
      %v687 = vrot.slane %v682, %v686
      %v689 = vmul.f32 %v649, %v687
      %v690 = vmul.f32 %v650, %v687
      %v691 = vmul.f32 %v651, %v687
      %v692 = vmul.f32 %v652, %v687
      %v693 = vmul.f32 %v653, %v687
      %v694 = vmul.f32 %v654, %v687
      %v695 = vmul.f32 %v655, %v687
      %v696 = vmul.f32 %v656, %v687
      %v697 = vmul.f32 %v657, %v687
      %v698 = vmul.f32 %v658, %v687
      %v699 = vmul.f32 %v659, %v687
      %v700 = vmul.f32 %v660, %v687
      %v701 = vmul.f32 %v661, %v687
      %v702 = vmul.f32 %v662, %v687
      %v703 = vmul.f32 %v663, %v687
      %v704 = vmul.f32 %v664, %v687
      %v705 = vmul.f32 %v665, %v687
      %v706 = vmul.f32 %v666, %v687
      %v707 = vmul.f32 %v667, %v687
      %v708 = vmul.f32 %v668, %v687
      %v709 = vmul.f32 %v669, %v687
      %v710 = vmul.f32 %v670, %v687
      %v711 = vmul.f32 %v671, %v687
      %v712 = vmul.f32 %v672, %v687
      %v713 = vmul.f32 %v673, %v687
      %v714 = vmul.f32 %v674, %v687
      %v715 = vmul.f32 %v675, %v687
      %v716 = vmul.f32 %v676, %v687
      %v717 = vmul.f32 %v677, %v687
      %v718 = vmul.f32 %v678, %v687
      %v719 = vmul.f32 %v679, %v687
      %v720 = vmul.f32 %v680, %v687
      %v721 = vadd.f32 %v617, %v689
      %v722 = vadd.f32 %v618, %v690
      %v723 = vadd.f32 %v619, %v691
      %v724 = vadd.f32 %v620, %v692
      %v725 = vadd.f32 %v621, %v693
      %v726 = vadd.f32 %v622, %v694
      %v727 = vadd.f32 %v623, %v695
      %v728 = vadd.f32 %v624, %v696
      %v729 = vadd.f32 %v625, %v697
      %v730 = vadd.f32 %v626, %v698
      %v731 = vadd.f32 %v627, %v699
      %v732 = vadd.f32 %v628, %v700
      %v733 = vadd.f32 %v629, %v701
      %v734 = vadd.f32 %v630, %v702
      %v735 = vadd.f32 %v631, %v703
      %v736 = vadd.f32 %v632, %v704
      %v737 = vadd.f32 %v633, %v705
      %v738 = vadd.f32 %v634, %v706
      %v739 = vadd.f32 %v635, %v707
      %v740 = vadd.f32 %v636, %v708
      %v741 = vadd.f32 %v637, %v709
      %v742 = vadd.f32 %v638, %v710
      %v743 = vadd.f32 %v639, %v711
      %v744 = vadd.f32 %v640, %v712
      %v745 = vadd.f32 %v641, %v713
      %v746 = vadd.f32 %v642, %v714
      %v747 = vadd.f32 %v643, %v715
      %v748 = vadd.f32 %v644, %v716
      %v749 = vadd.f32 %v645, %v717
      %v750 = vadd.f32 %v646, %v718
      %v751 = vadd.f32 %v647, %v719
      %v752 = vadd.f32 %v648, %v720
      %v753 = vld [vmem:[#allocation2 + $0x2] sm:$0xff]
      %v754 = vld [vmem:[#allocation2 + $0xa] sm:$0xff]
      %v755 = vld [vmem:[#allocation2 + $0x1a] sm:$0xff]
      %v756 = vld [vmem:[#allocation2 + $0x22] sm:$0xff]
      %v757 = vld [vmem:[#allocation2 + $0x32] sm:$0xff]
      %v758 = vld [vmem:[#allocation2 + $0x3a] sm:$0xff]
      %v759 = vld [vmem:[#allocation2 + $0x4a] sm:$0xff]
      %v760 = vld [vmem:[#allocation2 + $0x52] sm:$0xff]
      %v761 = vld [vmem:[#allocation2 + $0x62] sm:$0xff]
      %v762 = vld [vmem:[#allocation2 + $0x6a] sm:$0xff]
      %v763 = vld [vmem:[#allocation2 + $0x7a] sm:$0xff]
      %v764 = vld [vmem:[#allocation2 + $0x82] sm:$0xff]
      %v765 = vld [vmem:[#allocation2 + $0x92] sm:$0xff]
      %v766 = vld [vmem:[#allocation2 + $0x9a] sm:$0xff]
      %v767 = vld [vmem:[#allocation2 + $0xaa] sm:$0xff]
      %v768 = vld [vmem:[#allocation2 + $0xb2] sm:$0xff]
      %v769 = vld [vmem:[#allocation2 + $0xc2] sm:$0xff]
      %v770 = vld [vmem:[#allocation2 + $0xca] sm:$0xff]
      %v771 = vld [vmem:[#allocation2 + $0xda] sm:$0xff]
      %v772 = vld [vmem:[#allocation2 + $0xe2] sm:$0xff]
      %v773 = vld [vmem:[#allocation2 + $0xf2] sm:$0xff]
      %v774 = vld [vmem:[#allocation2 + $0xfa] sm:$0xff]
      %v775 = vld [vmem:[#allocation2 + $0x10a] sm:$0xff]
      %v776 = vld [vmem:[#allocation2 + $0x112] sm:$0xff]
      %v777 = vld [vmem:[#allocation2 + $0x122] sm:$0xff]
      %v778 = vld [vmem:[#allocation2 + $0x12a] sm:$0xff]
      %v779 = vld [vmem:[#allocation2 + $0x13a] sm:$0xff]
      %v780 = vld [vmem:[#allocation2 + $0x142] sm:$0xff]
      %v781 = vld [vmem:[#allocation2 + $0x152] sm:$0xff]
      %v782 = vld [vmem:[#allocation2 + $0x15a] sm:$0xff]
      %v783 = vld [vmem:[#allocation2 + $0x16a] sm:$0xff]
      %v784 = vld [vmem:[#allocation2 + $0x172] sm:$0xff]
      %s785 = scalar_lea.vmem %s301, 2
      %v786 = vld [vmem:[%s785] sm:$0x1]
      %v788 = vlaneseq
      %v789 = vshrl.u32 %v788, 7
      %v790 = vsub.s32 0, %v789
      %v791 = vrot.slane %v786, %v790
      %v793 = vmul.f32 %v753, %v791
      %v794 = vmul.f32 %v754, %v791
      %v795 = vmul.f32 %v755, %v791
      %v796 = vmul.f32 %v756, %v791
      %v797 = vmul.f32 %v757, %v791
      %v798 = vmul.f32 %v758, %v791
      %v799 = vmul.f32 %v759, %v791
      %v800 = vmul.f32 %v760, %v791
      %v801 = vmul.f32 %v761, %v791
      %v802 = vmul.f32 %v762, %v791
      %v803 = vmul.f32 %v763, %v791
      %v804 = vmul.f32 %v764, %v791
      %v805 = vmul.f32 %v765, %v791
      %v806 = vmul.f32 %v766, %v791
      %v807 = vmul.f32 %v767, %v791
      %v808 = vmul.f32 %v768, %v791
      %v809 = vmul.f32 %v769, %v791
      %v810 = vmul.f32 %v770, %v791
      %v811 = vmul.f32 %v771, %v791
      %v812 = vmul.f32 %v772, %v791
      %v813 = vmul.f32 %v773, %v791
      %v814 = vmul.f32 %v774, %v791
      %v815 = vmul.f32 %v775, %v791
      %v816 = vmul.f32 %v776, %v791
      %v817 = vmul.f32 %v777, %v791
      %v818 = vmul.f32 %v778, %v791
      %v819 = vmul.f32 %v779, %v791
      %v820 = vmul.f32 %v780, %v791
      %v821 = vmul.f32 %v781, %v791
      %v822 = vmul.f32 %v782, %v791
      %v823 = vmul.f32 %v783, %v791
      %v824 = vmul.f32 %v784, %v791
      %v825 = vadd.f32 %v721, %v793
      %v826 = vadd.f32 %v722, %v794
      %v827 = vadd.f32 %v723, %v795
      %v828 = vadd.f32 %v724, %v796
      %v829 = vadd.f32 %v725, %v797
      %v830 = vadd.f32 %v726, %v798
      %v831 = vadd.f32 %v727, %v799
      %v832 = vadd.f32 %v728, %v800
      %v833 = vadd.f32 %v729, %v801
      %v834 = vadd.f32 %v730, %v802
      %v835 = vadd.f32 %v731, %v803
      %v836 = vadd.f32 %v732, %v804
      %v837 = vadd.f32 %v733, %v805
      %v838 = vadd.f32 %v734, %v806
      %v839 = vadd.f32 %v735, %v807
      %v840 = vadd.f32 %v736, %v808
      %v841 = vadd.f32 %v737, %v809
      %v842 = vadd.f32 %v738, %v810
      %v843 = vadd.f32 %v739, %v811
      %v844 = vadd.f32 %v740, %v812
      %v845 = vadd.f32 %v741, %v813
      %v846 = vadd.f32 %v742, %v814
      %v847 = vadd.f32 %v743, %v815
      %v848 = vadd.f32 %v744, %v816
      %v849 = vadd.f32 %v745, %v817
      %v850 = vadd.f32 %v746, %v818
      %v851 = vadd.f32 %v747, %v819
      %v852 = vadd.f32 %v748, %v820
      %v853 = vadd.f32 %v749, %v821
      %v854 = vadd.f32 %v750, %v822
      %v855 = vadd.f32 %v751, %v823
      %v856 = vadd.f32 %v752, %v824
      %v857 = vld [vmem:[%s513] sm:$0xff]
      %v858 = vld [vmem:[%s513 + $0x8] sm:$0xff]
      %v859 = vld [vmem:[%s513 + $0x18] sm:$0xff]
      %v860 = vld [vmem:[%s513 + $0x20] sm:$0xff]
      %v861 = vld [vmem:[%s513 + $0x30] sm:$0xff]
      %v862 = vld [vmem:[%s513 + $0x38] sm:$0xff]
      %v863 = vld [vmem:[%s513 + $0x48] sm:$0xff]
      %v864 = vld [vmem:[%s513 + $0x50] sm:$0xff]
      %v865 = vld [vmem:[%s513 + $0x60] sm:$0xff]
      %v866 = vld [vmem:[%s513 + $0x68] sm:$0xff]
      %v867 = vld [vmem:[%s513 + $0x78] sm:$0xff]
      %v868 = vld [vmem:[%s513 + $0x80] sm:$0xff]
      %v869 = vld [vmem:[%s513 + $0x90] sm:$0xff]
      %v870 = vld [vmem:[%s513 + $0x98] sm:$0xff]
      %v871 = vld [vmem:[%s513 + $0xa8] sm:$0xff]
      %v872 = vld [vmem:[%s513 + $0xb0] sm:$0xff]
      %v873 = vld [vmem:[%s513 + $0xc0] sm:$0xff]
      %v874 = vld [vmem:[%s513 + $0xc8] sm:$0xff]
      %v875 = vld [vmem:[%s513 + $0xd8] sm:$0xff]
      %v876 = vld [vmem:[%s513 + $0xe0] sm:$0xff]
      %v877 = vld [vmem:[%s513 + $0xf0] sm:$0xff]
      %v878 = vld [vmem:[%s513 + $0xf8] sm:$0xff]
      %v879 = vld [vmem:[%s513 + $0x108] sm:$0xff]
      %v880 = vld [vmem:[%s513 + $0x110] sm:$0xff]
      %v881 = vld [vmem:[%s513 + $0x120] sm:$0xff]
      %v882 = vld [vmem:[%s513 + $0x128] sm:$0xff]
      %v883 = vld [vmem:[%s513 + $0x138] sm:$0xff]
      %v884 = vld [vmem:[%s513 + $0x140] sm:$0xff]
      %v885 = vld [vmem:[%s513 + $0x150] sm:$0xff]
      %v886 = vld [vmem:[%s513 + $0x158] sm:$0xff]
      %v887 = vld [vmem:[%s513 + $0x168] sm:$0xff]
      %v888 = vld [vmem:[%s513 + $0x170] sm:$0xff]
      %s889 = scalar_lea.vmem %s301, 3
      %v890 = vld [vmem:[%s889] sm:$0x1]
      %v892 = vlaneseq
      %v893 = vshrl.u32 %v892, 7
      %v894 = vsub.s32 0, %v893
      %v895 = vrot.slane %v890, %v894
      %v897 = vmul.f32 %v857, %v895
      %v898 = vmul.f32 %v858, %v895
      %v899 = vmul.f32 %v859, %v895
      %v900 = vmul.f32 %v860, %v895
      %v901 = vmul.f32 %v861, %v895
      %v902 = vmul.f32 %v862, %v895
      %v903 = vmul.f32 %v863, %v895
      %v904 = vmul.f32 %v864, %v895
      %v905 = vmul.f32 %v865, %v895
      %v906 = vmul.f32 %v866, %v895
      %v907 = vmul.f32 %v867, %v895
      %v908 = vmul.f32 %v868, %v895
      %v909 = vmul.f32 %v869, %v895
      %v910 = vmul.f32 %v870, %v895
      %v911 = vmul.f32 %v871, %v895
      %v912 = vmul.f32 %v872, %v895
      %v913 = vmul.f32 %v873, %v895
      %v914 = vmul.f32 %v874, %v895
      %v915 = vmul.f32 %v875, %v895
      %v916 = vmul.f32 %v876, %v895
      %v917 = vmul.f32 %v877, %v895
      %v918 = vmul.f32 %v878, %v895
      %v919 = vmul.f32 %v879, %v895
      %v920 = vmul.f32 %v880, %v895
      %v921 = vmul.f32 %v881, %v895
      %v922 = vmul.f32 %v882, %v895
      %v923 = vmul.f32 %v883, %v895
      %v924 = vmul.f32 %v884, %v895
      %v925 = vmul.f32 %v885, %v895
      %v926 = vmul.f32 %v886, %v895
      %v927 = vmul.f32 %v887, %v895
      %v928 = vmul.f32 %v888, %v895
      %v929 = vadd.f32 %v825, %v897
      %v930 = vadd.f32 %v826, %v898
      %v931 = vadd.f32 %v827, %v899
      %v932 = vadd.f32 %v828, %v900
      %v933 = vadd.f32 %v829, %v901
      %v934 = vadd.f32 %v830, %v902
      %v935 = vadd.f32 %v831, %v903
      %v936 = vadd.f32 %v832, %v904
      %v937 = vadd.f32 %v833, %v905
      %v938 = vadd.f32 %v834, %v906
      %v939 = vadd.f32 %v835, %v907
      %v940 = vadd.f32 %v836, %v908
      %v941 = vadd.f32 %v837, %v909
      %v942 = vadd.f32 %v838, %v910
      %v943 = vadd.f32 %v839, %v911
      %v944 = vadd.f32 %v840, %v912
      %v945 = vadd.f32 %v841, %v913
      %v946 = vadd.f32 %v842, %v914
      %v947 = vadd.f32 %v843, %v915
      %v948 = vadd.f32 %v844, %v916
      %v949 = vadd.f32 %v845, %v917
      %v950 = vadd.f32 %v846, %v918
      %v951 = vadd.f32 %v847, %v919
      %v952 = vadd.f32 %v848, %v920
      %v953 = vadd.f32 %v849, %v921
      %v954 = vadd.f32 %v850, %v922
      %v955 = vadd.f32 %v851, %v923
      %v956 = vadd.f32 %v852, %v924
      %v957 = vadd.f32 %v853, %v925
      %v958 = vadd.f32 %v854, %v926
      %v959 = vadd.f32 %v855, %v927
      %v960 = vadd.f32 %v856, %v928
      %v961 = vld [vmem:[%s513 + $0x1] sm:$0xff]
      %v962 = vld [vmem:[%s513 + $0x9] sm:$0xff]
      %v963 = vld [vmem:[%s513 + $0x19] sm:$0xff]
      %v964 = vld [vmem:[%s513 + $0x21] sm:$0xff]
      %v965 = vld [vmem:[%s513 + $0x31] sm:$0xff]
      %v966 = vld [vmem:[%s513 + $0x39] sm:$0xff]
      %v967 = vld [vmem:[%s513 + $0x49] sm:$0xff]
      %v968 = vld [vmem:[%s513 + $0x51] sm:$0xff]
      %v969 = vld [vmem:[%s513 + $0x61] sm:$0xff]
      %v970 = vld [vmem:[%s513 + $0x69] sm:$0xff]
      %v971 = vld [vmem:[%s513 + $0x79] sm:$0xff]
      %v972 = vld [vmem:[%s513 + $0x81] sm:$0xff]
      %v973 = vld [vmem:[%s513 + $0x91] sm:$0xff]
      %v974 = vld [vmem:[%s513 + $0x99] sm:$0xff]
      %v975 = vld [vmem:[%s513 + $0xa9] sm:$0xff]
      %v976 = vld [vmem:[%s513 + $0xb1] sm:$0xff]
      %v977 = vld [vmem:[%s513 + $0xc1] sm:$0xff]
      %v978 = vld [vmem:[%s513 + $0xc9] sm:$0xff]
      %v979 = vld [vmem:[%s513 + $0xd9] sm:$0xff]
      %v980 = vld [vmem:[%s513 + $0xe1] sm:$0xff]
      %v981 = vld [vmem:[%s513 + $0xf1] sm:$0xff]
      %v982 = vld [vmem:[%s513 + $0xf9] sm:$0xff]
      %v983 = vld [vmem:[%s513 + $0x109] sm:$0xff]
      %v984 = vld [vmem:[%s513 + $0x111] sm:$0xff]
      %v985 = vld [vmem:[%s513 + $0x121] sm:$0xff]
      %v986 = vld [vmem:[%s513 + $0x129] sm:$0xff]
      %v987 = vld [vmem:[%s513 + $0x139] sm:$0xff]
      %v988 = vld [vmem:[%s513 + $0x141] sm:$0xff]
      %v989 = vld [vmem:[%s513 + $0x151] sm:$0xff]
      %v990 = vld [vmem:[%s513 + $0x159] sm:$0xff]
      %v991 = vld [vmem:[%s513 + $0x169] sm:$0xff]
      %v992 = vld [vmem:[%s513 + $0x171] sm:$0xff]
      %s993 = scalar_lea.vmem %s301, 4
      %v994 = vld [vmem:[%s993] sm:$0x1]
      %v996 = vlaneseq
      %v997 = vshrl.u32 %v996, 7
      %v998 = vsub.s32 0, %v997
      %v999 = vrot.slane %v994, %v998
      %v1001 = vmul.f32 %v961, %v999
      %v1002 = vmul.f32 %v962, %v999
      %v1003 = vmul.f32 %v963, %v999
      %v1004 = vmul.f32 %v964, %v999
      %v1005 = vmul.f32 %v965, %v999
      %v1006 = vmul.f32 %v966, %v999
      %v1007 = vmul.f32 %v967, %v999
      %v1008 = vmul.f32 %v968, %v999
      %v1009 = vmul.f32 %v969, %v999
      %v1010 = vmul.f32 %v970, %v999
      %v1011 = vmul.f32 %v971, %v999
      %v1012 = vmul.f32 %v972, %v999
      %v1013 = vmul.f32 %v973, %v999
      %v1014 = vmul.f32 %v974, %v999
      %v1015 = vmul.f32 %v975, %v999
      %v1016 = vmul.f32 %v976, %v999
      %v1017 = vmul.f32 %v977, %v999
      %v1018 = vmul.f32 %v978, %v999
      %v1019 = vmul.f32 %v979, %v999
      %v1020 = vmul.f32 %v980, %v999
      %v1021 = vmul.f32 %v981, %v999
      %v1022 = vmul.f32 %v982, %v999
      %v1023 = vmul.f32 %v983, %v999
      %v1024 = vmul.f32 %v984, %v999
      %v1025 = vmul.f32 %v985, %v999
      %v1026 = vmul.f32 %v986, %v999
      %v1027 = vmul.f32 %v987, %v999
      %v1028 = vmul.f32 %v988, %v999
      %v1029 = vmul.f32 %v989, %v999
      %v1030 = vmul.f32 %v990, %v999
      %v1031 = vmul.f32 %v991, %v999
      %v1032 = vmul.f32 %v992, %v999
      %v1033 = vadd.f32 %v929, %v1001
      %v1034 = vadd.f32 %v930, %v1002
      %v1035 = vadd.f32 %v931, %v1003
      %v1036 = vadd.f32 %v932, %v1004
      %v1037 = vadd.f32 %v933, %v1005
      %v1038 = vadd.f32 %v934, %v1006
      %v1039 = vadd.f32 %v935, %v1007
      %v1040 = vadd.f32 %v936, %v1008
      %v1041 = vadd.f32 %v937, %v1009
      %v1042 = vadd.f32 %v938, %v1010
      %v1043 = vadd.f32 %v939, %v1011
      %v1044 = vadd.f32 %v940, %v1012
      %v1045 = vadd.f32 %v941, %v1013
      %v1046 = vadd.f32 %v942, %v1014
      %v1047 = vadd.f32 %v943, %v1015
      %v1048 = vadd.f32 %v944, %v1016
      %v1049 = vadd.f32 %v945, %v1017
      %v1050 = vadd.f32 %v946, %v1018
      %v1051 = vadd.f32 %v947, %v1019
      %v1052 = vadd.f32 %v948, %v1020
      %v1053 = vadd.f32 %v949, %v1021
      %v1054 = vadd.f32 %v950, %v1022
      %v1055 = vadd.f32 %v951, %v1023
      %v1056 = vadd.f32 %v952, %v1024
      %v1057 = vadd.f32 %v953, %v1025
      %v1058 = vadd.f32 %v954, %v1026
      %v1059 = vadd.f32 %v955, %v1027
      %v1060 = vadd.f32 %v956, %v1028
      %v1061 = vadd.f32 %v957, %v1029
      %v1062 = vadd.f32 %v958, %v1030
      %v1063 = vadd.f32 %v959, %v1031
      %v1064 = vadd.f32 %v960, %v1032
      %v1065 = vld [vmem:[%s513 + $0x2] sm:$0xff]
      %v1066 = vld [vmem:[%s513 + $0xa] sm:$0xff]
      %v1067 = vld [vmem:[%s513 + $0x1a] sm:$0xff]
      %v1068 = vld [vmem:[%s513 + $0x22] sm:$0xff]
      %v1069 = vld [vmem:[%s513 + $0x32] sm:$0xff]
      %v1070 = vld [vmem:[%s513 + $0x3a] sm:$0xff]
      %v1071 = vld [vmem:[%s513 + $0x4a] sm:$0xff]
      %v1072 = vld [vmem:[%s513 + $0x52] sm:$0xff]
      %v1073 = vld [vmem:[%s513 + $0x62] sm:$0xff]
      %v1074 = vld [vmem:[%s513 + $0x6a] sm:$0xff]
      %v1075 = vld [vmem:[%s513 + $0x7a] sm:$0xff]
      %v1076 = vld [vmem:[%s513 + $0x82] sm:$0xff]
      %v1077 = vld [vmem:[%s513 + $0x92] sm:$0xff]
      %v1078 = vld [vmem:[%s513 + $0x9a] sm:$0xff]
      %v1079 = vld [vmem:[%s513 + $0xaa] sm:$0xff]
      %v1080 = vld [vmem:[%s513 + $0xb2] sm:$0xff]
      %v1081 = vld [vmem:[%s513 + $0xc2] sm:$0xff]
      %v1082 = vld [vmem:[%s513 + $0xca] sm:$0xff]
      %v1083 = vld [vmem:[%s513 + $0xda] sm:$0xff]
      %v1084 = vld [vmem:[%s513 + $0xe2] sm:$0xff]
      %v1085 = vld [vmem:[%s513 + $0xf2] sm:$0xff]
      %v1086 = vld [vmem:[%s513 + $0xfa] sm:$0xff]
      %v1087 = vld [vmem:[%s513 + $0x10a] sm:$0xff]
      %v1088 = vld [vmem:[%s513 + $0x112] sm:$0xff]
      %v1089 = vld [vmem:[%s513 + $0x122] sm:$0xff]
      %v1090 = vld [vmem:[%s513 + $0x12a] sm:$0xff]
      %v1091 = vld [vmem:[%s513 + $0x13a] sm:$0xff]
      %v1092 = vld [vmem:[%s513 + $0x142] sm:$0xff]
      %v1093 = vld [vmem:[%s513 + $0x152] sm:$0xff]
      %v1094 = vld [vmem:[%s513 + $0x15a] sm:$0xff]
      %v1095 = vld [vmem:[%s513 + $0x16a] sm:$0xff]
      %v1096 = vld [vmem:[%s513 + $0x172] sm:$0xff]
      %s1097 = scalar_lea.vmem %s301, 5
      %v1098 = vld [vmem:[%s1097] sm:$0x1]
      %v1100 = vlaneseq
      %v1101 = vshrl.u32 %v1100, 7
      %v1102 = vsub.s32 0, %v1101
      %v1103 = vrot.slane %v1098, %v1102
      %v1105 = vmul.f32 %v1065, %v1103
      %v1106 = vmul.f32 %v1066, %v1103
      %v1107 = vmul.f32 %v1067, %v1103
      %v1108 = vmul.f32 %v1068, %v1103
      %v1109 = vmul.f32 %v1069, %v1103
      %v1110 = vmul.f32 %v1070, %v1103
      %v1111 = vmul.f32 %v1071, %v1103
      %v1112 = vmul.f32 %v1072, %v1103
      %v1113 = vmul.f32 %v1073, %v1103
      %v1114 = vmul.f32 %v1074, %v1103
      %v1115 = vmul.f32 %v1075, %v1103
      %v1116 = vmul.f32 %v1076, %v1103
      %v1117 = vmul.f32 %v1077, %v1103
      %v1118 = vmul.f32 %v1078, %v1103
      %v1119 = vmul.f32 %v1079, %v1103
      %v1120 = vmul.f32 %v1080, %v1103
      %v1121 = vmul.f32 %v1081, %v1103
      %v1122 = vmul.f32 %v1082, %v1103
      %v1123 = vmul.f32 %v1083, %v1103
      %v1124 = vmul.f32 %v1084, %v1103
      %v1125 = vmul.f32 %v1085, %v1103
      %v1126 = vmul.f32 %v1086, %v1103
      %v1127 = vmul.f32 %v1087, %v1103
      %v1128 = vmul.f32 %v1088, %v1103
      %v1129 = vmul.f32 %v1089, %v1103
      %v1130 = vmul.f32 %v1090, %v1103
      %v1131 = vmul.f32 %v1091, %v1103
      %v1132 = vmul.f32 %v1092, %v1103
      %v1133 = vmul.f32 %v1093, %v1103
      %v1134 = vmul.f32 %v1094, %v1103
      %v1135 = vmul.f32 %v1095, %v1103
      %v1136 = vmul.f32 %v1096, %v1103
      %v1137 = vadd.f32 %v1033, %v1105
      %v1138 = vadd.f32 %v1034, %v1106
      %v1139 = vadd.f32 %v1035, %v1107
      %v1140 = vadd.f32 %v1036, %v1108
      %v1141 = vadd.f32 %v1037, %v1109
      %v1142 = vadd.f32 %v1038, %v1110
      %v1143 = vadd.f32 %v1039, %v1111
      %v1144 = vadd.f32 %v1040, %v1112
      %v1145 = vadd.f32 %v1041, %v1113
      %v1146 = vadd.f32 %v1042, %v1114
      %v1147 = vadd.f32 %v1043, %v1115
      %v1148 = vadd.f32 %v1044, %v1116
      %v1149 = vadd.f32 %v1045, %v1117
      %v1150 = vadd.f32 %v1046, %v1118
      %v1151 = vadd.f32 %v1047, %v1119
      %v1152 = vadd.f32 %v1048, %v1120
      %v1153 = vadd.f32 %v1049, %v1121
      %v1154 = vadd.f32 %v1050, %v1122
      %v1155 = vadd.f32 %v1051, %v1123
      %v1156 = vadd.f32 %v1052, %v1124
      %v1157 = vadd.f32 %v1053, %v1125
      %v1158 = vadd.f32 %v1054, %v1126
      %v1159 = vadd.f32 %v1055, %v1127
      %v1160 = vadd.f32 %v1056, %v1128
      %v1161 = vadd.f32 %v1057, %v1129
      %v1162 = vadd.f32 %v1058, %v1130
      %v1163 = vadd.f32 %v1059, %v1131
      %v1164 = vadd.f32 %v1060, %v1132
      %v1165 = vadd.f32 %v1061, %v1133
      %v1166 = vadd.f32 %v1062, %v1134
      %v1167 = vadd.f32 %v1063, %v1135
      %v1168 = vadd.f32 %v1064, %v1136
      %s1169 = scalar_lea.vmem [#allocation2], 48
      %v1170 = vld [vmem:[%s1169] sm:$0xff]
      %v1171 = vld [vmem:[%s1169 + $0x8] sm:$0xff]
      %v1172 = vld [vmem:[%s1169 + $0x18] sm:$0xff]
      %v1173 = vld [vmem:[%s1169 + $0x20] sm:$0xff]
      %v1174 = vld [vmem:[%s1169 + $0x30] sm:$0xff]
      %v1175 = vld [vmem:[%s1169 + $0x38] sm:$0xff]
      %v1176 = vld [vmem:[%s1169 + $0x48] sm:$0xff]
      %v1177 = vld [vmem:[%s1169 + $0x50] sm:$0xff]
      %v1178 = vld [vmem:[%s1169 + $0x60] sm:$0xff]
      %v1179 = vld [vmem:[%s1169 + $0x68] sm:$0xff]
      %v1180 = vld [vmem:[%s1169 + $0x78] sm:$0xff]
      %v1181 = vld [vmem:[%s1169 + $0x80] sm:$0xff]
      %v1182 = vld [vmem:[%s1169 + $0x90] sm:$0xff]
      %v1183 = vld [vmem:[%s1169 + $0x98] sm:$0xff]
      %v1184 = vld [vmem:[%s1169 + $0xa8] sm:$0xff]
      %v1185 = vld [vmem:[%s1169 + $0xb0] sm:$0xff]
      %v1186 = vld [vmem:[%s1169 + $0xc0] sm:$0xff]
      %v1187 = vld [vmem:[%s1169 + $0xc8] sm:$0xff]
      %v1188 = vld [vmem:[%s1169 + $0xd8] sm:$0xff]
      %v1189 = vld [vmem:[%s1169 + $0xe0] sm:$0xff]
      %v1190 = vld [vmem:[%s1169 + $0xf0] sm:$0xff]
      %v1191 = vld [vmem:[%s1169 + $0xf8] sm:$0xff]
      %v1192 = vld [vmem:[%s1169 + $0x108] sm:$0xff]
      %v1193 = vld [vmem:[%s1169 + $0x110] sm:$0xff]
      %v1194 = vld [vmem:[%s1169 + $0x120] sm:$0xff]
      %v1195 = vld [vmem:[%s1169 + $0x128] sm:$0xff]
      %v1196 = vld [vmem:[%s1169 + $0x138] sm:$0xff]
      %v1197 = vld [vmem:[%s1169 + $0x140] sm:$0xff]
      %v1198 = vld [vmem:[%s1169 + $0x150] sm:$0xff]
      %v1199 = vld [vmem:[%s1169 + $0x158] sm:$0xff]
      %v1200 = vld [vmem:[%s1169 + $0x168] sm:$0xff]
      %v1201 = vld [vmem:[%s1169 + $0x170] sm:$0xff]
      %s1202 = scalar_lea.vmem %s301, 6
      %v1203 = vld [vmem:[%s1202] sm:$0x1]
      %v1205 = vlaneseq
      %v1206 = vshrl.u32 %v1205, 7
      %v1207 = vsub.s32 0, %v1206
      %v1208 = vrot.slane %v1203, %v1207
      %v1210 = vmul.f32 %v1170, %v1208
      %v1211 = vmul.f32 %v1171, %v1208
      %v1212 = vmul.f32 %v1172, %v1208
      %v1213 = vmul.f32 %v1173, %v1208
      %v1214 = vmul.f32 %v1174, %v1208
      %v1215 = vmul.f32 %v1175, %v1208
      %v1216 = vmul.f32 %v1176, %v1208
      %v1217 = vmul.f32 %v1177, %v1208
      %v1218 = vmul.f32 %v1178, %v1208
      %v1219 = vmul.f32 %v1179, %v1208
      %v1220 = vmul.f32 %v1180, %v1208
      %v1221 = vmul.f32 %v1181, %v1208
      %v1222 = vmul.f32 %v1182, %v1208
      %v1223 = vmul.f32 %v1183, %v1208
      %v1224 = vmul.f32 %v1184, %v1208
      %v1225 = vmul.f32 %v1185, %v1208
      %v1226 = vmul.f32 %v1186, %v1208
      %v1227 = vmul.f32 %v1187, %v1208
      %v1228 = vmul.f32 %v1188, %v1208
      %v1229 = vmul.f32 %v1189, %v1208
      %v1230 = vmul.f32 %v1190, %v1208
      %v1231 = vmul.f32 %v1191, %v1208
      %v1232 = vmul.f32 %v1192, %v1208
      %v1233 = vmul.f32 %v1193, %v1208
      %v1234 = vmul.f32 %v1194, %v1208
      %v1235 = vmul.f32 %v1195, %v1208
      %v1236 = vmul.f32 %v1196, %v1208
      %v1237 = vmul.f32 %v1197, %v1208
      %v1238 = vmul.f32 %v1198, %v1208
      %v1239 = vmul.f32 %v1199, %v1208
      %v1240 = vmul.f32 %v1200, %v1208
      %v1241 = vmul.f32 %v1201, %v1208
      %v1242 = vadd.f32 %v1137, %v1210
      %v1243 = vadd.f32 %v1138, %v1211
      %v1244 = vadd.f32 %v1139, %v1212
      %v1245 = vadd.f32 %v1140, %v1213
      %v1246 = vadd.f32 %v1141, %v1214
      %v1247 = vadd.f32 %v1142, %v1215
      %v1248 = vadd.f32 %v1143, %v1216
      %v1249 = vadd.f32 %v1144, %v1217
      %v1250 = vadd.f32 %v1145, %v1218
      %v1251 = vadd.f32 %v1146, %v1219
      %v1252 = vadd.f32 %v1147, %v1220
      %v1253 = vadd.f32 %v1148, %v1221
      %v1254 = vadd.f32 %v1149, %v1222
      %v1255 = vadd.f32 %v1150, %v1223
      %v1256 = vadd.f32 %v1151, %v1224
      %v1257 = vadd.f32 %v1152, %v1225
      %v1258 = vadd.f32 %v1153, %v1226
      %v1259 = vadd.f32 %v1154, %v1227
      %v1260 = vadd.f32 %v1155, %v1228
      %v1261 = vadd.f32 %v1156, %v1229
      %v1262 = vadd.f32 %v1157, %v1230
      %v1263 = vadd.f32 %v1158, %v1231
      %v1264 = vadd.f32 %v1159, %v1232
      %v1265 = vadd.f32 %v1160, %v1233
      %v1266 = vadd.f32 %v1161, %v1234
      %v1267 = vadd.f32 %v1162, %v1235
      %v1268 = vadd.f32 %v1163, %v1236
      %v1269 = vadd.f32 %v1164, %v1237
      %v1270 = vadd.f32 %v1165, %v1238
      %v1271 = vadd.f32 %v1166, %v1239
      %v1272 = vadd.f32 %v1167, %v1240
      %v1273 = vadd.f32 %v1168, %v1241
      %v1274 = vld [vmem:[%s1169 + $0x1] sm:$0xff]
      %v1275 = vld [vmem:[%s1169 + $0x9] sm:$0xff]
      %v1276 = vld [vmem:[%s1169 + $0x19] sm:$0xff]
      %v1277 = vld [vmem:[%s1169 + $0x21] sm:$0xff]
      %v1278 = vld [vmem:[%s1169 + $0x31] sm:$0xff]
      %v1279 = vld [vmem:[%s1169 + $0x39] sm:$0xff]
      %v1280 = vld [vmem:[%s1169 + $0x49] sm:$0xff]
      %v1281 = vld [vmem:[%s1169 + $0x51] sm:$0xff]
      %v1282 = vld [vmem:[%s1169 + $0x61] sm:$0xff]
      %v1283 = vld [vmem:[%s1169 + $0x69] sm:$0xff]
      %v1284 = vld [vmem:[%s1169 + $0x79] sm:$0xff]
      %v1285 = vld [vmem:[%s1169 + $0x81] sm:$0xff]
      %v1286 = vld [vmem:[%s1169 + $0x91] sm:$0xff]
      %v1287 = vld [vmem:[%s1169 + $0x99] sm:$0xff]
      %v1288 = vld [vmem:[%s1169 + $0xa9] sm:$0xff]
      %v1289 = vld [vmem:[%s1169 + $0xb1] sm:$0xff]
      %v1290 = vld [vmem:[%s1169 + $0xc1] sm:$0xff]
      %v1291 = vld [vmem:[%s1169 + $0xc9] sm:$0xff]
      %v1292 = vld [vmem:[%s1169 + $0xd9] sm:$0xff]
      %v1293 = vld [vmem:[%s1169 + $0xe1] sm:$0xff]
      %v1294 = vld [vmem:[%s1169 + $0xf1] sm:$0xff]
      %v1295 = vld [vmem:[%s1169 + $0xf9] sm:$0xff]
      %v1296 = vld [vmem:[%s1169 + $0x109] sm:$0xff]
      %v1297 = vld [vmem:[%s1169 + $0x111] sm:$0xff]
      %v1298 = vld [vmem:[%s1169 + $0x121] sm:$0xff]
      %v1299 = vld [vmem:[%s1169 + $0x129] sm:$0xff]
      %v1300 = vld [vmem:[%s1169 + $0x139] sm:$0xff]
      %v1301 = vld [vmem:[%s1169 + $0x141] sm:$0xff]
      %v1302 = vld [vmem:[%s1169 + $0x151] sm:$0xff]
      %v1303 = vld [vmem:[%s1169 + $0x159] sm:$0xff]
      %v1304 = vld [vmem:[%s1169 + $0x169] sm:$0xff]
      %v1305 = vld [vmem:[%s1169 + $0x171] sm:$0xff]
      %s1306 = scalar_lea.vmem %s301, 7
      %v1307 = vld [vmem:[%s1306] sm:$0x1]
      %v1309 = vlaneseq
      %v1310 = vshrl.u32 %v1309, 7
      %v1311 = vsub.s32 0, %v1310
      %v1312 = vrot.slane %v1307, %v1311
      %v1314 = vmul.f32 %v1274, %v1312
      %v1315 = vmul.f32 %v1275, %v1312
      %v1316 = vmul.f32 %v1276, %v1312
      %v1317 = vmul.f32 %v1277, %v1312
      %v1318 = vmul.f32 %v1278, %v1312
      %v1319 = vmul.f32 %v1279, %v1312
      %v1320 = vmul.f32 %v1280, %v1312
      %v1321 = vmul.f32 %v1281, %v1312
      %v1322 = vmul.f32 %v1282, %v1312
      %v1323 = vmul.f32 %v1283, %v1312
      %v1324 = vmul.f32 %v1284, %v1312
      %v1325 = vmul.f32 %v1285, %v1312
      %v1326 = vmul.f32 %v1286, %v1312
      %v1327 = vmul.f32 %v1287, %v1312
      %v1328 = vmul.f32 %v1288, %v1312
      %v1329 = vmul.f32 %v1289, %v1312
      %v1330 = vmul.f32 %v1290, %v1312
      %v1331 = vmul.f32 %v1291, %v1312
      %v1332 = vmul.f32 %v1292, %v1312
      %v1333 = vmul.f32 %v1293, %v1312
      %v1334 = vmul.f32 %v1294, %v1312
      %v1335 = vmul.f32 %v1295, %v1312
      %v1336 = vmul.f32 %v1296, %v1312
      %v1337 = vmul.f32 %v1297, %v1312
      %v1338 = vmul.f32 %v1298, %v1312
      %v1339 = vmul.f32 %v1299, %v1312
      %v1340 = vmul.f32 %v1300, %v1312
      %v1341 = vmul.f32 %v1301, %v1312
      %v1342 = vmul.f32 %v1302, %v1312
      %v1343 = vmul.f32 %v1303, %v1312
      %v1344 = vmul.f32 %v1304, %v1312
      %v1345 = vmul.f32 %v1305, %v1312
      %v1346 = vadd.f32 %v1242, %v1314
      %v1347 = vadd.f32 %v1243, %v1315
      %v1348 = vadd.f32 %v1244, %v1316
      %v1349 = vadd.f32 %v1245, %v1317
      %v1350 = vadd.f32 %v1246, %v1318
      %v1351 = vadd.f32 %v1247, %v1319
      %v1352 = vadd.f32 %v1248, %v1320
      %v1353 = vadd.f32 %v1249, %v1321
      %v1354 = vadd.f32 %v1250, %v1322
      %v1355 = vadd.f32 %v1251, %v1323
      %v1356 = vadd.f32 %v1252, %v1324
      %v1357 = vadd.f32 %v1253, %v1325
      %v1358 = vadd.f32 %v1254, %v1326
      %v1359 = vadd.f32 %v1255, %v1327
      %v1360 = vadd.f32 %v1256, %v1328
      %v1361 = vadd.f32 %v1257, %v1329
      %v1362 = vadd.f32 %v1258, %v1330
      %v1363 = vadd.f32 %v1259, %v1331
      %v1364 = vadd.f32 %v1260, %v1332
      %v1365 = vadd.f32 %v1261, %v1333
      %v1366 = vadd.f32 %v1262, %v1334
      %v1367 = vadd.f32 %v1263, %v1335
      %v1368 = vadd.f32 %v1264, %v1336
      %v1369 = vadd.f32 %v1265, %v1337
      %v1370 = vadd.f32 %v1266, %v1338
      %v1371 = vadd.f32 %v1267, %v1339
      %v1372 = vadd.f32 %v1268, %v1340
      %v1373 = vadd.f32 %v1269, %v1341
      %v1374 = vadd.f32 %v1270, %v1342
      %v1375 = vadd.f32 %v1271, %v1343
      %v1376 = vadd.f32 %v1272, %v1344
      %v1377 = vadd.f32 %v1273, %v1345
      %v1378 = vld [vmem:[%s1169 + $0x2] sm:$0xff]
      %v1379 = vld [vmem:[%s1169 + $0xa] sm:$0xff]
      %v1380 = vld [vmem:[%s1169 + $0x1a] sm:$0xff]
      %v1381 = vld [vmem:[%s1169 + $0x22] sm:$0xff]
      %v1382 = vld [vmem:[%s1169 + $0x32] sm:$0xff]
      %v1383 = vld [vmem:[%s1169 + $0x3a] sm:$0xff]
      %v1384 = vld [vmem:[%s1169 + $0x4a] sm:$0xff]
      %v1385 = vld [vmem:[%s1169 + $0x52] sm:$0xff]
      %v1386 = vld [vmem:[%s1169 + $0x62] sm:$0xff]
      %v1387 = vld [vmem:[%s1169 + $0x6a] sm:$0xff]
      %v1388 = vld [vmem:[%s1169 + $0x7a] sm:$0xff]
      %v1389 = vld [vmem:[%s1169 + $0x82] sm:$0xff]
      %v1390 = vld [vmem:[%s1169 + $0x92] sm:$0xff]
      %v1391 = vld [vmem:[%s1169 + $0x9a] sm:$0xff]
      %v1392 = vld [vmem:[%s1169 + $0xaa] sm:$0xff]
      %v1393 = vld [vmem:[%s1169 + $0xb2] sm:$0xff]
      %v1394 = vld [vmem:[%s1169 + $0xc2] sm:$0xff]
      %v1395 = vld [vmem:[%s1169 + $0xca] sm:$0xff]
      %v1396 = vld [vmem:[%s1169 + $0xda] sm:$0xff]
      %v1397 = vld [vmem:[%s1169 + $0xe2] sm:$0xff]
      %v1398 = vld [vmem:[%s1169 + $0xf2] sm:$0xff]
      %v1399 = vld [vmem:[%s1169 + $0xfa] sm:$0xff]
      %v1400 = vld [vmem:[%s1169 + $0x10a] sm:$0xff]
      %v1401 = vld [vmem:[%s1169 + $0x112] sm:$0xff]
      %v1402 = vld [vmem:[%s1169 + $0x122] sm:$0xff]
      %v1403 = vld [vmem:[%s1169 + $0x12a] sm:$0xff]
      %v1404 = vld [vmem:[%s1169 + $0x13a] sm:$0xff]
      %v1405 = vld [vmem:[%s1169 + $0x142] sm:$0xff]
      %v1406 = vld [vmem:[%s1169 + $0x152] sm:$0xff]
      %v1407 = vld [vmem:[%s1169 + $0x15a] sm:$0xff]
      %v1408 = vld [vmem:[%s1169 + $0x16a] sm:$0xff]
      %v1409 = vld [vmem:[%s1169 + $0x172] sm:$0xff]
      %s1410 = scalar_lea.vmem %s301, 8
      %v1411 = vld [vmem:[%s1410] sm:$0x1]
      %v1413 = vlaneseq
      %v1414 = vshrl.u32 %v1413, 7
      %v1415 = vsub.s32 0, %v1414
      %v1416 = vrot.slane %v1411, %v1415
      %v1418 = vmul.f32 %v1378, %v1416
      %v1419 = vmul.f32 %v1379, %v1416
      %v1420 = vmul.f32 %v1380, %v1416
      %v1421 = vmul.f32 %v1381, %v1416
      %v1422 = vmul.f32 %v1382, %v1416
      %v1423 = vmul.f32 %v1383, %v1416
      %v1424 = vmul.f32 %v1384, %v1416
      %v1425 = vmul.f32 %v1385, %v1416
      %v1426 = vmul.f32 %v1386, %v1416
      %v1427 = vmul.f32 %v1387, %v1416
      %v1428 = vmul.f32 %v1388, %v1416
      %v1429 = vmul.f32 %v1389, %v1416
      %v1430 = vmul.f32 %v1390, %v1416
      %v1431 = vmul.f32 %v1391, %v1416
      %v1432 = vmul.f32 %v1392, %v1416
      %v1433 = vmul.f32 %v1393, %v1416
      %v1434 = vmul.f32 %v1394, %v1416
      %v1435 = vmul.f32 %v1395, %v1416
      %v1436 = vmul.f32 %v1396, %v1416
      %v1437 = vmul.f32 %v1397, %v1416
      %v1438 = vmul.f32 %v1398, %v1416
      %v1439 = vmul.f32 %v1399, %v1416
      %v1440 = vmul.f32 %v1400, %v1416
      %v1441 = vmul.f32 %v1401, %v1416
      %v1442 = vmul.f32 %v1402, %v1416
      %v1443 = vmul.f32 %v1403, %v1416
      %v1444 = vmul.f32 %v1404, %v1416
      %v1445 = vmul.f32 %v1405, %v1416
      %v1446 = vmul.f32 %v1406, %v1416
      %v1447 = vmul.f32 %v1407, %v1416
      %v1448 = vmul.f32 %v1408, %v1416
      %v1449 = vmul.f32 %v1409, %v1416
      %v1450 = vadd.f32 %v1346, %v1418
      %v1451 = vadd.f32 %v1347, %v1419
      %v1452 = vadd.f32 %v1348, %v1420
      %v1453 = vadd.f32 %v1349, %v1421
      %v1454 = vadd.f32 %v1350, %v1422
      %v1455 = vadd.f32 %v1351, %v1423
      %v1456 = vadd.f32 %v1352, %v1424
      %v1457 = vadd.f32 %v1353, %v1425
      %v1458 = vadd.f32 %v1354, %v1426
      %v1459 = vadd.f32 %v1355, %v1427
      %v1460 = vadd.f32 %v1356, %v1428
      %v1461 = vadd.f32 %v1357, %v1429
      %v1462 = vadd.f32 %v1358, %v1430
      %v1463 = vadd.f32 %v1359, %v1431
      %v1464 = vadd.f32 %v1360, %v1432
      %v1465 = vadd.f32 %v1361, %v1433
      %v1466 = vadd.f32 %v1362, %v1434
      %v1467 = vadd.f32 %v1363, %v1435
      %v1468 = vadd.f32 %v1364, %v1436
      %v1469 = vadd.f32 %v1365, %v1437
      %v1470 = vadd.f32 %v1366, %v1438
      %v1471 = vadd.f32 %v1367, %v1439
      %v1472 = vadd.f32 %v1368, %v1440
      %v1473 = vadd.f32 %v1369, %v1441
      %v1474 = vadd.f32 %v1370, %v1442
      %v1475 = vadd.f32 %v1371, %v1443
      %v1476 = vadd.f32 %v1372, %v1444
      %v1477 = vadd.f32 %v1373, %v1445
      %v1478 = vadd.f32 %v1374, %v1446
      %v1479 = vadd.f32 %v1375, %v1447
      %v1480 = vadd.f32 %v1376, %v1448
      %v1481 = vadd.f32 %v1377, %v1449
      %1482 = vst [vmem:[%s309] sm:$0xff] %v1450
      %1483 = vst [vmem:[%s309 + $0x8] sm:$0xff] %v1451
      %1484 = vst [vmem:[%s309 + $0x10] sm:$0xff] %v1452
      %1485 = vst [vmem:[%s309 + $0x18] sm:$0xff] %v1453
      %1486 = vst [vmem:[%s309 + $0x20] sm:$0xff] %v1454
      %1487 = vst [vmem:[%s309 + $0x28] sm:$0xff] %v1455
      %1488 = vst [vmem:[%s309 + $0x30] sm:$0xff] %v1456
      %1489 = vst [vmem:[%s309 + $0x38] sm:$0xff] %v1457
      %1490 = vst [vmem:[%s309 + $0x40] sm:$0xff] %v1458
      %1491 = vst [vmem:[%s309 + $0x48] sm:$0xff] %v1459
      %1492 = vst [vmem:[%s309 + $0x50] sm:$0xff] %v1460
      %1493 = vst [vmem:[%s309 + $0x58] sm:$0xff] %v1461
      %1494 = vst [vmem:[%s309 + $0x60] sm:$0xff] %v1462
      %1495 = vst [vmem:[%s309 + $0x68] sm:$0xff] %v1463
      %1496 = vst [vmem:[%s309 + $0x70] sm:$0xff] %v1464
      %1497 = vst [vmem:[%s309 + $0x78] sm:$0xff] %v1465
      %1498 = vst [vmem:[%s309 + $0x80] sm:$0xff] %v1466
      %1499 = vst [vmem:[%s309 + $0x88] sm:$0xff] %v1467
      %1500 = vst [vmem:[%s309 + $0x90] sm:$0xff] %v1468
      %1501 = vst [vmem:[%s309 + $0x98] sm:$0xff] %v1469
      %1502 = vst [vmem:[%s309 + $0xa0] sm:$0xff] %v1470
      %1503 = vst [vmem:[%s309 + $0xa8] sm:$0xff] %v1471
      %1504 = vst [vmem:[%s309 + $0xb0] sm:$0xff] %v1472
      %1505 = vst [vmem:[%s309 + $0xb8] sm:$0xff] %v1473
      %1506 = vst [vmem:[%s309 + $0xc0] sm:$0xff] %v1474
      %1507 = vst [vmem:[%s309 + $0xc8] sm:$0xff] %v1475
      %1508 = vst [vmem:[%s309 + $0xd0] sm:$0xff] %v1476
      %1509 = vst [vmem:[%s309 + $0xd8] sm:$0xff] %v1477
      %1510 = vst [vmem:[%s309 + $0xe0] sm:$0xff] %v1478
      %1511 = vst [vmem:[%s309 + $0xe8] sm:$0xff] %v1479
      %1512 = vst [vmem:[%s309 + $0xf0] sm:$0xff] %v1480
      %1513 = vst [vmem:[%s309 + $0xf8] sm:$0xff] %v1481
      %v1514 = vadd.f32 %v1450, %v1452
      %v1515 = vadd.f32 %v1514, %v1454
      %v1516 = vadd.f32 %v1515, %v1456
      %v1517 = vadd.f32 %v1516, %v1458
      %v1518 = vadd.f32 %v1517, %v1460
      %v1519 = vadd.f32 %v1518, %v1462
      %v1520 = vadd.f32 %v1519, %v1464
      %v1521 = vadd.f32 %v1520, %v1466
      %v1522 = vadd.f32 %v1521, %v1468
      %v1523 = vadd.f32 %v1522, %v1470
      %v1524 = vadd.f32 %v1523, %v1472
      %v1525 = vadd.f32 %v1524, %v1474
      %v1526 = vadd.f32 %v1525, %v1476
      %v1527 = vadd.f32 %v1526, %v1478
      %v1528 = vadd.f32 %v1527, %v1480
      %v1529 = vadd.f32 %v1451, %v1453
      %v1530 = vadd.f32 %v1529, %v1455
      %v1531 = vadd.f32 %v1530, %v1457
      %v1532 = vadd.f32 %v1531, %v1459
      %v1533 = vadd.f32 %v1532, %v1461
      %v1534 = vadd.f32 %v1533, %v1463
      %v1535 = vadd.f32 %v1534, %v1465
      %v1536 = vadd.f32 %v1535, %v1467
      %v1537 = vadd.f32 %v1536, %v1469
      %v1538 = vadd.f32 %v1537, %v1471
      %v1539 = vadd.f32 %v1538, %v1473
      %v1540 = vadd.f32 %v1539, %v1475
      %v1541 = vadd.f32 %v1540, %v1477
      %v1542 = vadd.f32 %v1541, %v1479
      %v1543 = vadd.f32 %v1542, %v1481
      %v1544 = vadd.f32 %v1528, %v1543
      %v1545 = vrot.slane %v1544, 4
      %v1546 = vadd.f32 %v1544, %v1545
      %v1547 = vrot.slane %v1546, 2
      %v1548 = vadd.f32 %v1546, %v1547
      %v1549 = vrot.slane %v1548, 1
      %v1550 = vadd.f32 %v1548, %v1549
      %v1551 = vmul.f32 %v1450, %v1450
      %v1552 = vmul.f32 %v1451, %v1451
      %v1553 = vmul.f32 %v1452, %v1452
      %v1554 = vmul.f32 %v1453, %v1453
      %v1555 = vmul.f32 %v1454, %v1454
      %v1556 = vmul.f32 %v1455, %v1455
      %v1557 = vmul.f32 %v1456, %v1456
      %v1558 = vmul.f32 %v1457, %v1457
      %v1559 = vmul.f32 %v1458, %v1458
      %v1560 = vmul.f32 %v1459, %v1459
      %v1561 = vmul.f32 %v1460, %v1460
      %v1562 = vmul.f32 %v1461, %v1461
      %v1563 = vmul.f32 %v1462, %v1462
      %v1564 = vmul.f32 %v1463, %v1463
      %v1565 = vmul.f32 %v1464, %v1464
      %v1566 = vmul.f32 %v1465, %v1465
      %v1567 = vmul.f32 %v1466, %v1466
      %v1568 = vmul.f32 %v1467, %v1467
      %v1569 = vmul.f32 %v1468, %v1468
      %v1570 = vmul.f32 %v1469, %v1469
      %v1571 = vmul.f32 %v1470, %v1470
      %v1572 = vmul.f32 %v1471, %v1471
      %v1573 = vmul.f32 %v1472, %v1472
      %v1574 = vmul.f32 %v1473, %v1473
      %v1575 = vmul.f32 %v1474, %v1474
      %v1576 = vmul.f32 %v1475, %v1475
      %v1577 = vmul.f32 %v1476, %v1476
      %v1578 = vmul.f32 %v1477, %v1477
      %v1579 = vmul.f32 %v1478, %v1478
      %v1580 = vmul.f32 %v1479, %v1479
      %v1581 = vmul.f32 %v1480, %v1480
      %v1582 = vmul.f32 %v1481, %v1481
      %v1583 = vadd.f32 %v1551, %v1553
      %v1584 = vadd.f32 %v1583, %v1555
      %v1585 = vadd.f32 %v1584, %v1557
      %v1586 = vadd.f32 %v1585, %v1559
      %v1587 = vadd.f32 %v1586, %v1561
      %v1588 = vadd.f32 %v1587, %v1563
      %v1589 = vadd.f32 %v1588, %v1565
      %v1590 = vadd.f32 %v1589, %v1567
      %v1591 = vadd.f32 %v1590, %v1569
      %v1592 = vadd.f32 %v1591, %v1571
      %v1593 = vadd.f32 %v1592, %v1573
      %v1594 = vadd.f32 %v1593, %v1575
      %v1595 = vadd.f32 %v1594, %v1577
      %v1596 = vadd.f32 %v1595, %v1579
      %v1597 = vadd.f32 %v1596, %v1581
      %v1598 = vadd.f32 %v1552, %v1554
      %v1599 = vadd.f32 %v1598, %v1556
      %v1600 = vadd.f32 %v1599, %v1558
      %v1601 = vadd.f32 %v1600, %v1560
      %v1602 = vadd.f32 %v1601, %v1562
      %v1603 = vadd.f32 %v1602, %v1564
      %v1604 = vadd.f32 %v1603, %v1566
      %v1605 = vadd.f32 %v1604, %v1568
      %v1606 = vadd.f32 %v1605, %v1570
      %v1607 = vadd.f32 %v1606, %v1572
      %v1608 = vadd.f32 %v1607, %v1574
      %v1609 = vadd.f32 %v1608, %v1576
      %v1610 = vadd.f32 %v1609, %v1578
      %v1611 = vadd.f32 %v1610, %v1580
      %v1612 = vadd.f32 %v1611, %v1582
      %v1613 = vadd.f32 %v1597, %v1612
      %v1614 = vrot.slane %v1613, 4
      %v1615 = vadd.f32 %v1613, %v1614
      %v1616 = vrot.slane %v1615, 2
      %v1617 = vadd.f32 %v1615, %v1616
      %v1618 = vrot.slane %v1617, 1
      %v1619 = vadd.f32 %v1617, %v1618
      %vm1620 = vcmask 1040384
      %v1621 = vsel %vm1620, %v1550, %v1619
      %1622 = vst [vmem:[%s316] sm:$0x3] %v1621
      %p1623 = scmp.lt.s32.totalorder %s21, 1
      %s1624 = scalar_select %p1623, %s21, 1
      %p1625 = scmp.lt.s32.totalorder %s22, 0
      %s1626 = scalar_select %p1625, %s22, 0
      %s1627 = smul.addr %s1624, 32
      %s1628 = sadd.s32 %s1626, %s1627
      %s1629 = smul.addr %s1628, 8
      %s1630 = scalar_lea.vmem %s4, %s1629
      %p1631 = scmp.lt.s32.totalorder %s21, 1
      %s1632 = scalar_select %p1631, %s21, 1
      %p1633 = scmp.lt.s32.totalorder %s22, 0
      %s1634 = scalar_select %p1633, %s22, 0
      %s1635 = sadd.s32 %s1634, %s1632
      %s1636 = smul.addr %s1635, 2
      %s1637 = scalar_lea.vmem %s5, %s1636
      // Predicated region
      $region37: #{inverted_residual.5} parent=35 // pred_check
        %p1638 = pneg %p155
      $region38: #{inverted_residual.5} parent=35 // pred_check_branch
        %1640 = sbr.rel (%p1638) target = $region40
      $region39: #{inverted_residual.5} parent=35 // pred_region
        _
      $region40: #{inverted_residual.5} parent=35 // pred_fallthru
        _
      // Predicated region
      $region41: #{inverted_residual.5} parent=35 // pred_check
        %p1641 = pneg %p183
      $region42: #{inverted_residual.5} parent=35 // pred_check_branch
        %1643 = sbr.rel (%p1641) target = $region44
      $region43: #{inverted_residual.5} parent=35 // pred_region
        _
      $region44: #{inverted_residual.5} parent=35 // pred_fallthru
        _
    $region36: #{inverted_residual.5} parent=5 // pred_fallthru
      _
    %p1644 = scmp.le.s32.totalorder 2, %s12
    // Predicated region
    $region45: #{inverted_residual.5} parent=5 // pred_check
      %p1645 = pneg %p1644
    $region46: #{inverted_residual.5} parent=5 // pred_check_branch
      %1647 = sbr.rel (%p1645) target = $region48
    $region47: #{inverted_residual.5} parent=5 // pred_region
      %s1648 = ssub.s32 %s12, 2
      // Predicated region
      $region49: #{inverted_residual.5} parent=47 // pred_check
        %p1649 = pneg %p161
      $region50: #{inverted_residual.5} parent=47 // pred_check_branch
        %1651 = sbr.rel (%p1649) target = $region52
      $region51: #{inverted_residual.5} parent=47 // pred_region
        %p1652 = scmp.lt.s32.totalorder %s23, 1
        %s1653 = scalar_select %p1652, %s23, 1
        %p1654 = scmp.lt.s32.totalorder %s24, 0
        %s1655 = scalar_select %p1654, %s24, 0
        %s1656 = smul.addr %s1653, 32
        %s1657 = sadd.s32 %s1655, %s1656
        %s1658 = smul.addr %s1657, 8
        %s1659 = scalar_lea.vmem %s4, %s1658
      $region52: #{inverted_residual.5} parent=47 // pred_fallthru
        _
      // Predicated region
      $region53: #{inverted_residual.5} parent=47 // pred_check
        %p1660 = pneg %p189
      $region54: #{inverted_residual.5} parent=47 // pred_check_branch
        %1662 = sbr.rel (%p1660) target = $region56
      $region55: #{inverted_residual.5} parent=47 // pred_region
        %p1663 = scmp.lt.s32.totalorder %s23, 1
        %s1664 = scalar_select %p1663, %s23, 1
        %p1665 = scmp.lt.s32.totalorder %s24, 0
        %s1666 = scalar_select %p1665, %s24, 0
        %s1667 = sadd.s32 %s1666, %s1664
        %s1668 = smul.addr %s1667, 2
        %s1669 = scalar_lea.vmem %s5, %s1668
      $region56: #{inverted_residual.5} parent=47 // pred_fallthru
        _
    $region48: #{inverted_residual.5} parent=5 // pred_fallthru
      _
  $region6: #{inverted_residual.5} parent=0 // loop_footer
    %s16 = sadd.s32 1, %s12
  $region7: #{inverted_residual.5} parent=0 // loop_footer_branch
    %11 = sbr.rel target = $region3
  $region8: #{inverted_residual.5} parent=0 // loop_exit
    _

</llo_original>
